<compile_context>
chip_gen: v5e
topology: v5e:2x2
jax: 0.10.0
libtpu: 0.0.40
codegen_flags: <defaults>
</compile_context>

<pallas_src>
import functools

import jax
import jax.numpy as jnp
import numpy as np
from jax.experimental import pallas as pl
from jax.experimental.pallas import tpu as pltpu


# -----------------------------------------------------------------------------
# Fused kernel
# -----------------------------------------------------------------------------
def fused_rnn_kernel(
    x_ref,
    w1a_ref, b1a_ref, w2a_ref, b2a_ref, sel1_ref,
    w1b_ref, b1b_ref, w2b_ref, b2b_ref, sel2_ref,
    w1c_ref, b1c_ref, w2c_ref, b2c_ref, sel3t_ref,
    wih_ref, whh_ref, bl_ref,
    wa_ref, ba_ref, gamma_ref, beta_ref, wfc_ref, bfc_ref,
    o_ref,
    *, eps):
    f32 = jnp.float32
    B = x_ref.shape[0]
    T = sel3t_ref.shape[0]
    H = whh_ref.shape[0]

    def conv_relu(h, w_ref, b_ref):
        # conv1d(k=3, s=1) as K shifted MXU matmuls (weights streamed as LHS).
        K = w_ref.shape[0]
        L1 = h.shape[1] - K + 1
        acc = jnp.dot(w_ref[0], h[:, 0:L1], preferred_element_type=f32)
        for k in range(1, K):
            acc = acc + jnp.dot(w_ref[k], h[:, k:k + L1],
                                preferred_element_type=f32)
        return jnp.maximum(acc + b_ref[...], 0.0)

    def sliding_max4(h):
        Lz = h.shape[1] - 3
        z = h[:, 0:Lz]
        for j in range(1, 4):
            z = jnp.maximum(z, h[:, j:j + Lz])
        return z

    def pool(h, sel_ref):
        # stride-2 decimation via precomputed 0/1 selection matmul
        return jnp.dot(sliding_max4(h), sel_ref[...],
                       preferred_element_type=f32)

    wihT = wih_ref[...]      # (36, 4H)
    whhT = whh_ref[...]      # (H, 4H)
    bl = bl_ref[...]         # (1, 4H)

    # ---- CNN stack + hoisted LSTM input projection, per batch element ----
    gates_x = []
    for b in range(B):
        h = x_ref[b]                                        # (Cin, L0)
        h = conv_relu(h, w1a_ref, b1a_ref)
        h = conv_relu(h, w2a_ref, b2a_ref)
        h = pool(h, sel1_ref)                               # (12, 61)
        h = conv_relu(h, w1b_ref, b1b_ref)
        h = conv_relu(h, w2b_ref, b2b_ref)
        h = pool(h, sel2_ref)                               # (24, 27)
        h = conv_relu(h, w1c_ref, b1c_ref)
        h = conv_relu(h, w2c_ref, b2c_ref)                  # (36, 23)
        z = sliding_max4(h)                                 # (36, 20)
        # decimation applied from the left (transposed-RHS dot, same pattern
        # as attention q @ k^T) so x_seq[t, c] = z[c, 2t]  -> time-major.
        x_seq = jax.lax.dot_general(
            sel3t_ref[...], z, (((1,), (1,)), ((), ())),
            preferred_element_type=f32)                     # (T, 36)
        # TODO(synk): dropout(p=0.3, training=True) omitted (identity).
        gates_x.append(jnp.dot(x_seq, wihT, preferred_element_type=f32) + bl)

    # ---- LSTM recurrence: only h @ W_hh^T + gate math on the serial path;
    #      T fully unrolled, the B=2 chains are independent (ILP). ----
    hh = [jnp.zeros((1, H), f32) for _ in range(B)]
    cc = [jnp.zeros((1, H), f32) for _ in range(B)]
    hsum = [jnp.zeros((1, H), f32) for _ in range(B)]
    for t in range(T):
        for b in range(B):
            gates = gates_x[b][t:t + 1, :] + jnp.dot(
                hh[b], whhT, preferred_element_type=f32)    # (1, 4H)
            i = jax.nn.sigmoid(gates[:, 0 * H:1 * H])
            f = jax.nn.sigmoid(gates[:, 1 * H:2 * H])
            g = jnp.tanh(gates[:, 2 * H:3 * H])
            o = jax.nn.sigmoid(gates[:, 3 * H:4 * H])
            cc[b] = f * cc[b] + i * g
            hh[b] = o * jnp.tanh(cc[b])
            hsum[b] = hsum[b] + hh[b]

    # ---- attention sum + BatchNorm1d (batch statistics) + final Linear ----
    # sum_t Linear(h_t) == (sum_t h_t) @ Wa^T + T * ba
    att = [jnp.dot(hsum[b], wa_ref[...], preferred_element_type=f32)
           + float(T) * ba_ref[...] for b in range(B)]
    mean = att[0]
    for b in range(1, B):
        mean = mean + att[b]
    mean = mean * (1.0 / B)
    var = (att[0] - mean) ** 2
    for b in range(1, B):
        var = var + (att[b] - mean) ** 2
    var = var * (1.0 / B)
    inv = jax.lax.rsqrt(var + eps)
    for b in range(B):
        bn = (att[b] - mean) * inv * gamma_ref[...] + beta_ref[...]
        o_ref[b:b + 1, :] = (jnp.dot(bn, wfc_ref[...],
                                     preferred_element_type=f32)
                             + bfc_ref[...])


# -----------------------------------------------------------------------------
# Wrapper
# -----------------------------------------------------------------------------
def _cnn_out_dims(L, K=3):
    L1 = L - K + 1
    L2 = L1 - K + 1
    Lz = L2 - 3                 # sliding-window-max length (window 4)
    Lp = (L2 - 4) // 2 + 1      # after maxpool(kernel=4, stride=2)
    return Lz, Lp


def _decimation_matrix(Lz, Lp):
    sel = np.zeros((Lz, Lp), np.float32)
    sel[2 * np.arange(Lp), np.arange(Lp)] = 1.0
    return sel


def rnn_forward(x, params):
    B, _, L = x.shape

    # precomputed stride-2 decimation matrices (constants at trace time)
    raw_sels = []
    for _ in range(3):
        Lz, Lp = _cnn_out_dims(L)
        raw_sels.append(_decimation_matrix(Lz, Lp))
        L = Lp
    sel1 = jnp.asarray(raw_sels[0])
    sel2 = jnp.asarray(raw_sels[1])
    sel3t = jnp.asarray(raw_sels[2].T)   # applied from the left in the kernel

    def kconv(w):   # torch (Cout, Cin, K) -> kernel layout (K, Cout, Cin)
        return jnp.transpose(w, (2, 0, 1))

    cnn_args = []
    for name, sel in (("cnn1", sel1), ("cnn2", sel2), ("cnn3", sel3t)):
        p = params[name]
        cnn_args += [kconv(p["w1"]), p["b1"].reshape(-1, 1),
                     kconv(p["w2"]), p["b2"].reshape(-1, 1), sel]

    lp = params["lstm"]
    lstm_args = [lp["w_ih"].T,                                  # (36, 4H)
                 lp["w_hh"].T,                                  # (H, 4H)
                 (lp["b_ih"] + lp["b_hh"]).reshape(1, -1)]      # (1, 4H)
    head_args = [params["attn"]["w"].T, params["attn"]["b"].reshape(1, -1),
                 params["bn"]["gamma"].reshape(1, -1),
                 params["bn"]["beta"].reshape(1, -1),
                 params["fc"]["w"].T, params["fc"]["b"].reshape(1, -1)]

    args = [x] + cnn_args + lstm_args + head_args
    n_cls = params["fc"]["w"].shape[0]
    vmem = pl.BlockSpec(memory_space=pltpu.MemorySpace.VMEM)
    return pl.pallas_call(
        functools.partial(fused_rnn_kernel, eps=1e-5),
        out_shape=jax.ShapeDtypeStruct((B, n_cls), jnp.float32),
        in_specs=[vmem] * len(args),
        out_specs=vmem,
    )(*args)


# -----------------------------------------------------------------------------
# Deterministic parameter init (shapes from the module's __init__)
# -----------------------------------------------------------------------------
def init_params(key):
    hidden, attn_size, n_cls = 64, 32, 4
    ks = list(jax.random.split(key, 20))

    def norm(shape, scale=0.1):
        return scale * jax.random.normal(ks.pop(0), shape, jnp.float32)

    params = {}
    for name, cin, cout in (("cnn1", 1, 12), ("cnn2", 12, 24), ("cnn3", 24, 36)):
        params[name] = {"w1": norm((cout, cin, 3)), "b1": norm((cout,)),
                        "w2": norm((cout, cout, 3)), "b2": norm((cout,))}
    params["lstm"] = {"w_ih": norm((4 * hidden, 36)),
                      "w_hh": norm((4 * hidden, hidden)),
                      "b_ih": norm((4 * hidden,)),
                      "b_hh": norm((4 * hidden,))}
    params["attn"] = {"w": norm((attn_size, hidden)), "b": norm((attn_size,))}
    params["bn"] = {"gamma": jnp.ones((attn_size,), jnp.float32),
                    "beta": jnp.zeros((attn_size,), jnp.float32)}
    params["fc"] = {"w": norm((n_cls, attn_size)), "b": norm((n_cls,))}
    return params


# -----------------------------------------------------------------------------
# Pure-JAX reference (structurally independent) for numerical sanity check
# -----------------------------------------------------------------------------
def _ref_conv1d(x, w, b):
    y = jax.lax.conv_general_dilated(
        x, w, window_strides=(1,), padding="VALID",
        dimension_numbers=("NCH", "OIH", "NCH"),
        precision=jax.lax.Precision.HIGHEST)
    return y + b[None, :, None]


def _ref_cnn_block(x, p):
    c1 = jax.nn.relu(_ref_conv1d(x, p["w1"], p["b1"]))
    c2 = jax.nn.relu(_ref_conv1d(c1, p["w2"], p["b2"]))
    return jax.lax.reduce_window(
        c2, -jnp.inf, jax.lax.max,
        window_dimensions=(1, 1, 4), window_strides=(1, 1, 2),
        padding="VALID")


def reference_forward(x, params):
    h = x
    for name in ("cnn1", "cnn2", "cnn3"):
        h = _ref_cnn_block(h, params[name])
    seq = jnp.transpose(h, (0, 2, 1))          # (B, T, C)
    B, T, _ = seq.shape
    lp = params["lstm"]
    H = lp["w_hh"].shape[1]
    wihT, whhT = lp["w_ih"].T, lp["w_hh"].T
    b = lp["b_ih"] + lp["b_hh"]
    hh = jnp.zeros((B, H), jnp.float32)
    cc = jnp.zeros((B, H), jnp.float32)
    hsum = jnp.zeros((B, H), jnp.float32)
    for t in range(T):
        gates = seq[:, t] @ wihT + hh @ whhT + b
        i = jax.nn.sigmoid(gates[:, :H])
        f = jax.nn.sigmoid(gates[:, H:2 * H])
        g = jnp.tanh(gates[:, 2 * H:3 * H])
        o = jax.nn.sigmoid(gates[:, 3 * H:])
        cc = f * cc + i * g
        hh = o * jnp.tanh(cc)
        hsum = hsum + hh
    att = hsum @ params["attn"]["w"].T + T * params["attn"]["b"]
    mean = att.mean(0, keepdims=True)
    var = ((att - mean) ** 2).mean(0, keepdims=True)
    bn = ((att - mean) / jnp.sqrt(var + 1e-5)
          * params["bn"]["gamma"] + params["bn"]["beta"])
    return bn @ params["fc"]["w"].T + params["fc"]["b"]


if __name__ == "__main__":
    key = jax.random.PRNGKey(0)
    pkey, xkey = jax.random.split(key)
    params = init_params(pkey)

    # layout: x is (B, C=1, L) float32, NCW like the PyTorch Conv1d input.
    x = jax.random.normal(xkey, (2, 1, 128), jnp.float32)

    out = jax.jit(lambda xx: rnn_forward(xx, params))(x)
    out = jax.block_until_ready(out)
    assert out.shape == (2, 4)

    ref = reference_forward(x, params)
    np.testing.assert_allclose(np.asarray(out), np.asarray(ref),
                               rtol=5e-3, atol=5e-3)
    print("KERNEL_OK")
</pallas_src>

<mosaic_0001>
module attributes {stable_mosaic.version = 11 : i64} {
  func.func @fused_rnn_kernel(%arg0: memref<2x1x128xf32, #tpu.memory_space<vmem>>, %arg1: memref<3x12x1xf32, #tpu.memory_space<vmem>>, %arg2: memref<12x1xf32, #tpu.memory_space<vmem>>, %arg3: memref<3x12x12xf32, #tpu.memory_space<vmem>>, %arg4: memref<12x1xf32, #tpu.memory_space<vmem>>, %arg5: memref<121x61xf32, #tpu.memory_space<vmem>>, %arg6: memref<3x24x12xf32, #tpu.memory_space<vmem>>, %arg7: memref<24x1xf32, #tpu.memory_space<vmem>>, %arg8: memref<3x24x24xf32, #tpu.memory_space<vmem>>, %arg9: memref<24x1xf32, #tpu.memory_space<vmem>>, %arg10: memref<54x27xf32, #tpu.memory_space<vmem>>, %arg11: memref<3x36x24xf32, #tpu.memory_space<vmem>>, %arg12: memref<36x1xf32, #tpu.memory_space<vmem>>, %arg13: memref<3x36x36xf32, #tpu.memory_space<vmem>>, %arg14: memref<36x1xf32, #tpu.memory_space<vmem>>, %arg15: memref<10x20xf32, #tpu.memory_space<vmem>>, %arg16: memref<36x256xf32, #tpu.memory_space<vmem>>, %arg17: memref<64x256xf32, #tpu.memory_space<vmem>>, %arg18: memref<1x256xf32, #tpu.memory_space<vmem>>, %arg19: memref<64x32xf32, #tpu.memory_space<vmem>>, %arg20: memref<1x32xf32, #tpu.memory_space<vmem>>, %arg21: memref<1x32xf32, #tpu.memory_space<vmem>>, %arg22: memref<1x32xf32, #tpu.memory_space<vmem>>, %arg23: memref<32x4xf32, #tpu.memory_space<vmem>>, %arg24: memref<1x4xf32, #tpu.memory_space<vmem>>, %arg25: memref<2x4xf32, #tpu.memory_space<vmem>>) attributes {dimension_semantics = [], scalar_prefetch = 0 : i64, scratch_operands = 0 : i64, tpu.core_type = #tpu.core_type<tc>} {
    %c0 = arith.constant 0 : index
    %c0_0 = arith.constant 0 : index
    %0 = vector.load %arg16[%c0, %c0_0] : memref<36x256xf32, #tpu.memory_space<vmem>>, vector<36x256xf32>
    %c0_1 = arith.constant 0 : index
    %c0_2 = arith.constant 0 : index
    %1 = vector.load %arg17[%c0_1, %c0_2] : memref<64x256xf32, #tpu.memory_space<vmem>>, vector<64x256xf32>
    %c0_3 = arith.constant 0 : index
    %c0_4 = arith.constant 0 : index
    %2 = vector.load %arg18[%c0_3, %c0_4] : memref<1x256xf32, #tpu.memory_space<vmem>>, vector<1x256xf32>
    %c0_5 = arith.constant 0 : index
    %c0_6 = arith.constant 0 : index
    %c0_7 = arith.constant 0 : index
    %3 = vector.load %arg0[%c0_5, %c0_6, %c0_7] : memref<2x1x128xf32, #tpu.memory_space<vmem>>, vector<1x1x128xf32>
    %4 = vector.shape_cast %3 : vector<1x1x128xf32> to vector<1x128xf32>
    %c0_8 = arith.constant 0 : index
    %c0_9 = arith.constant 0 : index
    %c0_10 = arith.constant 0 : index
    %5 = vector.load %arg1[%c0_8, %c0_9, %c0_10] : memref<3x12x1xf32, #tpu.memory_space<vmem>>, vector<1x12x1xf32>
    %6 = vector.shape_cast %5 : vector<1x12x1xf32> to vector<12x1xf32>
    %7 = vector.extract_strided_slice %4 {offsets = [0, 0], sizes = [1, 126], strides = [1, 1]} : vector<1x128xf32> to vector<1x126xf32>
    %cst = arith.constant dense<0.000000e+00> : vector<12x126xf32>
    %8 = tpu.matmul %6, %7, %cst {dimension_numbers = #tpu.dot_dimension_numbers<[1], [0], [0], [1], [0, 0, 1, 1], [], []>} : vector<12x1xf32>, vector<1x126xf32>, vector<12x126xf32> -> vector<12x126xf32>
    %c1 = arith.constant 1 : index
    %c0_11 = arith.constant 0 : index
    %c0_12 = arith.constant 0 : index
    %9 = vector.load %arg1[%c1, %c0_11, %c0_12] : memref<3x12x1xf32, #tpu.memory_space<vmem>>, vector<1x12x1xf32>
    %10 = vector.shape_cast %9 : vector<1x12x1xf32> to vector<12x1xf32>
    %11 = vector.extract_strided_slice %4 {offsets = [0, 1], sizes = [1, 126], strides = [1, 1]} : vector<1x128xf32> to vector<1x126xf32>
    %cst_13 = arith.constant dense<0.000000e+00> : vector<12x126xf32>
    %12 = tpu.matmul %10, %11, %cst_13 {dimension_numbers = #tpu.dot_dimension_numbers<[1], [0], [0], [1], [0, 0, 1, 1], [], []>} : vector<12x1xf32>, vector<1x126xf32>, vector<12x126xf32> -> vector<12x126xf32>
    %13 = arith.addf %8, %12 : vector<12x126xf32>
    %c2 = arith.constant 2 : index
    %c0_14 = arith.constant 0 : index
    %c0_15 = arith.constant 0 : index
    %14 = vector.load %arg1[%c2, %c0_14, %c0_15] : memref<3x12x1xf32, #tpu.memory_space<vmem>>, vector<1x12x1xf32>
    %15 = vector.shape_cast %14 : vector<1x12x1xf32> to vector<12x1xf32>
    %16 = vector.extract_strided_slice %4 {offsets = [0, 2], sizes = [1, 126], strides = [1, 1]} : vector<1x128xf32> to vector<1x126xf32>
    %cst_16 = arith.constant dense<0.000000e+00> : vector<12x126xf32>
    %17 = tpu.matmul %15, %16, %cst_16 {dimension_numbers = #tpu.dot_dimension_numbers<[1], [0], [0], [1], [0, 0, 1, 1], [], []>} : vector<12x1xf32>, vector<1x126xf32>, vector<12x126xf32> -> vector<12x126xf32>
    %18 = arith.addf %13, %17 : vector<12x126xf32>
    %c0_17 = arith.constant 0 : index
    %c0_18 = arith.constant 0 : index
    %19 = vector.load %arg2[%c0_17, %c0_18] : memref<12x1xf32, #tpu.memory_space<vmem>>, vector<12x1xf32>
    %20 = vector.broadcast %19 : vector<12x1xf32> to vector<12x126xf32>
    %21 = arith.addf %18, %20 : vector<12x126xf32>
    %cst_19 = arith.constant 0.000000e+00 : f32
    %22 = vector.broadcast %cst_19 : f32 to vector<12x126xf32>
    %23 = arith.maximumf %21, %22 : vector<12x126xf32>
    %c0_20 = arith.constant 0 : index
    %c0_21 = arith.constant 0 : index
    %c0_22 = arith.constant 0 : index
    %24 = vector.load %arg3[%c0_20, %c0_21, %c0_22] : memref<3x12x12xf32, #tpu.memory_space<vmem>>, vector<1x12x12xf32>
    %25 = vector.shape_cast %24 : vector<1x12x12xf32> to vector<12x12xf32>
    %26 = vector.extract_strided_slice %23 {offsets = [0, 0], sizes = [12, 124], strides = [1, 1]} : vector<12x126xf32> to vector<12x124xf32>
    %cst_23 = arith.constant dense<0.000000e+00> : vector<12x124xf32>
    %27 = tpu.matmul %25, %26, %cst_23 {dimension_numbers = #tpu.dot_dimension_numbers<[1], [0], [0], [1], [0, 0, 1, 1], [], []>} : vector<12x12xf32>, vector<12x124xf32>, vector<12x124xf32> -> vector<12x124xf32>
    %c1_24 = arith.constant 1 : index
    %c0_25 = arith.constant 0 : index
    %c0_26 = arith.constant 0 : index
    %28 = vector.load %arg3[%c1_24, %c0_25, %c0_26] : memref<3x12x12xf32, #tpu.memory_space<vmem>>, vector<1x12x12xf32>
    %29 = vector.shape_cast %28 : vector<1x12x12xf32> to vector<12x12xf32>
    %30 = vector.extract_strided_slice %23 {offsets = [0, 1], sizes = [12, 124], strides = [1, 1]} : vector<12x126xf32> to vector<12x124xf32>
    %cst_27 = arith.constant dense<0.000000e+00> : vector<12x124xf32>
    %31 = tpu.matmul %29, %30, %cst_27 {dimension_numbers = #tpu.dot_dimension_numbers<[1], [0], [0], [1], [0, 0, 1, 1], [], []>} : vector<12x12xf32>, vector<12x124xf32>, vector<12x124xf32> -> vector<12x124xf32>
    %32 = arith.addf %27, %31 : vector<12x124xf32>
    %c2_28 = arith.constant 2 : index
    %c0_29 = arith.constant 0 : index
    %c0_30 = arith.constant 0 : index
    %33 = vector.load %arg3[%c2_28, %c0_29, %c0_30] : memref<3x12x12xf32, #tpu.memory_space<vmem>>, vector<1x12x12xf32>
    %34 = vector.shape_cast %33 : vector<1x12x12xf32> to vector<12x12xf32>
    %35 = vector.extract_strided_slice %23 {offsets = [0, 2], sizes = [12, 124], strides = [1, 1]} : vector<12x126xf32> to vector<12x124xf32>
    %cst_31 = arith.constant dense<0.000000e+00> : vector<12x124xf32>
    %36 = tpu.matmul %34, %35, %cst_31 {dimension_numbers = #tpu.dot_dimension_numbers<[1], [0], [0], [1], [0, 0, 1, 1], [], []>} : vector<12x12xf32>, vector<12x124xf32>, vector<12x124xf32> -> vector<12x124xf32>
    %37 = arith.addf %32, %36 : vector<12x124xf32>
    %c0_32 = arith.constant 0 : index
    %c0_33 = arith.constant 0 : index
    %38 = vector.load %arg4[%c0_32, %c0_33] : memref<12x1xf32, #tpu.memory_space<vmem>>, vector<12x1xf32>
    %39 = vector.broadcast %38 : vector<12x1xf32> to vector<12x124xf32>
    %40 = arith.addf %37, %39 : vector<12x124xf32>
    %cst_34 = arith.constant 0.000000e+00 : f32
    %41 = vector.broadcast %cst_34 : f32 to vector<12x124xf32>
    %42 = arith.maximumf %40, %41 : vector<12x124xf32>
    %43 = vector.extract_strided_slice %42 {offsets = [0, 0], sizes = [12, 121], strides = [1, 1]} : vector<12x124xf32> to vector<12x121xf32>
    %44 = vector.extract_strided_slice %42 {offsets = [0, 1], sizes = [12, 121], strides = [1, 1]} : vector<12x124xf32> to vector<12x121xf32>
    %45 = arith.maximumf %43, %44 : vector<12x121xf32>
    %46 = vector.extract_strided_slice %42 {offsets = [0, 2], sizes = [12, 121], strides = [1, 1]} : vector<12x124xf32> to vector<12x121xf32>
    %47 = arith.maximumf %45, %46 : vector<12x121xf32>
    %48 = vector.extract_strided_slice %42 {offsets = [0, 3], sizes = [12, 121], strides = [1, 1]} : vector<12x124xf32> to vector<12x121xf32>
    %49 = arith.maximumf %47, %48 : vector<12x121xf32>
    %c0_35 = arith.constant 0 : index
    %c0_36 = arith.constant 0 : index
    %50 = vector.load %arg5[%c0_35, %c0_36] : memref<121x61xf32, #tpu.memory_space<vmem>>, vector<121x61xf32>
    %cst_37 = arith.constant dense<0.000000e+00> : vector<12x61xf32>
    %51 = tpu.matmul %49, %50, %cst_37 {dimension_numbers = #tpu.dot_dimension_numbers<[1], [0], [0], [1], [0, 0, 1, 1], [], []>} : vector<12x121xf32>, vector<121x61xf32>, vector<12x61xf32> -> vector<12x61xf32>
    %c0_38 = arith.constant 0 : index
    %c0_39 = arith.constant 0 : index
    %c0_40 = arith.constant 0 : index
    %52 = vector.load %arg6[%c0_38, %c0_39, %c0_40] : memref<3x24x12xf32, #tpu.memory_space<vmem>>, vector<1x24x12xf32>
    %53 = vector.shape_cast %52 : vector<1x24x12xf32> to vector<24x12xf32>
    %54 = vector.extract_strided_slice %51 {offsets = [0, 0], sizes = [12, 59], strides = [1, 1]} : vector<12x61xf32> to vector<12x59xf32>
    %cst_41 = arith.constant dense<0.000000e+00> : vector<24x59xf32>
    %55 = tpu.matmul %53, %54, %cst_41 {dimension_numbers = #tpu.dot_dimension_numbers<[1], [0], [0], [1], [0, 0, 1, 1], [], []>} : vector<24x12xf32>, vector<12x59xf32>, vector<24x59xf32> -> vector<24x59xf32>
    %c1_42 = arith.constant 1 : index
    %c0_43 = arith.constant 0 : index
    %c0_44 = arith.constant 0 : index
    %56 = vector.load %arg6[%c1_42, %c0_43, %c0_44] : memref<3x24x12xf32, #tpu.memory_space<vmem>>, vector<1x24x12xf32>
    %57 = vector.shape_cast %56 : vector<1x24x12xf32> to vector<24x12xf32>
    %58 = vector.extract_strided_slice %51 {offsets = [0, 1], sizes = [12, 59], strides = [1, 1]} : vector<12x61xf32> to vector<12x59xf32>
    %cst_45 = arith.constant dense<0.000000e+00> : vector<24x59xf32>
    %59 = tpu.matmul %57, %58, %cst_45 {dimension_numbers = #tpu.dot_dimension_numbers<[1], [0], [0], [1], [0, 0, 1, 1], [], []>} : vector<24x12xf32>, vector<12x59xf32>, vector<24x59xf32> -> vector<24x59xf32>
    %60 = arith.addf %55, %59 : vector<24x59xf32>
    %c2_46 = arith.constant 2 : index
    %c0_47 = arith.constant 0 : index
    %c0_48 = arith.constant 0 : index
    %61 = vector.load %arg6[%c2_46, %c0_47, %c0_48] : memref<3x24x12xf32, #tpu.memory_space<vmem>>, vector<1x24x12xf32>
    %62 = vector.shape_cast %61 : vector<1x24x12xf32> to vector<24x12xf32>
    %63 = vector.extract_strided_slice %51 {offsets = [0, 2], sizes = [12, 59], strides = [1, 1]} : vector<12x61xf32> to vector<12x59xf32>
    %cst_49 = arith.constant dense<0.000000e+00> : vector<24x59xf32>
    %64 = tpu.matmul %62, %63, %cst_49 {dimension_numbers = #tpu.dot_dimension_numbers<[1], [0], [0], [1], [0, 0, 1, 1], [], []>} : vector<24x12xf32>, vector<12x59xf32>, vector<24x59xf32> -> vector<24x59xf32>
    %65 = arith.addf %60, %64 : vector<24x59xf32>
    %c0_50 = arith.constant 0 : index
    %c0_51 = arith.constant 0 : index
    %66 = vector.load %arg7[%c0_50, %c0_51] : memref<24x1xf32, #tpu.memory_space<vmem>>, vector<24x1xf32>
    %67 = vector.broadcast %66 : vector<24x1xf32> to vector<24x59xf32>
    %68 = arith.addf %65, %67 : vector<24x59xf32>
    %cst_52 = arith.constant 0.000000e+00 : f32
    %69 = vector.broadcast %cst_52 : f32 to vector<24x59xf32>
    %70 = arith.maximumf %68, %69 : vector<24x59xf32>
    %c0_53 = arith.constant 0 : index
    %c0_54 = arith.constant 0 : index
    %c0_55 = arith.constant 0 : index
    %71 = vector.load %arg8[%c0_53, %c0_54, %c0_55] : memref<3x24x24xf32, #tpu.memory_space<vmem>>, vector<1x24x24xf32>
    %72 = vector.shape_cast %71 : vector<1x24x24xf32> to vector<24x24xf32>
    %73 = vector.extract_strided_slice %70 {offsets = [0, 0], sizes = [24, 57], strides = [1, 1]} : vector<24x59xf32> to vector<24x57xf32>
    %cst_56 = arith.constant dense<0.000000e+00> : vector<24x57xf32>
    %74 = tpu.matmul %72, %73, %cst_56 {dimension_numbers = #tpu.dot_dimension_numbers<[1], [0], [0], [1], [0, 0, 1, 1], [], []>} : vector<24x24xf32>, vector<24x57xf32>, vector<24x57xf32> -> vector<24x57xf32>
    %c1_57 = arith.constant 1 : index
    %c0_58 = arith.constant 0 : index
    %c0_59 = arith.constant 0 : index
    %75 = vector.load %arg8[%c1_57, %c0_58, %c0_59] : memref<3x24x24xf32, #tpu.memory_space<vmem>>, vector<1x24x24xf32>
    %76 = vector.shape_cast %75 : vector<1x24x24xf32> to vector<24x24xf32>
    %77 = vector.extract_strided_slice %70 {offsets = [0, 1], sizes = [24, 57], strides = [1, 1]} : vector<24x59xf32> to vector<24x57xf32>
    %cst_60 = arith.constant dense<0.000000e+00> : vector<24x57xf32>
    %78 = tpu.matmul %76, %77, %cst_60 {dimension_numbers = #tpu.dot_dimension_numbers<[1], [0], [0], [1], [0, 0, 1, 1], [], []>} : vector<24x24xf32>, vector<24x57xf32>, vector<24x57xf32> -> vector<24x57xf32>
    %79 = arith.addf %74, %78 : vector<24x57xf32>
    %c2_61 = arith.constant 2 : index
    %c0_62 = arith.constant 0 : index
    %c0_63 = arith.constant 0 : index
    %80 = vector.load %arg8[%c2_61, %c0_62, %c0_63] : memref<3x24x24xf32, #tpu.memory_space<vmem>>, vector<1x24x24xf32>
    %81 = vector.shape_cast %80 : vector<1x24x24xf32> to vector<24x24xf32>
    %82 = vector.extract_strided_slice %70 {offsets = [0, 2], sizes = [24, 57], strides = [1, 1]} : vector<24x59xf32> to vector<24x57xf32>
    %cst_64 = arith.constant dense<0.000000e+00> : vector<24x57xf32>
    %83 = tpu.matmul %81, %82, %cst_64 {dimension_numbers = #tpu.dot_dimension_numbers<[1], [0], [0], [1], [0, 0, 1, 1], [], []>} : vector<24x24xf32>, vector<24x57xf32>, vector<24x57xf32> -> vector<24x57xf32>
    %84 = arith.addf %79, %83 : vector<24x57xf32>
    %c0_65 = arith.constant 0 : index
    %c0_66 = arith.constant 0 : index
    %85 = vector.load %arg9[%c0_65, %c0_66] : memref<24x1xf32, #tpu.memory_space<vmem>>, vector<24x1xf32>
    %86 = vector.broadcast %85 : vector<24x1xf32> to vector<24x57xf32>
    %87 = arith.addf %84, %86 : vector<24x57xf32>
    %cst_67 = arith.constant 0.000000e+00 : f32
    %88 = vector.broadcast %cst_67 : f32 to vector<24x57xf32>
    %89 = arith.maximumf %87, %88 : vector<24x57xf32>
    %90 = vector.extract_strided_slice %89 {offsets = [0, 0], sizes = [24, 54], strides = [1, 1]} : vector<24x57xf32> to vector<24x54xf32>
    %91 = vector.extract_strided_slice %89 {offsets = [0, 1], sizes = [24, 54], strides = [1, 1]} : vector<24x57xf32> to vector<24x54xf32>
    %92 = arith.maximumf %90, %91 : vector<24x54xf32>
    %93 = vector.extract_strided_slice %89 {offsets = [0, 2], sizes = [24, 54], strides = [1, 1]} : vector<24x57xf32> to vector<24x54xf32>
    %94 = arith.maximumf %92, %93 : vector<24x54xf32>
    %95 = vector.extract_strided_slice %89 {offsets = [0, 3], sizes = [24, 54], strides = [1, 1]} : vector<24x57xf32> to vector<24x54xf32>
    %96 = arith.maximumf %94, %95 : vector<24x54xf32>
    %c0_68 = arith.constant 0 : index
    %c0_69 = arith.constant 0 : index
    %97 = vector.load %arg10[%c0_68, %c0_69] : memref<54x27xf32, #tpu.memory_space<vmem>>, vector<54x27xf32>
    %cst_70 = arith.constant dense<0.000000e+00> : vector<24x27xf32>
    %98 = tpu.matmul %96, %97, %cst_70 {dimension_numbers = #tpu.dot_dimension_numbers<[1], [0], [0], [1], [0, 0, 1, 1], [], []>} : vector<24x54xf32>, vector<54x27xf32>, vector<24x27xf32> -> vector<24x27xf32>
    %c0_71 = arith.constant 0 : index
    %c0_72 = arith.constant 0 : index
    %c0_73 = arith.constant 0 : index
    %99 = vector.load %arg11[%c0_71, %c0_72, %c0_73] : memref<3x36x24xf32, #tpu.memory_space<vmem>>, vector<1x36x24xf32>
    %100 = vector.shape_cast %99 : vector<1x36x24xf32> to vector<36x24xf32>
    %101 = vector.extract_strided_slice %98 {offsets = [0, 0], sizes = [24, 25], strides = [1, 1]} : vector<24x27xf32> to vector<24x25xf32>
    %cst_74 = arith.constant dense<0.000000e+00> : vector<36x25xf32>
    %102 = tpu.matmul %100, %101, %cst_74 {dimension_numbers = #tpu.dot_dimension_numbers<[1], [0], [0], [1], [0, 0, 1, 1], [], []>} : vector<36x24xf32>, vector<24x25xf32>, vector<36x25xf32> -> vector<36x25xf32>
    %c1_75 = arith.constant 1 : index
    %c0_76 = arith.constant 0 : index
    %c0_77 = arith.constant 0 : index
    %103 = vector.load %arg11[%c1_75, %c0_76, %c0_77] : memref<3x36x24xf32, #tpu.memory_space<vmem>>, vector<1x36x24xf32>
    %104 = vector.shape_cast %103 : vector<1x36x24xf32> to vector<36x24xf32>
    %105 = vector.extract_strided_slice %98 {offsets = [0, 1], sizes = [24, 25], strides = [1, 1]} : vector<24x27xf32> to vector<24x25xf32>
    %cst_78 = arith.constant dense<0.000000e+00> : vector<36x25xf32>
    %106 = tpu.matmul %104, %105, %cst_78 {dimension_numbers = #tpu.dot_dimension_numbers<[1], [0], [0], [1], [0, 0, 1, 1], [], []>} : vector<36x24xf32>, vector<24x25xf32>, vector<36x25xf32> -> vector<36x25xf32>
    %107 = arith.addf %102, %106 : vector<36x25xf32>
    %c2_79 = arith.constant 2 : index
    %c0_80 = arith.constant 0 : index
    %c0_81 = arith.constant 0 : index
    %108 = vector.load %arg11[%c2_79, %c0_80, %c0_81] : memref<3x36x24xf32, #tpu.memory_space<vmem>>, vector<1x36x24xf32>
    %109 = vector.shape_cast %108 : vector<1x36x24xf32> to vector<36x24xf32>
    %110 = vector.extract_strided_slice %98 {offsets = [0, 2], sizes = [24, 25], strides = [1, 1]} : vector<24x27xf32> to vector<24x25xf32>
    %cst_82 = arith.constant dense<0.000000e+00> : vector<36x25xf32>
    %111 = tpu.matmul %109, %110, %cst_82 {dimension_numbers = #tpu.dot_dimension_numbers<[1], [0], [0], [1], [0, 0, 1, 1], [], []>} : vector<36x24xf32>, vector<24x25xf32>, vector<36x25xf32> -> vector<36x25xf32>
    %112 = arith.addf %107, %111 : vector<36x25xf32>
    %c0_83 = arith.constant 0 : index
    %c0_84 = arith.constant 0 : index
    %113 = vector.load %arg12[%c0_83, %c0_84] : memref<36x1xf32, #tpu.memory_space<vmem>>, vector<36x1xf32>
    %114 = vector.broadcast %113 : vector<36x1xf32> to vector<36x25xf32>
    %115 = arith.addf %112, %114 : vector<36x25xf32>
    %cst_85 = arith.constant 0.000000e+00 : f32
    %116 = vector.broadcast %cst_85 : f32 to vector<36x25xf32>
    %117 = arith.maximumf %115, %116 : vector<36x25xf32>
    %c0_86 = arith.constant 0 : index
    %c0_87 = arith.constant 0 : index
    %c0_88 = arith.constant 0 : index
    %118 = vector.load %arg13[%c0_86, %c0_87, %c0_88] : memref<3x36x36xf32, #tpu.memory_space<vmem>>, vector<1x36x36xf32>
    %119 = vector.shape_cast %118 : vector<1x36x36xf32> to vector<36x36xf32>
    %120 = vector.extract_strided_slice %117 {offsets = [0, 0], sizes = [36, 23], strides = [1, 1]} : vector<36x25xf32> to vector<36x23xf32>
    %cst_89 = arith.constant dense<0.000000e+00> : vector<36x23xf32>
    %121 = tpu.matmul %119, %120, %cst_89 {dimension_numbers = #tpu.dot_dimension_numbers<[1], [0], [0], [1], [0, 0, 1, 1], [], []>} : vector<36x36xf32>, vector<36x23xf32>, vector<36x23xf32> -> vector<36x23xf32>
    %c1_90 = arith.constant 1 : index
    %c0_91 = arith.constant 0 : index
    %c0_92 = arith.constant 0 : index
    %122 = vector.load %arg13[%c1_90, %c0_91, %c0_92] : memref<3x36x36xf32, #tpu.memory_space<vmem>>, vector<1x36x36xf32>
    %123 = vector.shape_cast %122 : vector<1x36x36xf32> to vector<36x36xf32>
    %124 = vector.extract_strided_slice %117 {offsets = [0, 1], sizes = [36, 23], strides = [1, 1]} : vector<36x25xf32> to vector<36x23xf32>
    %cst_93 = arith.constant dense<0.000000e+00> : vector<36x23xf32>
    %125 = tpu.matmul %123, %124, %cst_93 {dimension_numbers = #tpu.dot_dimension_numbers<[1], [0], [0], [1], [0, 0, 1, 1], [], []>} : vector<36x36xf32>, vector<36x23xf32>, vector<36x23xf32> -> vector<36x23xf32>
    %126 = arith.addf %121, %125 : vector<36x23xf32>
    %c2_94 = arith.constant 2 : index
    %c0_95 = arith.constant 0 : index
    %c0_96 = arith.constant 0 : index
    %127 = vector.load %arg13[%c2_94, %c0_95, %c0_96] : memref<3x36x36xf32, #tpu.memory_space<vmem>>, vector<1x36x36xf32>
    %128 = vector.shape_cast %127 : vector<1x36x36xf32> to vector<36x36xf32>
    %129 = vector.extract_strided_slice %117 {offsets = [0, 2], sizes = [36, 23], strides = [1, 1]} : vector<36x25xf32> to vector<36x23xf32>
    %cst_97 = arith.constant dense<0.000000e+00> : vector<36x23xf32>
    %130 = tpu.matmul %128, %129, %cst_97 {dimension_numbers = #tpu.dot_dimension_numbers<[1], [0], [0], [1], [0, 0, 1, 1], [], []>} : vector<36x36xf32>, vector<36x23xf32>, vector<36x23xf32> -> vector<36x23xf32>
    %131 = arith.addf %126, %130 : vector<36x23xf32>
    %c0_98 = arith.constant 0 : index
    %c0_99 = arith.constant 0 : index
    %132 = vector.load %arg14[%c0_98, %c0_99] : memref<36x1xf32, #tpu.memory_space<vmem>>, vector<36x1xf32>
    %133 = vector.broadcast %132 : vector<36x1xf32> to vector<36x23xf32>
    %134 = arith.addf %131, %133 : vector<36x23xf32>
    %cst_100 = arith.constant 0.000000e+00 : f32
    %135 = vector.broadcast %cst_100 : f32 to vector<36x23xf32>
    %136 = arith.maximumf %134, %135 : vector<36x23xf32>
    %137 = vector.extract_strided_slice %136 {offsets = [0, 0], sizes = [36, 20], strides = [1, 1]} : vector<36x23xf32> to vector<36x20xf32>
    %138 = vector.extract_strided_slice %136 {offsets = [0, 1], sizes = [36, 20], strides = [1, 1]} : vector<36x23xf32> to vector<36x20xf32>
    %139 = arith.maximumf %137, %138 : vector<36x20xf32>
    %140 = vector.extract_strided_slice %136 {offsets = [0, 2], sizes = [36, 20], strides = [1, 1]} : vector<36x23xf32> to vector<36x20xf32>
    %141 = arith.maximumf %139, %140 : vector<36x20xf32>
    %142 = vector.extract_strided_slice %136 {offsets = [0, 3], sizes = [36, 20], strides = [1, 1]} : vector<36x23xf32> to vector<36x20xf32>
    %143 = arith.maximumf %141, %142 : vector<36x20xf32>
    %c0_101 = arith.constant 0 : index
    %c0_102 = arith.constant 0 : index
    %144 = vector.load %arg15[%c0_101, %c0_102] : memref<10x20xf32, #tpu.memory_space<vmem>>, vector<10x20xf32>
    %cst_103 = arith.constant dense<0.000000e+00> : vector<10x36xf32>
    %145 = tpu.matmul %144, %143, %cst_103 {dimension_numbers = #tpu.dot_dimension_numbers<[1], [1], [0], [0], [0, 0, 1, 0], [], []>} : vector<10x20xf32>, vector<36x20xf32>, vector<10x36xf32> -> vector<10x36xf32>
    %cst_104 = arith.constant dense<0.000000e+00> : vector<10x256xf32>
    %146 = tpu.matmul %145, %0, %cst_104 {dimension_numbers = #tpu.dot_dimension_numbers<[1], [0], [0], [1], [0, 0, 1, 1], [], []>} : vector<10x36xf32>, vector<36x256xf32>, vector<10x256xf32> -> vector<10x256xf32>
    %147 = vector.broadcast %2 : vector<1x256xf32> to vector<10x256xf32>
    %148 = arith.addf %146, %147 : vector<10x256xf32>
    %c1_105 = arith.constant 1 : index
    %c0_106 = arith.constant 0 : index
    %c0_107 = arith.constant 0 : index
    %149 = vector.load %arg0[%c1_105, %c0_106, %c0_107] : memref<2x1x128xf32, #tpu.memory_space<vmem>>, vector<1x1x128xf32>
    %150 = vector.shape_cast %149 : vector<1x1x128xf32> to vector<1x128xf32>
    %c0_108 = arith.constant 0 : index
    %c0_109 = arith.constant 0 : index
    %c0_110 = arith.constant 0 : index
    %151 = vector.load %arg1[%c0_108, %c0_109, %c0_110] : memref<3x12x1xf32, #tpu.memory_space<vmem>>, vector<1x12x1xf32>
    %152 = vector.shape_cast %151 : vector<1x12x1xf32> to vector<12x1xf32>
    %153 = vector.extract_strided_slice %150 {offsets = [0, 0], sizes = [1, 126], strides = [1, 1]} : vector<1x128xf32> to vector<1x126xf32>
    %cst_111 = arith.constant dense<0.000000e+00> : vector<12x126xf32>
    %154 = tpu.matmul %152, %153, %cst_111 {dimension_numbers = #tpu.dot_dimension_numbers<[1], [0], [0], [1], [0, 0, 1, 1], [], []>} : vector<12x1xf32>, vector<1x126xf32>, vector<12x126xf32> -> vector<12x126xf32>
    %c1_112 = arith.constant 1 : index
    %c0_113 = arith.constant 0 : index
    %c0_114 = arith.constant 0 : index
    %155 = vector.load %arg1[%c1_112, %c0_113, %c0_114] : memref<3x12x1xf32, #tpu.memory_space<vmem>>, vector<1x12x1xf32>
    %156 = vector.shape_cast %155 : vector<1x12x1xf32> to vector<12x1xf32>
    %157 = vector.extract_strided_slice %150 {offsets = [0, 1], sizes = [1, 126], strides = [1, 1]} : vector<1x128xf32> to vector<1x126xf32>
    %cst_115 = arith.constant dense<0.000000e+00> : vector<12x126xf32>
    %158 = tpu.matmul %156, %157, %cst_115 {dimension_numbers = #tpu.dot_dimension_numbers<[1], [0], [0], [1], [0, 0, 1, 1], [], []>} : vector<12x1xf32>, vector<1x126xf32>, vector<12x126xf32> -> vector<12x126xf32>
    %159 = arith.addf %154, %158 : vector<12x126xf32>
    %c2_116 = arith.constant 2 : index
    %c0_117 = arith.constant 0 : index
    %c0_118 = arith.constant 0 : index
    %160 = vector.load %arg1[%c2_116, %c0_117, %c0_118] : memref<3x12x1xf32, #tpu.memory_space<vmem>>, vector<1x12x1xf32>
    %161 = vector.shape_cast %160 : vector<1x12x1xf32> to vector<12x1xf32>
    %162 = vector.extract_strided_slice %150 {offsets = [0, 2], sizes = [1, 126], strides = [1, 1]} : vector<1x128xf32> to vector<1x126xf32>
    %cst_119 = arith.constant dense<0.000000e+00> : vector<12x126xf32>
    %163 = tpu.matmul %161, %162, %cst_119 {dimension_numbers = #tpu.dot_dimension_numbers<[1], [0], [0], [1], [0, 0, 1, 1], [], []>} : vector<12x1xf32>, vector<1x126xf32>, vector<12x126xf32> -> vector<12x126xf32>
    %164 = arith.addf %159, %163 : vector<12x126xf32>
    %c0_120 = arith.constant 0 : index
    %c0_121 = arith.constant 0 : index
    %165 = vector.load %arg2[%c0_120, %c0_121] : memref<12x1xf32, #tpu.memory_space<vmem>>, vector<12x1xf32>
    %166 = vector.broadcast %165 : vector<12x1xf32> to vector<12x126xf32>
    %167 = arith.addf %164, %166 : vector<12x126xf32>
    %cst_122 = arith.constant 0.000000e+00 : f32
    %168 = vector.broadcast %cst_122 : f32 to vector<12x126xf32>
    %169 = arith.maximumf %167, %168 : vector<12x126xf32>
    %c0_123 = arith.constant 0 : index
    %c0_124 = arith.constant 0 : index
    %c0_125 = arith.constant 0 : index
    %170 = vector.load %arg3[%c0_123, %c0_124, %c0_125] : memref<3x12x12xf32, #tpu.memory_space<vmem>>, vector<1x12x12xf32>
    %171 = vector.shape_cast %170 : vector<1x12x12xf32> to vector<12x12xf32>
    %172 = vector.extract_strided_slice %169 {offsets = [0, 0], sizes = [12, 124], strides = [1, 1]} : vector<12x126xf32> to vector<12x124xf32>
    %cst_126 = arith.constant dense<0.000000e+00> : vector<12x124xf32>
    %173 = tpu.matmul %171, %172, %cst_126 {dimension_numbers = #tpu.dot_dimension_numbers<[1], [0], [0], [1], [0, 0, 1, 1], [], []>} : vector<12x12xf32>, vector<12x124xf32>, vector<12x124xf32> -> vector<12x124xf32>
    %c1_127 = arith.constant 1 : index
    %c0_128 = arith.constant 0 : index
    %c0_129 = arith.constant 0 : index
    %174 = vector.load %arg3[%c1_127, %c0_128, %c0_129] : memref<3x12x12xf32, #tpu.memory_space<vmem>>, vector<1x12x12xf32>
    %175 = vector.shape_cast %174 : vector<1x12x12xf32> to vector<12x12xf32>
    %176 = vector.extract_strided_slice %169 {offsets = [0, 1], sizes = [12, 124], strides = [1, 1]} : vector<12x126xf32> to vector<12x124xf32>
    %cst_130 = arith.constant dense<0.000000e+00> : vector<12x124xf32>
    %177 = tpu.matmul %175, %176, %cst_130 {dimension_numbers = #tpu.dot_dimension_numbers<[1], [0], [0], [1], [0, 0, 1, 1], [], []>} : vector<12x12xf32>, vector<12x124xf32>, vector<12x124xf32> -> vector<12x124xf32>
    %178 = arith.addf %173, %177 : vector<12x124xf32>
    %c2_131 = arith.constant 2 : index
    %c0_132 = arith.constant 0 : index
    %c0_133 = arith.constant 0 : index
    %179 = vector.load %arg3[%c2_131, %c0_132, %c0_133] : memref<3x12x12xf32, #tpu.memory_space<vmem>>, vector<1x12x12xf32>
    %180 = vector.shape_cast %179 : vector<1x12x12xf32> to vector<12x12xf32>
    %181 = vector.extract_strided_slice %169 {offsets = [0, 2], sizes = [12, 124], strides = [1, 1]} : vector<12x126xf32> to vector<12x124xf32>
    %cst_134 = arith.constant dense<0.000000e+00> : vector<12x124xf32>
    %182 = tpu.matmul %180, %181, %cst_134 {dimension_numbers = #tpu.dot_dimension_numbers<[1], [0], [0], [1], [0, 0, 1, 1], [], []>} : vector<12x12xf32>, vector<12x124xf32>, vector<12x124xf32> -> vector<12x124xf32>
    %183 = arith.addf %178, %182 : vector<12x124xf32>
    %c0_135 = arith.constant 0 : index
    %c0_136 = arith.constant 0 : index
    %184 = vector.load %arg4[%c0_135, %c0_136] : memref<12x1xf32, #tpu.memory_space<vmem>>, vector<12x1xf32>
    %185 = vector.broadcast %184 : vector<12x1xf32> to vector<12x124xf32>
    %186 = arith.addf %183, %185 : vector<12x124xf32>
    %cst_137 = arith.constant 0.000000e+00 : f32
    %187 = vector.broadcast %cst_137 : f32 to vector<12x124xf32>
    %188 = arith.maximumf %186, %187 : vector<12x124xf32>
    %189 = vector.extract_strided_slice %188 {offsets = [0, 0], sizes = [12, 121], strides = [1, 1]} : vector<12x124xf32> to vector<12x121xf32>
    %190 = vector.extract_strided_slice %188 {offsets = [0, 1], sizes = [12, 121], strides = [1, 1]} : vector<12x124xf32> to vector<12x121xf32>
    %191 = arith.maximumf %189, %190 : vector<12x121xf32>
    %192 = vector.extract_strided_slice %188 {offsets = [0, 2], sizes = [12, 121], strides = [1, 1]} : vector<12x124xf32> to vector<12x121xf32>
    %193 = arith.maximumf %191, %192 : vector<12x121xf32>
    %194 = vector.extract_strided_slice %188 {offsets = [0, 3], sizes = [12, 121], strides = [1, 1]} : vector<12x124xf32> to vector<12x121xf32>
    %195 = arith.maximumf %193, %194 : vector<12x121xf32>
    %c0_138 = arith.constant 0 : index
    %c0_139 = arith.constant 0 : index
    %196 = vector.load %arg5[%c0_138, %c0_139] : memref<121x61xf32, #tpu.memory_space<vmem>>, vector<121x61xf32>
    %cst_140 = arith.constant dense<0.000000e+00> : vector<12x61xf32>
    %197 = tpu.matmul %195, %196, %cst_140 {dimension_numbers = #tpu.dot_dimension_numbers<[1], [0], [0], [1], [0, 0, 1, 1], [], []>} : vector<12x121xf32>, vector<121x61xf32>, vector<12x61xf32> -> vector<12x61xf32>
    %c0_141 = arith.constant 0 : index
    %c0_142 = arith.constant 0 : index
    %c0_143 = arith.constant 0 : index
    %198 = vector.load %arg6[%c0_141, %c0_142, %c0_143] : memref<3x24x12xf32, #tpu.memory_space<vmem>>, vector<1x24x12xf32>
    %199 = vector.shape_cast %198 : vector<1x24x12xf32> to vector<24x12xf32>
    %200 = vector.extract_strided_slice %197 {offsets = [0, 0], sizes = [12, 59], strides = [1, 1]} : vector<12x61xf32> to vector<12x59xf32>
    %cst_144 = arith.constant dense<0.000000e+00> : vector<24x59xf32>
    %201 = tpu.matmul %199, %200, %cst_144 {dimension_numbers = #tpu.dot_dimension_numbers<[1], [0], [0], [1], [0, 0, 1, 1], [], []>} : vector<24x12xf32>, vector<12x59xf32>, vector<24x59xf32> -> vector<24x59xf32>
    %c1_145 = arith.constant 1 : index
    %c0_146 = arith.constant 0 : index
    %c0_147 = arith.constant 0 : index
    %202 = vector.load %arg6[%c1_145, %c0_146, %c0_147] : memref<3x24x12xf32, #tpu.memory_space<vmem>>, vector<1x24x12xf32>
    %203 = vector.shape_cast %202 : vector<1x24x12xf32> to vector<24x12xf32>
    %204 = vector.extract_strided_slice %197 {offsets = [0, 1], sizes = [12, 59], strides = [1, 1]} : vector<12x61xf32> to vector<12x59xf32>
    %cst_148 = arith.constant dense<0.000000e+00> : vector<24x59xf32>
    %205 = tpu.matmul %203, %204, %cst_148 {dimension_numbers = #tpu.dot_dimension_numbers<[1], [0], [0], [1], [0, 0, 1, 1], [], []>} : vector<24x12xf32>, vector<12x59xf32>, vector<24x59xf32> -> vector<24x59xf32>
    %206 = arith.addf %201, %205 : vector<24x59xf32>
    %c2_149 = arith.constant 2 : index
    %c0_150 = arith.constant 0 : index
    %c0_151 = arith.constant 0 : index
    %207 = vector.load %arg6[%c2_149, %c0_150, %c0_151] : memref<3x24x12xf32, #tpu.memory_space<vmem>>, vector<1x24x12xf32>
    %208 = vector.shape_cast %207 : vector<1x24x12xf32> to vector<24x12xf32>
    %209 = vector.extract_strided_slice %197 {offsets = [0, 2], sizes = [12, 59], strides = [1, 1]} : vector<12x61xf32> to vector<12x59xf32>
    %cst_152 = arith.constant dense<0.000000e+00> : vector<24x59xf32>
    %210 = tpu.matmul %208, %209, %cst_152 {dimension_numbers = #tpu.dot_dimension_numbers<[1], [0], [0], [1], [0, 0, 1, 1], [], []>} : vector<24x12xf32>, vector<12x59xf32>, vector<24x59xf32> -> vector<24x59xf32>
    %211 = arith.addf %206, %210 : vector<24x59xf32>
    %c0_153 = arith.constant 0 : index
    %c0_154 = arith.constant 0 : index
    %212 = vector.load %arg7[%c0_153, %c0_154] : memref<24x1xf32, #tpu.memory_space<vmem>>, vector<24x1xf32>
    %213 = vector.broadcast %212 : vector<24x1xf32> to vector<24x59xf32>
    %214 = arith.addf %211, %213 : vector<24x59xf32>
    %cst_155 = arith.constant 0.000000e+00 : f32
    %215 = vector.broadcast %cst_155 : f32 to vector<24x59xf32>
    %216 = arith.maximumf %214, %215 : vector<24x59xf32>
    %c0_156 = arith.constant 0 : index
    %c0_157 = arith.constant 0 : index
    %c0_158 = arith.constant 0 : index
    %217 = vector.load %arg8[%c0_156, %c0_157, %c0_158] : memref<3x24x24xf32, #tpu.memory_space<vmem>>, vector<1x24x24xf32>
    %218 = vector.shape_cast %217 : vector<1x24x24xf32> to vector<24x24xf32>
    %219 = vector.extract_strided_slice %216 {offsets = [0, 0], sizes = [24, 57], strides = [1, 1]} : vector<24x59xf32> to vector<24x57xf32>
    %cst_159 = arith.constant dense<0.000000e+00> : vector<24x57xf32>
    %220 = tpu.matmul %218, %219, %cst_159 {dimension_numbers = #tpu.dot_dimension_numbers<[1], [0], [0], [1], [0, 0, 1, 1], [], []>} : vector<24x24xf32>, vector<24x57xf32>, vector<24x57xf32> -> vector<24x57xf32>
    %c1_160 = arith.constant 1 : index
    %c0_161 = arith.constant 0 : index
    %c0_162 = arith.constant 0 : index
    %221 = vector.load %arg8[%c1_160, %c0_161, %c0_162] : memref<3x24x24xf32, #tpu.memory_space<vmem>>, vector<1x24x24xf32>
    %222 = vector.shape_cast %221 : vector<1x24x24xf32> to vector<24x24xf32>
    %223 = vector.extract_strided_slice %216 {offsets = [0, 1], sizes = [24, 57], strides = [1, 1]} : vector<24x59xf32> to vector<24x57xf32>
    %cst_163 = arith.constant dense<0.000000e+00> : vector<24x57xf32>
    %224 = tpu.matmul %222, %223, %cst_163 {dimension_numbers = #tpu.dot_dimension_numbers<[1], [0], [0], [1], [0, 0, 1, 1], [], []>} : vector<24x24xf32>, vector<24x57xf32>, vector<24x57xf32> -> vector<24x57xf32>
    %225 = arith.addf %220, %224 : vector<24x57xf32>
    %c2_164 = arith.constant 2 : index
    %c0_165 = arith.constant 0 : index
    %c0_166 = arith.constant 0 : index
    %226 = vector.load %arg8[%c2_164, %c0_165, %c0_166] : memref<3x24x24xf32, #tpu.memory_space<vmem>>, vector<1x24x24xf32>
    %227 = vector.shape_cast %226 : vector<1x24x24xf32> to vector<24x24xf32>
    %228 = vector.extract_strided_slice %216 {offsets = [0, 2], sizes = [24, 57], strides = [1, 1]} : vector<24x59xf32> to vector<24x57xf32>
    %cst_167 = arith.constant dense<0.000000e+00> : vector<24x57xf32>
    %229 = tpu.matmul %227, %228, %cst_167 {dimension_numbers = #tpu.dot_dimension_numbers<[1], [0], [0], [1], [0, 0, 1, 1], [], []>} : vector<24x24xf32>, vector<24x57xf32>, vector<24x57xf32> -> vector<24x57xf32>
    %230 = arith.addf %225, %229 : vector<24x57xf32>
    %c0_168 = arith.constant 0 : index
    %c0_169 = arith.constant 0 : index
    %231 = vector.load %arg9[%c0_168, %c0_169] : memref<24x1xf32, #tpu.memory_space<vmem>>, vector<24x1xf32>
    %232 = vector.broadcast %231 : vector<24x1xf32> to vector<24x57xf32>
    %233 = arith.addf %230, %232 : vector<24x57xf32>
    %cst_170 = arith.constant 0.000000e+00 : f32
    %234 = vector.broadcast %cst_170 : f32 to vector<24x57xf32>
    %235 = arith.maximumf %233, %234 : vector<24x57xf32>
    %236 = vector.extract_strided_slice %235 {offsets = [0, 0], sizes = [24, 54], strides = [1, 1]} : vector<24x57xf32> to vector<24x54xf32>
    %237 = vector.extract_strided_slice %235 {offsets = [0, 1], sizes = [24, 54], strides = [1, 1]} : vector<24x57xf32> to vector<24x54xf32>
    %238 = arith.maximumf %236, %237 : vector<24x54xf32>
    %239 = vector.extract_strided_slice %235 {offsets = [0, 2], sizes = [24, 54], strides = [1, 1]} : vector<24x57xf32> to vector<24x54xf32>
    %240 = arith.maximumf %238, %239 : vector<24x54xf32>
    %241 = vector.extract_strided_slice %235 {offsets = [0, 3], sizes = [24, 54], strides = [1, 1]} : vector<24x57xf32> to vector<24x54xf32>
    %242 = arith.maximumf %240, %241 : vector<24x54xf32>
    %c0_171 = arith.constant 0 : index
    %c0_172 = arith.constant 0 : index
    %243 = vector.load %arg10[%c0_171, %c0_172] : memref<54x27xf32, #tpu.memory_space<vmem>>, vector<54x27xf32>
    %cst_173 = arith.constant dense<0.000000e+00> : vector<24x27xf32>
    %244 = tpu.matmul %242, %243, %cst_173 {dimension_numbers = #tpu.dot_dimension_numbers<[1], [0], [0], [1], [0, 0, 1, 1], [], []>} : vector<24x54xf32>, vector<54x27xf32>, vector<24x27xf32> -> vector<24x27xf32>
    %c0_174 = arith.constant 0 : index
    %c0_175 = arith.constant 0 : index
    %c0_176 = arith.constant 0 : index
    %245 = vector.load %arg11[%c0_174, %c0_175, %c0_176] : memref<3x36x24xf32, #tpu.memory_space<vmem>>, vector<1x36x24xf32>
    %246 = vector.shape_cast %245 : vector<1x36x24xf32> to vector<36x24xf32>
    %247 = vector.extract_strided_slice %244 {offsets = [0, 0], sizes = [24, 25], strides = [1, 1]} : vector<24x27xf32> to vector<24x25xf32>
    %cst_177 = arith.constant dense<0.000000e+00> : vector<36x25xf32>
    %248 = tpu.matmul %246, %247, %cst_177 {dimension_numbers = #tpu.dot_dimension_numbers<[1], [0], [0], [1], [0, 0, 1, 1], [], []>} : vector<36x24xf32>, vector<24x25xf32>, vector<36x25xf32> -> vector<36x25xf32>
    %c1_178 = arith.constant 1 : index
    %c0_179 = arith.constant 0 : index
    %c0_180 = arith.constant 0 : index
    %249 = vector.load %arg11[%c1_178, %c0_179, %c0_180] : memref<3x36x24xf32, #tpu.memory_space<vmem>>, vector<1x36x24xf32>
    %250 = vector.shape_cast %249 : vector<1x36x24xf32> to vector<36x24xf32>
    %251 = vector.extract_strided_slice %244 {offsets = [0, 1], sizes = [24, 25], strides = [1, 1]} : vector<24x27xf32> to vector<24x25xf32>
    %cst_181 = arith.constant dense<0.000000e+00> : vector<36x25xf32>
    %252 = tpu.matmul %250, %251, %cst_181 {dimension_numbers = #tpu.dot_dimension_numbers<[1], [0], [0], [1], [0, 0, 1, 1], [], []>} : vector<36x24xf32>, vector<24x25xf32>, vector<36x25xf32> -> vector<36x25xf32>
    %253 = arith.addf %248, %252 : vector<36x25xf32>
    %c2_182 = arith.constant 2 : index
    %c0_183 = arith.constant 0 : index
    %c0_184 = arith.constant 0 : index
    %254 = vector.load %arg11[%c2_182, %c0_183, %c0_184] : memref<3x36x24xf32, #tpu.memory_space<vmem>>, vector<1x36x24xf32>
    %255 = vector.shape_cast %254 : vector<1x36x24xf32> to vector<36x24xf32>
    %256 = vector.extract_strided_slice %244 {offsets = [0, 2], sizes = [24, 25], strides = [1, 1]} : vector<24x27xf32> to vector<24x25xf32>
    %cst_185 = arith.constant dense<0.000000e+00> : vector<36x25xf32>
    %257 = tpu.matmul %255, %256, %cst_185 {dimension_numbers = #tpu.dot_dimension_numbers<[1], [0], [0], [1], [0, 0, 1, 1], [], []>} : vector<36x24xf32>, vector<24x25xf32>, vector<36x25xf32> -> vector<36x25xf32>
    %258 = arith.addf %253, %257 : vector<36x25xf32>
    %c0_186 = arith.constant 0 : index
    %c0_187 = arith.constant 0 : index
    %259 = vector.load %arg12[%c0_186, %c0_187] : memref<36x1xf32, #tpu.memory_space<vmem>>, vector<36x1xf32>
    %260 = vector.broadcast %259 : vector<36x1xf32> to vector<36x25xf32>
    %261 = arith.addf %258, %260 : vector<36x25xf32>
    %cst_188 = arith.constant 0.000000e+00 : f32
    %262 = vector.broadcast %cst_188 : f32 to vector<36x25xf32>
    %263 = arith.maximumf %261, %262 : vector<36x25xf32>
    %c0_189 = arith.constant 0 : index
    %c0_190 = arith.constant 0 : index
    %c0_191 = arith.constant 0 : index
    %264 = vector.load %arg13[%c0_189, %c0_190, %c0_191] : memref<3x36x36xf32, #tpu.memory_space<vmem>>, vector<1x36x36xf32>
    %265 = vector.shape_cast %264 : vector<1x36x36xf32> to vector<36x36xf32>
    %266 = vector.extract_strided_slice %263 {offsets = [0, 0], sizes = [36, 23], strides = [1, 1]} : vector<36x25xf32> to vector<36x23xf32>
    %cst_192 = arith.constant dense<0.000000e+00> : vector<36x23xf32>
    %267 = tpu.matmul %265, %266, %cst_192 {dimension_numbers = #tpu.dot_dimension_numbers<[1], [0], [0], [1], [0, 0, 1, 1], [], []>} : vector<36x36xf32>, vector<36x23xf32>, vector<36x23xf32> -> vector<36x23xf32>
    %c1_193 = arith.constant 1 : index
    %c0_194 = arith.constant 0 : index
    %c0_195 = arith.constant 0 : index
    %268 = vector.load %arg13[%c1_193, %c0_194, %c0_195] : memref<3x36x36xf32, #tpu.memory_space<vmem>>, vector<1x36x36xf32>
    %269 = vector.shape_cast %268 : vector<1x36x36xf32> to vector<36x36xf32>
    %270 = vector.extract_strided_slice %263 {offsets = [0, 1], sizes = [36, 23], strides = [1, 1]} : vector<36x25xf32> to vector<36x23xf32>
    %cst_196 = arith.constant dense<0.000000e+00> : vector<36x23xf32>
    %271 = tpu.matmul %269, %270, %cst_196 {dimension_numbers = #tpu.dot_dimension_numbers<[1], [0], [0], [1], [0, 0, 1, 1], [], []>} : vector<36x36xf32>, vector<36x23xf32>, vector<36x23xf32> -> vector<36x23xf32>
    %272 = arith.addf %267, %271 : vector<36x23xf32>
    %c2_197 = arith.constant 2 : index
    %c0_198 = arith.constant 0 : index
    %c0_199 = arith.constant 0 : index
    %273 = vector.load %arg13[%c2_197, %c0_198, %c0_199] : memref<3x36x36xf32, #tpu.memory_space<vmem>>, vector<1x36x36xf32>
    %274 = vector.shape_cast %273 : vector<1x36x36xf32> to vector<36x36xf32>
    %275 = vector.extract_strided_slice %263 {offsets = [0, 2], sizes = [36, 23], strides = [1, 1]} : vector<36x25xf32> to vector<36x23xf32>
    %cst_200 = arith.constant dense<0.000000e+00> : vector<36x23xf32>
    %276 = tpu.matmul %274, %275, %cst_200 {dimension_numbers = #tpu.dot_dimension_numbers<[1], [0], [0], [1], [0, 0, 1, 1], [], []>} : vector<36x36xf32>, vector<36x23xf32>, vector<36x23xf32> -> vector<36x23xf32>
    %277 = arith.addf %272, %276 : vector<36x23xf32>
    %c0_201 = arith.constant 0 : index
    %c0_202 = arith.constant 0 : index
    %278 = vector.load %arg14[%c0_201, %c0_202] : memref<36x1xf32, #tpu.memory_space<vmem>>, vector<36x1xf32>
    %279 = vector.broadcast %278 : vector<36x1xf32> to vector<36x23xf32>
    %280 = arith.addf %277, %279 : vector<36x23xf32>
    %cst_203 = arith.constant 0.000000e+00 : f32
    %281 = vector.broadcast %cst_203 : f32 to vector<36x23xf32>
    %282 = arith.maximumf %280, %281 : vector<36x23xf32>
    %283 = vector.extract_strided_slice %282 {offsets = [0, 0], sizes = [36, 20], strides = [1, 1]} : vector<36x23xf32> to vector<36x20xf32>
    %284 = vector.extract_strided_slice %282 {offsets = [0, 1], sizes = [36, 20], strides = [1, 1]} : vector<36x23xf32> to vector<36x20xf32>
    %285 = arith.maximumf %283, %284 : vector<36x20xf32>
    %286 = vector.extract_strided_slice %282 {offsets = [0, 2], sizes = [36, 20], strides = [1, 1]} : vector<36x23xf32> to vector<36x20xf32>
    %287 = arith.maximumf %285, %286 : vector<36x20xf32>
    %288 = vector.extract_strided_slice %282 {offsets = [0, 3], sizes = [36, 20], strides = [1, 1]} : vector<36x23xf32> to vector<36x20xf32>
    %289 = arith.maximumf %287, %288 : vector<36x20xf32>
    %c0_204 = arith.constant 0 : index
    %c0_205 = arith.constant 0 : index
    %290 = vector.load %arg15[%c0_204, %c0_205] : memref<10x20xf32, #tpu.memory_space<vmem>>, vector<10x20xf32>
    %cst_206 = arith.constant dense<0.000000e+00> : vector<10x36xf32>
    %291 = tpu.matmul %290, %289, %cst_206 {dimension_numbers = #tpu.dot_dimension_numbers<[1], [1], [0], [0], [0, 0, 1, 0], [], []>} : vector<10x20xf32>, vector<36x20xf32>, vector<10x36xf32> -> vector<10x36xf32>
    %cst_207 = arith.constant dense<0.000000e+00> : vector<10x256xf32>
    %292 = tpu.matmul %291, %0, %cst_207 {dimension_numbers = #tpu.dot_dimension_numbers<[1], [0], [0], [1], [0, 0, 1, 1], [], []>} : vector<10x36xf32>, vector<36x256xf32>, vector<10x256xf32> -> vector<10x256xf32>
    %293 = vector.broadcast %2 : vector<1x256xf32> to vector<10x256xf32>
    %294 = arith.addf %292, %293 : vector<10x256xf32>
    %cst_208 = arith.constant 0.000000e+00 : f32
    %295 = vector.broadcast %cst_208 : f32 to vector<1x64xf32>
    %cst_209 = arith.constant 0.000000e+00 : f32
    %296 = vector.broadcast %cst_209 : f32 to vector<1x64xf32>
    %cst_210 = arith.constant 0.000000e+00 : f32
    %297 = vector.broadcast %cst_210 : f32 to vector<1x64xf32>
    %cst_211 = arith.constant 0.000000e+00 : f32
    %298 = vector.broadcast %cst_211 : f32 to vector<1x64xf32>
    %cst_212 = arith.constant 0.000000e+00 : f32
    %299 = vector.broadcast %cst_212 : f32 to vector<1x64xf32>
    %cst_213 = arith.constant 0.000000e+00 : f32
    %300 = vector.broadcast %cst_213 : f32 to vector<1x64xf32>
    %301 = vector.extract_strided_slice %148 {offsets = [0, 0], sizes = [1, 256], strides = [1, 1]} : vector<10x256xf32> to vector<1x256xf32>
    %cst_214 = arith.constant dense<0.000000e+00> : vector<1x256xf32>
    %302 = tpu.matmul %295, %1, %cst_214 {dimension_numbers = #tpu.dot_dimension_numbers<[1], [0], [0], [1], [0, 0, 1, 1], [], []>} : vector<1x64xf32>, vector<64x256xf32>, vector<1x256xf32> -> vector<1x256xf32>
    %303 = arith.addf %301, %302 : vector<1x256xf32>
    %304 = vector.extract_strided_slice %303 {offsets = [0, 0], sizes = [1, 64], strides = [1, 1]} : vector<1x256xf32> to vector<1x64xf32>
    %305 = arith.negf %304 : vector<1x64xf32>
    %306 = math.exp %305 : vector<1x64xf32>
    %cst_215 = arith.constant 1.000000e+00 : f32
    %307 = vector.broadcast %cst_215 : f32 to vector<1x64xf32>
    %308 = arith.addf %307, %306 : vector<1x64xf32>
    %309 = arith.divf %307, %308 : vector<1x64xf32>
    %310 = vector.extract_strided_slice %303 {offsets = [0, 64], sizes = [1, 64], strides = [1, 1]} : vector<1x256xf32> to vector<1x64xf32>
    %311 = arith.negf %310 : vector<1x64xf32>
    %312 = math.exp %311 : vector<1x64xf32>
    %cst_216 = arith.constant 1.000000e+00 : f32
    %313 = vector.broadcast %cst_216 : f32 to vector<1x64xf32>
    %314 = arith.addf %313, %312 : vector<1x64xf32>
    %315 = arith.divf %313, %314 : vector<1x64xf32>
    %316 = vector.extract_strided_slice %303 {offsets = [0, 128], sizes = [1, 64], strides = [1, 1]} : vector<1x256xf32> to vector<1x64xf32>
    %317 = math.tanh %316 : vector<1x64xf32>
    %318 = vector.extract_strided_slice %303 {offsets = [0, 192], sizes = [1, 64], strides = [1, 1]} : vector<1x256xf32> to vector<1x64xf32>
    %319 = arith.negf %318 : vector<1x64xf32>
    %320 = math.exp %319 : vector<1x64xf32>
    %cst_217 = arith.constant 1.000000e+00 : f32
    %321 = vector.broadcast %cst_217 : f32 to vector<1x64xf32>
    %322 = arith.addf %321, %320 : vector<1x64xf32>
    %323 = arith.divf %321, %322 : vector<1x64xf32>
    %324 = arith.mulf %315, %297 : vector<1x64xf32>
    %325 = arith.mulf %309, %317 : vector<1x64xf32>
    %326 = arith.addf %324, %325 : vector<1x64xf32>
    %327 = math.tanh %326 : vector<1x64xf32>
    %328 = arith.mulf %323, %327 : vector<1x64xf32>
    %329 = arith.addf %299, %328 : vector<1x64xf32>
    %330 = vector.extract_strided_slice %294 {offsets = [0, 0], sizes = [1, 256], strides = [1, 1]} : vector<10x256xf32> to vector<1x256xf32>
    %cst_218 = arith.constant dense<0.000000e+00> : vector<1x256xf32>
    %331 = tpu.matmul %296, %1, %cst_218 {dimension_numbers = #tpu.dot_dimension_numbers<[1], [0], [0], [1], [0, 0, 1, 1], [], []>} : vector<1x64xf32>, vector<64x256xf32>, vector<1x256xf32> -> vector<1x256xf32>
    %332 = arith.addf %330, %331 : vector<1x256xf32>
    %333 = vector.extract_strided_slice %332 {offsets = [0, 0], sizes = [1, 64], strides = [1, 1]} : vector<1x256xf32> to vector<1x64xf32>
    %334 = arith.negf %333 : vector<1x64xf32>
    %335 = math.exp %334 : vector<1x64xf32>
    %cst_219 = arith.constant 1.000000e+00 : f32
    %336 = vector.broadcast %cst_219 : f32 to vector<1x64xf32>
    %337 = arith.addf %336, %335 : vector<1x64xf32>
    %338 = arith.divf %336, %337 : vector<1x64xf32>
    %339 = vector.extract_strided_slice %332 {offsets = [0, 64], sizes = [1, 64], strides = [1, 1]} : vector<1x256xf32> to vector<1x64xf32>
    %340 = arith.negf %339 : vector<1x64xf32>
    %341 = math.exp %340 : vector<1x64xf32>
    %cst_220 = arith.constant 1.000000e+00 : f32
    %342 = vector.broadcast %cst_220 : f32 to vector<1x64xf32>
    %343 = arith.addf %342, %341 : vector<1x64xf32>
    %344 = arith.divf %342, %343 : vector<1x64xf32>
    %345 = vector.extract_strided_slice %332 {offsets = [0, 128], sizes = [1, 64], strides = [1, 1]} : vector<1x256xf32> to vector<1x64xf32>
    %346 = math.tanh %345 : vector<1x64xf32>
    %347 = vector.extract_strided_slice %332 {offsets = [0, 192], sizes = [1, 64], strides = [1, 1]} : vector<1x256xf32> to vector<1x64xf32>
    %348 = arith.negf %347 : vector<1x64xf32>
    %349 = math.exp %348 : vector<1x64xf32>
    %cst_221 = arith.constant 1.000000e+00 : f32
    %350 = vector.broadcast %cst_221 : f32 to vector<1x64xf32>
    %351 = arith.addf %350, %349 : vector<1x64xf32>
    %352 = arith.divf %350, %351 : vector<1x64xf32>
    %353 = arith.mulf %344, %298 : vector<1x64xf32>
    %354 = arith.mulf %338, %346 : vector<1x64xf32>
    %355 = arith.addf %353, %354 : vector<1x64xf32>
    %356 = math.tanh %355 : vector<1x64xf32>
    %357 = arith.mulf %352, %356 : vector<1x64xf32>
    %358 = arith.addf %300, %357 : vector<1x64xf32>
    %359 = vector.extract_strided_slice %148 {offsets = [1, 0], sizes = [1, 256], strides = [1, 1]} : vector<10x256xf32> to vector<1x256xf32>
    %cst_222 = arith.constant dense<0.000000e+00> : vector<1x256xf32>
    %360 = tpu.matmul %328, %1, %cst_222 {dimension_numbers = #tpu.dot_dimension_numbers<[1], [0], [0], [1], [0, 0, 1, 1], [], []>} : vector<1x64xf32>, vector<64x256xf32>, vector<1x256xf32> -> vector<1x256xf32>
    %361 = arith.addf %359, %360 : vector<1x256xf32>
    %362 = vector.extract_strided_slice %361 {offsets = [0, 0], sizes = [1, 64], strides = [1, 1]} : vector<1x256xf32> to vector<1x64xf32>
    %363 = arith.negf %362 : vector<1x64xf32>
    %364 = math.exp %363 : vector<1x64xf32>
    %cst_223 = arith.constant 1.000000e+00 : f32
    %365 = vector.broadcast %cst_223 : f32 to vector<1x64xf32>
    %366 = arith.addf %365, %364 : vector<1x64xf32>
    %367 = arith.divf %365, %366 : vector<1x64xf32>
    %368 = vector.extract_strided_slice %361 {offsets = [0, 64], sizes = [1, 64], strides = [1, 1]} : vector<1x256xf32> to vector<1x64xf32>
    %369 = arith.negf %368 : vector<1x64xf32>
    %370 = math.exp %369 : vector<1x64xf32>
    %cst_224 = arith.constant 1.000000e+00 : f32
    %371 = vector.broadcast %cst_224 : f32 to vector<1x64xf32>
    %372 = arith.addf %371, %370 : vector<1x64xf32>
    %373 = arith.divf %371, %372 : vector<1x64xf32>
    %374 = vector.extract_strided_slice %361 {offsets = [0, 128], sizes = [1, 64], strides = [1, 1]} : vector<1x256xf32> to vector<1x64xf32>
    %375 = math.tanh %374 : vector<1x64xf32>
    %376 = vector.extract_strided_slice %361 {offsets = [0, 192], sizes = [1, 64], strides = [1, 1]} : vector<1x256xf32> to vector<1x64xf32>
    %377 = arith.negf %376 : vector<1x64xf32>
    %378 = math.exp %377 : vector<1x64xf32>
    %cst_225 = arith.constant 1.000000e+00 : f32
    %379 = vector.broadcast %cst_225 : f32 to vector<1x64xf32>
    %380 = arith.addf %379, %378 : vector<1x64xf32>
    %381 = arith.divf %379, %380 : vector<1x64xf32>
    %382 = arith.mulf %373, %326 : vector<1x64xf32>
    %383 = arith.mulf %367, %375 : vector<1x64xf32>
    %384 = arith.addf %382, %383 : vector<1x64xf32>
    %385 = math.tanh %384 : vector<1x64xf32>
    %386 = arith.mulf %381, %385 : vector<1x64xf32>
    %387 = arith.addf %329, %386 : vector<1x64xf32>
    %388 = vector.extract_strided_slice %294 {offsets = [1, 0], sizes = [1, 256], strides = [1, 1]} : vector<10x256xf32> to vector<1x256xf32>
    %cst_226 = arith.constant dense<0.000000e+00> : vector<1x256xf32>
    %389 = tpu.matmul %357, %1, %cst_226 {dimension_numbers = #tpu.dot_dimension_numbers<[1], [0], [0], [1], [0, 0, 1, 1], [], []>} : vector<1x64xf32>, vector<64x256xf32>, vector<1x256xf32> -> vector<1x256xf32>
    %390 = arith.addf %388, %389 : vector<1x256xf32>
    %391 = vector.extract_strided_slice %390 {offsets = [0, 0], sizes = [1, 64], strides = [1, 1]} : vector<1x256xf32> to vector<1x64xf32>
    %392 = arith.negf %391 : vector<1x64xf32>
    %393 = math.exp %392 : vector<1x64xf32>
    %cst_227 = arith.constant 1.000000e+00 : f32
    %394 = vector.broadcast %cst_227 : f32 to vector<1x64xf32>
    %395 = arith.addf %394, %393 : vector<1x64xf32>
    %396 = arith.divf %394, %395 : vector<1x64xf32>
    %397 = vector.extract_strided_slice %390 {offsets = [0, 64], sizes = [1, 64], strides = [1, 1]} : vector<1x256xf32> to vector<1x64xf32>
    %398 = arith.negf %397 : vector<1x64xf32>
    %399 = math.exp %398 : vector<1x64xf32>
    %cst_228 = arith.constant 1.000000e+00 : f32
    %400 = vector.broadcast %cst_228 : f32 to vector<1x64xf32>
    %401 = arith.addf %400, %399 : vector<1x64xf32>
    %402 = arith.divf %400, %401 : vector<1x64xf32>
    %403 = vector.extract_strided_slice %390 {offsets = [0, 128], sizes = [1, 64], strides = [1, 1]} : vector<1x256xf32> to vector<1x64xf32>
    %404 = math.tanh %403 : vector<1x64xf32>
    %405 = vector.extract_strided_slice %390 {offsets = [0, 192], sizes = [1, 64], strides = [1, 1]} : vector<1x256xf32> to vector<1x64xf32>
    %406 = arith.negf %405 : vector<1x64xf32>
    %407 = math.exp %406 : vector<1x64xf32>
    %cst_229 = arith.constant 1.000000e+00 : f32
    %408 = vector.broadcast %cst_229 : f32 to vector<1x64xf32>
    %409 = arith.addf %408, %407 : vector<1x64xf32>
    %410 = arith.divf %408, %409 : vector<1x64xf32>
    %411 = arith.mulf %402, %355 : vector<1x64xf32>
    %412 = arith.mulf %396, %404 : vector<1x64xf32>
    %413 = arith.addf %411, %412 : vector<1x64xf32>
    %414 = math.tanh %413 : vector<1x64xf32>
    %415 = arith.mulf %410, %414 : vector<1x64xf32>
    %416 = arith.addf %358, %415 : vector<1x64xf32>
    %417 = vector.extract_strided_slice %148 {offsets = [2, 0], sizes = [1, 256], strides = [1, 1]} : vector<10x256xf32> to vector<1x256xf32>
    %cst_230 = arith.constant dense<0.000000e+00> : vector<1x256xf32>
    %418 = tpu.matmul %386, %1, %cst_230 {dimension_numbers = #tpu.dot_dimension_numbers<[1], [0], [0], [1], [0, 0, 1, 1], [], []>} : vector<1x64xf32>, vector<64x256xf32>, vector<1x256xf32> -> vector<1x256xf32>
    %419 = arith.addf %417, %418 : vector<1x256xf32>
    %420 = vector.extract_strided_slice %419 {offsets = [0, 0], sizes = [1, 64], strides = [1, 1]} : vector<1x256xf32> to vector<1x64xf32>
    %421 = arith.negf %420 : vector<1x64xf32>
    %422 = math.exp %421 : vector<1x64xf32>
    %cst_231 = arith.constant 1.000000e+00 : f32
    %423 = vector.broadcast %cst_231 : f32 to vector<1x64xf32>
    %424 = arith.addf %423, %422 : vector<1x64xf32>
    %425 = arith.divf %423, %424 : vector<1x64xf32>
    %426 = vector.extract_strided_slice %419 {offsets = [0, 64], sizes = [1, 64], strides = [1, 1]} : vector<1x256xf32> to vector<1x64xf32>
    %427 = arith.negf %426 : vector<1x64xf32>
    %428 = math.exp %427 : vector<1x64xf32>
    %cst_232 = arith.constant 1.000000e+00 : f32
    %429 = vector.broadcast %cst_232 : f32 to vector<1x64xf32>
    %430 = arith.addf %429, %428 : vector<1x64xf32>
    %431 = arith.divf %429, %430 : vector<1x64xf32>
    %432 = vector.extract_strided_slice %419 {offsets = [0, 128], sizes = [1, 64], strides = [1, 1]} : vector<1x256xf32> to vector<1x64xf32>
    %433 = math.tanh %432 : vector<1x64xf32>
    %434 = vector.extract_strided_slice %419 {offsets = [0, 192], sizes = [1, 64], strides = [1, 1]} : vector<1x256xf32> to vector<1x64xf32>
    %435 = arith.negf %434 : vector<1x64xf32>
    %436 = math.exp %435 : vector<1x64xf32>
    %cst_233 = arith.constant 1.000000e+00 : f32
    %437 = vector.broadcast %cst_233 : f32 to vector<1x64xf32>
    %438 = arith.addf %437, %436 : vector<1x64xf32>
    %439 = arith.divf %437, %438 : vector<1x64xf32>
    %440 = arith.mulf %431, %384 : vector<1x64xf32>
    %441 = arith.mulf %425, %433 : vector<1x64xf32>
    %442 = arith.addf %440, %441 : vector<1x64xf32>
    %443 = math.tanh %442 : vector<1x64xf32>
    %444 = arith.mulf %439, %443 : vector<1x64xf32>
    %445 = arith.addf %387, %444 : vector<1x64xf32>
    %446 = vector.extract_strided_slice %294 {offsets = [2, 0], sizes = [1, 256], strides = [1, 1]} : vector<10x256xf32> to vector<1x256xf32>
    %cst_234 = arith.constant dense<0.000000e+00> : vector<1x256xf32>
    %447 = tpu.matmul %415, %1, %cst_234 {dimension_numbers = #tpu.dot_dimension_numbers<[1], [0], [0], [1], [0, 0, 1, 1], [], []>} : vector<1x64xf32>, vector<64x256xf32>, vector<1x256xf32> -> vector<1x256xf32>
    %448 = arith.addf %446, %447 : vector<1x256xf32>
    %449 = vector.extract_strided_slice %448 {offsets = [0, 0], sizes = [1, 64], strides = [1, 1]} : vector<1x256xf32> to vector<1x64xf32>
    %450 = arith.negf %449 : vector<1x64xf32>
    %451 = math.exp %450 : vector<1x64xf32>
    %cst_235 = arith.constant 1.000000e+00 : f32
    %452 = vector.broadcast %cst_235 : f32 to vector<1x64xf32>
    %453 = arith.addf %452, %451 : vector<1x64xf32>
    %454 = arith.divf %452, %453 : vector<1x64xf32>
    %455 = vector.extract_strided_slice %448 {offsets = [0, 64], sizes = [1, 64], strides = [1, 1]} : vector<1x256xf32> to vector<1x64xf32>
    %456 = arith.negf %455 : vector<1x64xf32>
    %457 = math.exp %456 : vector<1x64xf32>
    %cst_236 = arith.constant 1.000000e+00 : f32
    %458 = vector.broadcast %cst_236 : f32 to vector<1x64xf32>
    %459 = arith.addf %458, %457 : vector<1x64xf32>
    %460 = arith.divf %458, %459 : vector<1x64xf32>
    %461 = vector.extract_strided_slice %448 {offsets = [0, 128], sizes = [1, 64], strides = [1, 1]} : vector<1x256xf32> to vector<1x64xf32>
    %462 = math.tanh %461 : vector<1x64xf32>
    %463 = vector.extract_strided_slice %448 {offsets = [0, 192], sizes = [1, 64], strides = [1, 1]} : vector<1x256xf32> to vector<1x64xf32>
    %464 = arith.negf %463 : vector<1x64xf32>
    %465 = math.exp %464 : vector<1x64xf32>
    %cst_237 = arith.constant 1.000000e+00 : f32
    %466 = vector.broadcast %cst_237 : f32 to vector<1x64xf32>
    %467 = arith.addf %466, %465 : vector<1x64xf32>
    %468 = arith.divf %466, %467 : vector<1x64xf32>
    %469 = arith.mulf %460, %413 : vector<1x64xf32>
    %470 = arith.mulf %454, %462 : vector<1x64xf32>
    %471 = arith.addf %469, %470 : vector<1x64xf32>
    %472 = math.tanh %471 : vector<1x64xf32>
    %473 = arith.mulf %468, %472 : vector<1x64xf32>
    %474 = arith.addf %416, %473 : vector<1x64xf32>
    %475 = vector.extract_strided_slice %148 {offsets = [3, 0], sizes = [1, 256], strides = [1, 1]} : vector<10x256xf32> to vector<1x256xf32>
    %cst_238 = arith.constant dense<0.000000e+00> : vector<1x256xf32>
    %476 = tpu.matmul %444, %1, %cst_238 {dimension_numbers = #tpu.dot_dimension_numbers<[1], [0], [0], [1], [0, 0, 1, 1], [], []>} : vector<1x64xf32>, vector<64x256xf32>, vector<1x256xf32> -> vector<1x256xf32>
    %477 = arith.addf %475, %476 : vector<1x256xf32>
    %478 = vector.extract_strided_slice %477 {offsets = [0, 0], sizes = [1, 64], strides = [1, 1]} : vector<1x256xf32> to vector<1x64xf32>
    %479 = arith.negf %478 : vector<1x64xf32>
    %480 = math.exp %479 : vector<1x64xf32>
    %cst_239 = arith.constant 1.000000e+00 : f32
    %481 = vector.broadcast %cst_239 : f32 to vector<1x64xf32>
    %482 = arith.addf %481, %480 : vector<1x64xf32>
    %483 = arith.divf %481, %482 : vector<1x64xf32>
    %484 = vector.extract_strided_slice %477 {offsets = [0, 64], sizes = [1, 64], strides = [1, 1]} : vector<1x256xf32> to vector<1x64xf32>
    %485 = arith.negf %484 : vector<1x64xf32>
    %486 = math.exp %485 : vector<1x64xf32>
    %cst_240 = arith.constant 1.000000e+00 : f32
    %487 = vector.broadcast %cst_240 : f32 to vector<1x64xf32>
    %488 = arith.addf %487, %486 : vector<1x64xf32>
    %489 = arith.divf %487, %488 : vector<1x64xf32>
    %490 = vector.extract_strided_slice %477 {offsets = [0, 128], sizes = [1, 64], strides = [1, 1]} : vector<1x256xf32> to vector<1x64xf32>
    %491 = math.tanh %490 : vector<1x64xf32>
    %492 = vector.extract_strided_slice %477 {offsets = [0, 192], sizes = [1, 64], strides = [1, 1]} : vector<1x256xf32> to vector<1x64xf32>
    %493 = arith.negf %492 : vector<1x64xf32>
    %494 = math.exp %493 : vector<1x64xf32>
    %cst_241 = arith.constant 1.000000e+00 : f32
    %495 = vector.broadcast %cst_241 : f32 to vector<1x64xf32>
    %496 = arith.addf %495, %494 : vector<1x64xf32>
    %497 = arith.divf %495, %496 : vector<1x64xf32>
    %498 = arith.mulf %489, %442 : vector<1x64xf32>
    %499 = arith.mulf %483, %491 : vector<1x64xf32>
    %500 = arith.addf %498, %499 : vector<1x64xf32>
    %501 = math.tanh %500 : vector<1x64xf32>
    %502 = arith.mulf %497, %501 : vector<1x64xf32>
    %503 = arith.addf %445, %502 : vector<1x64xf32>
    %504 = vector.extract_strided_slice %294 {offsets = [3, 0], sizes = [1, 256], strides = [1, 1]} : vector<10x256xf32> to vector<1x256xf32>
    %cst_242 = arith.constant dense<0.000000e+00> : vector<1x256xf32>
    %505 = tpu.matmul %473, %1, %cst_242 {dimension_numbers = #tpu.dot_dimension_numbers<[1], [0], [0], [1], [0, 0, 1, 1], [], []>} : vector<1x64xf32>, vector<64x256xf32>, vector<1x256xf32> -> vector<1x256xf32>
    %506 = arith.addf %504, %505 : vector<1x256xf32>
    %507 = vector.extract_strided_slice %506 {offsets = [0, 0], sizes = [1, 64], strides = [1, 1]} : vector<1x256xf32> to vector<1x64xf32>
    %508 = arith.negf %507 : vector<1x64xf32>
    %509 = math.exp %508 : vector<1x64xf32>
    %cst_243 = arith.constant 1.000000e+00 : f32
    %510 = vector.broadcast %cst_243 : f32 to vector<1x64xf32>
    %511 = arith.addf %510, %509 : vector<1x64xf32>
    %512 = arith.divf %510, %511 : vector<1x64xf32>
    %513 = vector.extract_strided_slice %506 {offsets = [0, 64], sizes = [1, 64], strides = [1, 1]} : vector<1x256xf32> to vector<1x64xf32>
    %514 = arith.negf %513 : vector<1x64xf32>
    %515 = math.exp %514 : vector<1x64xf32>
    %cst_244 = arith.constant 1.000000e+00 : f32
    %516 = vector.broadcast %cst_244 : f32 to vector<1x64xf32>
    %517 = arith.addf %516, %515 : vector<1x64xf32>
    %518 = arith.divf %516, %517 : vector<1x64xf32>
    %519 = vector.extract_strided_slice %506 {offsets = [0, 128], sizes = [1, 64], strides = [1, 1]} : vector<1x256xf32> to vector<1x64xf32>
    %520 = math.tanh %519 : vector<1x64xf32>
    %521 = vector.extract_strided_slice %506 {offsets = [0, 192], sizes = [1, 64], strides = [1, 1]} : vector<1x256xf32> to vector<1x64xf32>
    %522 = arith.negf %521 : vector<1x64xf32>
    %523 = math.exp %522 : vector<1x64xf32>
    %cst_245 = arith.constant 1.000000e+00 : f32
    %524 = vector.broadcast %cst_245 : f32 to vector<1x64xf32>
    %525 = arith.addf %524, %523 : vector<1x64xf32>
    %526 = arith.divf %524, %525 : vector<1x64xf32>
    %527 = arith.mulf %518, %471 : vector<1x64xf32>
    %528 = arith.mulf %512, %520 : vector<1x64xf32>
    %529 = arith.addf %527, %528 : vector<1x64xf32>
    %530 = math.tanh %529 : vector<1x64xf32>
    %531 = arith.mulf %526, %530 : vector<1x64xf32>
    %532 = arith.addf %474, %531 : vector<1x64xf32>
    %533 = vector.extract_strided_slice %148 {offsets = [4, 0], sizes = [1, 256], strides = [1, 1]} : vector<10x256xf32> to vector<1x256xf32>
    %cst_246 = arith.constant dense<0.000000e+00> : vector<1x256xf32>
    %534 = tpu.matmul %502, %1, %cst_246 {dimension_numbers = #tpu.dot_dimension_numbers<[1], [0], [0], [1], [0, 0, 1, 1], [], []>} : vector<1x64xf32>, vector<64x256xf32>, vector<1x256xf32> -> vector<1x256xf32>
    %535 = arith.addf %533, %534 : vector<1x256xf32>
    %536 = vector.extract_strided_slice %535 {offsets = [0, 0], sizes = [1, 64], strides = [1, 1]} : vector<1x256xf32> to vector<1x64xf32>
    %537 = arith.negf %536 : vector<1x64xf32>
    %538 = math.exp %537 : vector<1x64xf32>
    %cst_247 = arith.constant 1.000000e+00 : f32
    %539 = vector.broadcast %cst_247 : f32 to vector<1x64xf32>
    %540 = arith.addf %539, %538 : vector<1x64xf32>
    %541 = arith.divf %539, %540 : vector<1x64xf32>
    %542 = vector.extract_strided_slice %535 {offsets = [0, 64], sizes = [1, 64], strides = [1, 1]} : vector<1x256xf32> to vector<1x64xf32>
    %543 = arith.negf %542 : vector<1x64xf32>
    %544 = math.exp %543 : vector<1x64xf32>
    %cst_248 = arith.constant 1.000000e+00 : f32
    %545 = vector.broadcast %cst_248 : f32 to vector<1x64xf32>
    %546 = arith.addf %545, %544 : vector<1x64xf32>
    %547 = arith.divf %545, %546 : vector<1x64xf32>
    %548 = vector.extract_strided_slice %535 {offsets = [0, 128], sizes = [1, 64], strides = [1, 1]} : vector<1x256xf32> to vector<1x64xf32>
    %549 = math.tanh %548 : vector<1x64xf32>
    %550 = vector.extract_strided_slice %535 {offsets = [0, 192], sizes = [1, 64], strides = [1, 1]} : vector<1x256xf32> to vector<1x64xf32>
    %551 = arith.negf %550 : vector<1x64xf32>
    %552 = math.exp %551 : vector<1x64xf32>
    %cst_249 = arith.constant 1.000000e+00 : f32
    %553 = vector.broadcast %cst_249 : f32 to vector<1x64xf32>
    %554 = arith.addf %553, %552 : vector<1x64xf32>
    %555 = arith.divf %553, %554 : vector<1x64xf32>
    %556 = arith.mulf %547, %500 : vector<1x64xf32>
    %557 = arith.mulf %541, %549 : vector<1x64xf32>
    %558 = arith.addf %556, %557 : vector<1x64xf32>
    %559 = math.tanh %558 : vector<1x64xf32>
    %560 = arith.mulf %555, %559 : vector<1x64xf32>
    %561 = arith.addf %503, %560 : vector<1x64xf32>
    %562 = vector.extract_strided_slice %294 {offsets = [4, 0], sizes = [1, 256], strides = [1, 1]} : vector<10x256xf32> to vector<1x256xf32>
    %cst_250 = arith.constant dense<0.000000e+00> : vector<1x256xf32>
    %563 = tpu.matmul %531, %1, %cst_250 {dimension_numbers = #tpu.dot_dimension_numbers<[1], [0], [0], [1], [0, 0, 1, 1], [], []>} : vector<1x64xf32>, vector<64x256xf32>, vector<1x256xf32> -> vector<1x256xf32>
    %564 = arith.addf %562, %563 : vector<1x256xf32>
    %565 = vector.extract_strided_slice %564 {offsets = [0, 0], sizes = [1, 64], strides = [1, 1]} : vector<1x256xf32> to vector<1x64xf32>
    %566 = arith.negf %565 : vector<1x64xf32>
    %567 = math.exp %566 : vector<1x64xf32>
    %cst_251 = arith.constant 1.000000e+00 : f32
    %568 = vector.broadcast %cst_251 : f32 to vector<1x64xf32>
    %569 = arith.addf %568, %567 : vector<1x64xf32>
    %570 = arith.divf %568, %569 : vector<1x64xf32>
    %571 = vector.extract_strided_slice %564 {offsets = [0, 64], sizes = [1, 64], strides = [1, 1]} : vector<1x256xf32> to vector<1x64xf32>
    %572 = arith.negf %571 : vector<1x64xf32>
    %573 = math.exp %572 : vector<1x64xf32>
    %cst_252 = arith.constant 1.000000e+00 : f32
    %574 = vector.broadcast %cst_252 : f32 to vector<1x64xf32>
    %575 = arith.addf %574, %573 : vector<1x64xf32>
    %576 = arith.divf %574, %575 : vector<1x64xf32>
    %577 = vector.extract_strided_slice %564 {offsets = [0, 128], sizes = [1, 64], strides = [1, 1]} : vector<1x256xf32> to vector<1x64xf32>
    %578 = math.tanh %577 : vector<1x64xf32>
    %579 = vector.extract_strided_slice %564 {offsets = [0, 192], sizes = [1, 64], strides = [1, 1]} : vector<1x256xf32> to vector<1x64xf32>
    %580 = arith.negf %579 : vector<1x64xf32>
    %581 = math.exp %580 : vector<1x64xf32>
    %cst_253 = arith.constant 1.000000e+00 : f32
    %582 = vector.broadcast %cst_253 : f32 to vector<1x64xf32>
    %583 = arith.addf %582, %581 : vector<1x64xf32>
    %584 = arith.divf %582, %583 : vector<1x64xf32>
    %585 = arith.mulf %576, %529 : vector<1x64xf32>
    %586 = arith.mulf %570, %578 : vector<1x64xf32>
    %587 = arith.addf %585, %586 : vector<1x64xf32>
    %588 = math.tanh %587 : vector<1x64xf32>
    %589 = arith.mulf %584, %588 : vector<1x64xf32>
    %590 = arith.addf %532, %589 : vector<1x64xf32>
    %591 = vector.extract_strided_slice %148 {offsets = [5, 0], sizes = [1, 256], strides = [1, 1]} : vector<10x256xf32> to vector<1x256xf32>
    %cst_254 = arith.constant dense<0.000000e+00> : vector<1x256xf32>
    %592 = tpu.matmul %560, %1, %cst_254 {dimension_numbers = #tpu.dot_dimension_numbers<[1], [0], [0], [1], [0, 0, 1, 1], [], []>} : vector<1x64xf32>, vector<64x256xf32>, vector<1x256xf32> -> vector<1x256xf32>
    %593 = arith.addf %591, %592 : vector<1x256xf32>
    %594 = vector.extract_strided_slice %593 {offsets = [0, 0], sizes = [1, 64], strides = [1, 1]} : vector<1x256xf32> to vector<1x64xf32>
    %595 = arith.negf %594 : vector<1x64xf32>
    %596 = math.exp %595 : vector<1x64xf32>
    %cst_255 = arith.constant 1.000000e+00 : f32
    %597 = vector.broadcast %cst_255 : f32 to vector<1x64xf32>
    %598 = arith.addf %597, %596 : vector<1x64xf32>
    %599 = arith.divf %597, %598 : vector<1x64xf32>
    %600 = vector.extract_strided_slice %593 {offsets = [0, 64], sizes = [1, 64], strides = [1, 1]} : vector<1x256xf32> to vector<1x64xf32>
    %601 = arith.negf %600 : vector<1x64xf32>
    %602 = math.exp %601 : vector<1x64xf32>
    %cst_256 = arith.constant 1.000000e+00 : f32
    %603 = vector.broadcast %cst_256 : f32 to vector<1x64xf32>
    %604 = arith.addf %603, %602 : vector<1x64xf32>
    %605 = arith.divf %603, %604 : vector<1x64xf32>
    %606 = vector.extract_strided_slice %593 {offsets = [0, 128], sizes = [1, 64], strides = [1, 1]} : vector<1x256xf32> to vector<1x64xf32>
    %607 = math.tanh %606 : vector<1x64xf32>
    %608 = vector.extract_strided_slice %593 {offsets = [0, 192], sizes = [1, 64], strides = [1, 1]} : vector<1x256xf32> to vector<1x64xf32>
    %609 = arith.negf %608 : vector<1x64xf32>
    %610 = math.exp %609 : vector<1x64xf32>
    %cst_257 = arith.constant 1.000000e+00 : f32
    %611 = vector.broadcast %cst_257 : f32 to vector<1x64xf32>
    %612 = arith.addf %611, %610 : vector<1x64xf32>
    %613 = arith.divf %611, %612 : vector<1x64xf32>
    %614 = arith.mulf %605, %558 : vector<1x64xf32>
    %615 = arith.mulf %599, %607 : vector<1x64xf32>
    %616 = arith.addf %614, %615 : vector<1x64xf32>
    %617 = math.tanh %616 : vector<1x64xf32>
    %618 = arith.mulf %613, %617 : vector<1x64xf32>
    %619 = arith.addf %561, %618 : vector<1x64xf32>
    %620 = vector.extract_strided_slice %294 {offsets = [5, 0], sizes = [1, 256], strides = [1, 1]} : vector<10x256xf32> to vector<1x256xf32>
    %cst_258 = arith.constant dense<0.000000e+00> : vector<1x256xf32>
    %621 = tpu.matmul %589, %1, %cst_258 {dimension_numbers = #tpu.dot_dimension_numbers<[1], [0], [0], [1], [0, 0, 1, 1], [], []>} : vector<1x64xf32>, vector<64x256xf32>, vector<1x256xf32> -> vector<1x256xf32>
    %622 = arith.addf %620, %621 : vector<1x256xf32>
    %623 = vector.extract_strided_slice %622 {offsets = [0, 0], sizes = [1, 64], strides = [1, 1]} : vector<1x256xf32> to vector<1x64xf32>
    %624 = arith.negf %623 : vector<1x64xf32>
    %625 = math.exp %624 : vector<1x64xf32>
    %cst_259 = arith.constant 1.000000e+00 : f32
    %626 = vector.broadcast %cst_259 : f32 to vector<1x64xf32>
    %627 = arith.addf %626, %625 : vector<1x64xf32>
    %628 = arith.divf %626, %627 : vector<1x64xf32>
    %629 = vector.extract_strided_slice %622 {offsets = [0, 64], sizes = [1, 64], strides = [1, 1]} : vector<1x256xf32> to vector<1x64xf32>
    %630 = arith.negf %629 : vector<1x64xf32>
    %631 = math.exp %630 : vector<1x64xf32>
    %cst_260 = arith.constant 1.000000e+00 : f32
    %632 = vector.broadcast %cst_260 : f32 to vector<1x64xf32>
    %633 = arith.addf %632, %631 : vector<1x64xf32>
    %634 = arith.divf %632, %633 : vector<1x64xf32>
    %635 = vector.extract_strided_slice %622 {offsets = [0, 128], sizes = [1, 64], strides = [1, 1]} : vector<1x256xf32> to vector<1x64xf32>
    %636 = math.tanh %635 : vector<1x64xf32>
    %637 = vector.extract_strided_slice %622 {offsets = [0, 192], sizes = [1, 64], strides = [1, 1]} : vector<1x256xf32> to vector<1x64xf32>
    %638 = arith.negf %637 : vector<1x64xf32>
    %639 = math.exp %638 : vector<1x64xf32>
    %cst_261 = arith.constant 1.000000e+00 : f32
    %640 = vector.broadcast %cst_261 : f32 to vector<1x64xf32>
    %641 = arith.addf %640, %639 : vector<1x64xf32>
    %642 = arith.divf %640, %641 : vector<1x64xf32>
    %643 = arith.mulf %634, %587 : vector<1x64xf32>
    %644 = arith.mulf %628, %636 : vector<1x64xf32>
    %645 = arith.addf %643, %644 : vector<1x64xf32>
    %646 = math.tanh %645 : vector<1x64xf32>
    %647 = arith.mulf %642, %646 : vector<1x64xf32>
    %648 = arith.addf %590, %647 : vector<1x64xf32>
    %649 = vector.extract_strided_slice %148 {offsets = [6, 0], sizes = [1, 256], strides = [1, 1]} : vector<10x256xf32> to vector<1x256xf32>
    %cst_262 = arith.constant dense<0.000000e+00> : vector<1x256xf32>
    %650 = tpu.matmul %618, %1, %cst_262 {dimension_numbers = #tpu.dot_dimension_numbers<[1], [0], [0], [1], [0, 0, 1, 1], [], []>} : vector<1x64xf32>, vector<64x256xf32>, vector<1x256xf32> -> vector<1x256xf32>
    %651 = arith.addf %649, %650 : vector<1x256xf32>
    %652 = vector.extract_strided_slice %651 {offsets = [0, 0], sizes = [1, 64], strides = [1, 1]} : vector<1x256xf32> to vector<1x64xf32>
    %653 = arith.negf %652 : vector<1x64xf32>
    %654 = math.exp %653 : vector<1x64xf32>
    %cst_263 = arith.constant 1.000000e+00 : f32
    %655 = vector.broadcast %cst_263 : f32 to vector<1x64xf32>
    %656 = arith.addf %655, %654 : vector<1x64xf32>
    %657 = arith.divf %655, %656 : vector<1x64xf32>
    %658 = vector.extract_strided_slice %651 {offsets = [0, 64], sizes = [1, 64], strides = [1, 1]} : vector<1x256xf32> to vector<1x64xf32>
    %659 = arith.negf %658 : vector<1x64xf32>
    %660 = math.exp %659 : vector<1x64xf32>
    %cst_264 = arith.constant 1.000000e+00 : f32
    %661 = vector.broadcast %cst_264 : f32 to vector<1x64xf32>
    %662 = arith.addf %661, %660 : vector<1x64xf32>
    %663 = arith.divf %661, %662 : vector<1x64xf32>
    %664 = vector.extract_strided_slice %651 {offsets = [0, 128], sizes = [1, 64], strides = [1, 1]} : vector<1x256xf32> to vector<1x64xf32>
    %665 = math.tanh %664 : vector<1x64xf32>
    %666 = vector.extract_strided_slice %651 {offsets = [0, 192], sizes = [1, 64], strides = [1, 1]} : vector<1x256xf32> to vector<1x64xf32>
    %667 = arith.negf %666 : vector<1x64xf32>
    %668 = math.exp %667 : vector<1x64xf32>
    %cst_265 = arith.constant 1.000000e+00 : f32
    %669 = vector.broadcast %cst_265 : f32 to vector<1x64xf32>
    %670 = arith.addf %669, %668 : vector<1x64xf32>
    %671 = arith.divf %669, %670 : vector<1x64xf32>
    %672 = arith.mulf %663, %616 : vector<1x64xf32>
    %673 = arith.mulf %657, %665 : vector<1x64xf32>
    %674 = arith.addf %672, %673 : vector<1x64xf32>
    %675 = math.tanh %674 : vector<1x64xf32>
    %676 = arith.mulf %671, %675 : vector<1x64xf32>
    %677 = arith.addf %619, %676 : vector<1x64xf32>
    %678 = vector.extract_strided_slice %294 {offsets = [6, 0], sizes = [1, 256], strides = [1, 1]} : vector<10x256xf32> to vector<1x256xf32>
    %cst_266 = arith.constant dense<0.000000e+00> : vector<1x256xf32>
    %679 = tpu.matmul %647, %1, %cst_266 {dimension_numbers = #tpu.dot_dimension_numbers<[1], [0], [0], [1], [0, 0, 1, 1], [], []>} : vector<1x64xf32>, vector<64x256xf32>, vector<1x256xf32> -> vector<1x256xf32>
    %680 = arith.addf %678, %679 : vector<1x256xf32>
    %681 = vector.extract_strided_slice %680 {offsets = [0, 0], sizes = [1, 64], strides = [1, 1]} : vector<1x256xf32> to vector<1x64xf32>
    %682 = arith.negf %681 : vector<1x64xf32>
    %683 = math.exp %682 : vector<1x64xf32>
    %cst_267 = arith.constant 1.000000e+00 : f32
    %684 = vector.broadcast %cst_267 : f32 to vector<1x64xf32>
    %685 = arith.addf %684, %683 : vector<1x64xf32>
    %686 = arith.divf %684, %685 : vector<1x64xf32>
    %687 = vector.extract_strided_slice %680 {offsets = [0, 64], sizes = [1, 64], strides = [1, 1]} : vector<1x256xf32> to vector<1x64xf32>
    %688 = arith.negf %687 : vector<1x64xf32>
    %689 = math.exp %688 : vector<1x64xf32>
    %cst_268 = arith.constant 1.000000e+00 : f32
    %690 = vector.broadcast %cst_268 : f32 to vector<1x64xf32>
    %691 = arith.addf %690, %689 : vector<1x64xf32>
    %692 = arith.divf %690, %691 : vector<1x64xf32>
    %693 = vector.extract_strided_slice %680 {offsets = [0, 128], sizes = [1, 64], strides = [1, 1]} : vector<1x256xf32> to vector<1x64xf32>
    %694 = math.tanh %693 : vector<1x64xf32>
    %695 = vector.extract_strided_slice %680 {offsets = [0, 192], sizes = [1, 64], strides = [1, 1]} : vector<1x256xf32> to vector<1x64xf32>
    %696 = arith.negf %695 : vector<1x64xf32>
    %697 = math.exp %696 : vector<1x64xf32>
    %cst_269 = arith.constant 1.000000e+00 : f32
    %698 = vector.broadcast %cst_269 : f32 to vector<1x64xf32>
    %699 = arith.addf %698, %697 : vector<1x64xf32>
    %700 = arith.divf %698, %699 : vector<1x64xf32>
    %701 = arith.mulf %692, %645 : vector<1x64xf32>
    %702 = arith.mulf %686, %694 : vector<1x64xf32>
    %703 = arith.addf %701, %702 : vector<1x64xf32>
    %704 = math.tanh %703 : vector<1x64xf32>
    %705 = arith.mulf %700, %704 : vector<1x64xf32>
    %706 = arith.addf %648, %705 : vector<1x64xf32>
    %707 = vector.extract_strided_slice %148 {offsets = [7, 0], sizes = [1, 256], strides = [1, 1]} : vector<10x256xf32> to vector<1x256xf32>
    %cst_270 = arith.constant dense<0.000000e+00> : vector<1x256xf32>
    %708 = tpu.matmul %676, %1, %cst_270 {dimension_numbers = #tpu.dot_dimension_numbers<[1], [0], [0], [1], [0, 0, 1, 1], [], []>} : vector<1x64xf32>, vector<64x256xf32>, vector<1x256xf32> -> vector<1x256xf32>
    %709 = arith.addf %707, %708 : vector<1x256xf32>
    %710 = vector.extract_strided_slice %709 {offsets = [0, 0], sizes = [1, 64], strides = [1, 1]} : vector<1x256xf32> to vector<1x64xf32>
    %711 = arith.negf %710 : vector<1x64xf32>
    %712 = math.exp %711 : vector<1x64xf32>
    %cst_271 = arith.constant 1.000000e+00 : f32
    %713 = vector.broadcast %cst_271 : f32 to vector<1x64xf32>
    %714 = arith.addf %713, %712 : vector<1x64xf32>
    %715 = arith.divf %713, %714 : vector<1x64xf32>
    %716 = vector.extract_strided_slice %709 {offsets = [0, 64], sizes = [1, 64], strides = [1, 1]} : vector<1x256xf32> to vector<1x64xf32>
    %717 = arith.negf %716 : vector<1x64xf32>
    %718 = math.exp %717 : vector<1x64xf32>
    %cst_272 = arith.constant 1.000000e+00 : f32
    %719 = vector.broadcast %cst_272 : f32 to vector<1x64xf32>
    %720 = arith.addf %719, %718 : vector<1x64xf32>
    %721 = arith.divf %719, %720 : vector<1x64xf32>
    %722 = vector.extract_strided_slice %709 {offsets = [0, 128], sizes = [1, 64], strides = [1, 1]} : vector<1x256xf32> to vector<1x64xf32>
    %723 = math.tanh %722 : vector<1x64xf32>
    %724 = vector.extract_strided_slice %709 {offsets = [0, 192], sizes = [1, 64], strides = [1, 1]} : vector<1x256xf32> to vector<1x64xf32>
    %725 = arith.negf %724 : vector<1x64xf32>
    %726 = math.exp %725 : vector<1x64xf32>
    %cst_273 = arith.constant 1.000000e+00 : f32
    %727 = vector.broadcast %cst_273 : f32 to vector<1x64xf32>
    %728 = arith.addf %727, %726 : vector<1x64xf32>
    %729 = arith.divf %727, %728 : vector<1x64xf32>
    %730 = arith.mulf %721, %674 : vector<1x64xf32>
    %731 = arith.mulf %715, %723 : vector<1x64xf32>
    %732 = arith.addf %730, %731 : vector<1x64xf32>
    %733 = math.tanh %732 : vector<1x64xf32>
    %734 = arith.mulf %729, %733 : vector<1x64xf32>
    %735 = arith.addf %677, %734 : vector<1x64xf32>
    %736 = vector.extract_strided_slice %294 {offsets = [7, 0], sizes = [1, 256], strides = [1, 1]} : vector<10x256xf32> to vector<1x256xf32>
    %cst_274 = arith.constant dense<0.000000e+00> : vector<1x256xf32>
    %737 = tpu.matmul %705, %1, %cst_274 {dimension_numbers = #tpu.dot_dimension_numbers<[1], [0], [0], [1], [0, 0, 1, 1], [], []>} : vector<1x64xf32>, vector<64x256xf32>, vector<1x256xf32> -> vector<1x256xf32>
    %738 = arith.addf %736, %737 : vector<1x256xf32>
    %739 = vector.extract_strided_slice %738 {offsets = [0, 0], sizes = [1, 64], strides = [1, 1]} : vector<1x256xf32> to vector<1x64xf32>
    %740 = arith.negf %739 : vector<1x64xf32>
    %741 = math.exp %740 : vector<1x64xf32>
    %cst_275 = arith.constant 1.000000e+00 : f32
    %742 = vector.broadcast %cst_275 : f32 to vector<1x64xf32>
    %743 = arith.addf %742, %741 : vector<1x64xf32>
    %744 = arith.divf %742, %743 : vector<1x64xf32>
    %745 = vector.extract_strided_slice %738 {offsets = [0, 64], sizes = [1, 64], strides = [1, 1]} : vector<1x256xf32> to vector<1x64xf32>
    %746 = arith.negf %745 : vector<1x64xf32>
    %747 = math.exp %746 : vector<1x64xf32>
    %cst_276 = arith.constant 1.000000e+00 : f32
    %748 = vector.broadcast %cst_276 : f32 to vector<1x64xf32>
    %749 = arith.addf %748, %747 : vector<1x64xf32>
    %750 = arith.divf %748, %749 : vector<1x64xf32>
    %751 = vector.extract_strided_slice %738 {offsets = [0, 128], sizes = [1, 64], strides = [1, 1]} : vector<1x256xf32> to vector<1x64xf32>
    %752 = math.tanh %751 : vector<1x64xf32>
    %753 = vector.extract_strided_slice %738 {offsets = [0, 192], sizes = [1, 64], strides = [1, 1]} : vector<1x256xf32> to vector<1x64xf32>
    %754 = arith.negf %753 : vector<1x64xf32>
    %755 = math.exp %754 : vector<1x64xf32>
    %cst_277 = arith.constant 1.000000e+00 : f32
    %756 = vector.broadcast %cst_277 : f32 to vector<1x64xf32>
    %757 = arith.addf %756, %755 : vector<1x64xf32>
    %758 = arith.divf %756, %757 : vector<1x64xf32>
    %759 = arith.mulf %750, %703 : vector<1x64xf32>
    %760 = arith.mulf %744, %752 : vector<1x64xf32>
    %761 = arith.addf %759, %760 : vector<1x64xf32>
    %762 = math.tanh %761 : vector<1x64xf32>
    %763 = arith.mulf %758, %762 : vector<1x64xf32>
    %764 = arith.addf %706, %763 : vector<1x64xf32>
    %765 = vector.extract_strided_slice %148 {offsets = [8, 0], sizes = [1, 256], strides = [1, 1]} : vector<10x256xf32> to vector<1x256xf32>
    %cst_278 = arith.constant dense<0.000000e+00> : vector<1x256xf32>
    %766 = tpu.matmul %734, %1, %cst_278 {dimension_numbers = #tpu.dot_dimension_numbers<[1], [0], [0], [1], [0, 0, 1, 1], [], []>} : vector<1x64xf32>, vector<64x256xf32>, vector<1x256xf32> -> vector<1x256xf32>
    %767 = arith.addf %765, %766 : vector<1x256xf32>
    %768 = vector.extract_strided_slice %767 {offsets = [0, 0], sizes = [1, 64], strides = [1, 1]} : vector<1x256xf32> to vector<1x64xf32>
    %769 = arith.negf %768 : vector<1x64xf32>
    %770 = math.exp %769 : vector<1x64xf32>
    %cst_279 = arith.constant 1.000000e+00 : f32
    %771 = vector.broadcast %cst_279 : f32 to vector<1x64xf32>
    %772 = arith.addf %771, %770 : vector<1x64xf32>
    %773 = arith.divf %771, %772 : vector<1x64xf32>
    %774 = vector.extract_strided_slice %767 {offsets = [0, 64], sizes = [1, 64], strides = [1, 1]} : vector<1x256xf32> to vector<1x64xf32>
    %775 = arith.negf %774 : vector<1x64xf32>
    %776 = math.exp %775 : vector<1x64xf32>
    %cst_280 = arith.constant 1.000000e+00 : f32
    %777 = vector.broadcast %cst_280 : f32 to vector<1x64xf32>
    %778 = arith.addf %777, %776 : vector<1x64xf32>
    %779 = arith.divf %777, %778 : vector<1x64xf32>
    %780 = vector.extract_strided_slice %767 {offsets = [0, 128], sizes = [1, 64], strides = [1, 1]} : vector<1x256xf32> to vector<1x64xf32>
    %781 = math.tanh %780 : vector<1x64xf32>
    %782 = vector.extract_strided_slice %767 {offsets = [0, 192], sizes = [1, 64], strides = [1, 1]} : vector<1x256xf32> to vector<1x64xf32>
    %783 = arith.negf %782 : vector<1x64xf32>
    %784 = math.exp %783 : vector<1x64xf32>
    %cst_281 = arith.constant 1.000000e+00 : f32
    %785 = vector.broadcast %cst_281 : f32 to vector<1x64xf32>
    %786 = arith.addf %785, %784 : vector<1x64xf32>
    %787 = arith.divf %785, %786 : vector<1x64xf32>
    %788 = arith.mulf %779, %732 : vector<1x64xf32>
    %789 = arith.mulf %773, %781 : vector<1x64xf32>
    %790 = arith.addf %788, %789 : vector<1x64xf32>
    %791 = math.tanh %790 : vector<1x64xf32>
    %792 = arith.mulf %787, %791 : vector<1x64xf32>
    %793 = arith.addf %735, %792 : vector<1x64xf32>
    %794 = vector.extract_strided_slice %294 {offsets = [8, 0], sizes = [1, 256], strides = [1, 1]} : vector<10x256xf32> to vector<1x256xf32>
    %cst_282 = arith.constant dense<0.000000e+00> : vector<1x256xf32>
    %795 = tpu.matmul %763, %1, %cst_282 {dimension_numbers = #tpu.dot_dimension_numbers<[1], [0], [0], [1], [0, 0, 1, 1], [], []>} : vector<1x64xf32>, vector<64x256xf32>, vector<1x256xf32> -> vector<1x256xf32>
    %796 = arith.addf %794, %795 : vector<1x256xf32>
    %797 = vector.extract_strided_slice %796 {offsets = [0, 0], sizes = [1, 64], strides = [1, 1]} : vector<1x256xf32> to vector<1x64xf32>
    %798 = arith.negf %797 : vector<1x64xf32>
    %799 = math.exp %798 : vector<1x64xf32>
    %cst_283 = arith.constant 1.000000e+00 : f32
    %800 = vector.broadcast %cst_283 : f32 to vector<1x64xf32>
    %801 = arith.addf %800, %799 : vector<1x64xf32>
    %802 = arith.divf %800, %801 : vector<1x64xf32>
    %803 = vector.extract_strided_slice %796 {offsets = [0, 64], sizes = [1, 64], strides = [1, 1]} : vector<1x256xf32> to vector<1x64xf32>
    %804 = arith.negf %803 : vector<1x64xf32>
    %805 = math.exp %804 : vector<1x64xf32>
    %cst_284 = arith.constant 1.000000e+00 : f32
    %806 = vector.broadcast %cst_284 : f32 to vector<1x64xf32>
    %807 = arith.addf %806, %805 : vector<1x64xf32>
    %808 = arith.divf %806, %807 : vector<1x64xf32>
    %809 = vector.extract_strided_slice %796 {offsets = [0, 128], sizes = [1, 64], strides = [1, 1]} : vector<1x256xf32> to vector<1x64xf32>
    %810 = math.tanh %809 : vector<1x64xf32>
    %811 = vector.extract_strided_slice %796 {offsets = [0, 192], sizes = [1, 64], strides = [1, 1]} : vector<1x256xf32> to vector<1x64xf32>
    %812 = arith.negf %811 : vector<1x64xf32>
    %813 = math.exp %812 : vector<1x64xf32>
    %cst_285 = arith.constant 1.000000e+00 : f32
    %814 = vector.broadcast %cst_285 : f32 to vector<1x64xf32>
    %815 = arith.addf %814, %813 : vector<1x64xf32>
    %816 = arith.divf %814, %815 : vector<1x64xf32>
    %817 = arith.mulf %808, %761 : vector<1x64xf32>
    %818 = arith.mulf %802, %810 : vector<1x64xf32>
    %819 = arith.addf %817, %818 : vector<1x64xf32>
    %820 = math.tanh %819 : vector<1x64xf32>
    %821 = arith.mulf %816, %820 : vector<1x64xf32>
    %822 = arith.addf %764, %821 : vector<1x64xf32>
    %823 = vector.extract_strided_slice %148 {offsets = [9, 0], sizes = [1, 256], strides = [1, 1]} : vector<10x256xf32> to vector<1x256xf32>
    %cst_286 = arith.constant dense<0.000000e+00> : vector<1x256xf32>
    %824 = tpu.matmul %792, %1, %cst_286 {dimension_numbers = #tpu.dot_dimension_numbers<[1], [0], [0], [1], [0, 0, 1, 1], [], []>} : vector<1x64xf32>, vector<64x256xf32>, vector<1x256xf32> -> vector<1x256xf32>
    %825 = arith.addf %823, %824 : vector<1x256xf32>
    %826 = vector.extract_strided_slice %825 {offsets = [0, 0], sizes = [1, 64], strides = [1, 1]} : vector<1x256xf32> to vector<1x64xf32>
    %827 = arith.negf %826 : vector<1x64xf32>
    %828 = math.exp %827 : vector<1x64xf32>
    %cst_287 = arith.constant 1.000000e+00 : f32
    %829 = vector.broadcast %cst_287 : f32 to vector<1x64xf32>
    %830 = arith.addf %829, %828 : vector<1x64xf32>
    %831 = arith.divf %829, %830 : vector<1x64xf32>
    %832 = vector.extract_strided_slice %825 {offsets = [0, 64], sizes = [1, 64], strides = [1, 1]} : vector<1x256xf32> to vector<1x64xf32>
    %833 = arith.negf %832 : vector<1x64xf32>
    %834 = math.exp %833 : vector<1x64xf32>
    %cst_288 = arith.constant 1.000000e+00 : f32
    %835 = vector.broadcast %cst_288 : f32 to vector<1x64xf32>
    %836 = arith.addf %835, %834 : vector<1x64xf32>
    %837 = arith.divf %835, %836 : vector<1x64xf32>
    %838 = vector.extract_strided_slice %825 {offsets = [0, 128], sizes = [1, 64], strides = [1, 1]} : vector<1x256xf32> to vector<1x64xf32>
    %839 = math.tanh %838 : vector<1x64xf32>
    %840 = vector.extract_strided_slice %825 {offsets = [0, 192], sizes = [1, 64], strides = [1, 1]} : vector<1x256xf32> to vector<1x64xf32>
    %841 = arith.negf %840 : vector<1x64xf32>
    %842 = math.exp %841 : vector<1x64xf32>
    %cst_289 = arith.constant 1.000000e+00 : f32
    %843 = vector.broadcast %cst_289 : f32 to vector<1x64xf32>
    %844 = arith.addf %843, %842 : vector<1x64xf32>
    %845 = arith.divf %843, %844 : vector<1x64xf32>
    %846 = arith.mulf %837, %790 : vector<1x64xf32>
    %847 = arith.mulf %831, %839 : vector<1x64xf32>
    %848 = arith.addf %846, %847 : vector<1x64xf32>
    %849 = math.tanh %848 : vector<1x64xf32>
    %850 = arith.mulf %845, %849 : vector<1x64xf32>
    %851 = arith.addf %793, %850 : vector<1x64xf32>
    %852 = vector.extract_strided_slice %294 {offsets = [9, 0], sizes = [1, 256], strides = [1, 1]} : vector<10x256xf32> to vector<1x256xf32>
    %cst_290 = arith.constant dense<0.000000e+00> : vector<1x256xf32>
    %853 = tpu.matmul %821, %1, %cst_290 {dimension_numbers = #tpu.dot_dimension_numbers<[1], [0], [0], [1], [0, 0, 1, 1], [], []>} : vector<1x64xf32>, vector<64x256xf32>, vector<1x256xf32> -> vector<1x256xf32>
    %854 = arith.addf %852, %853 : vector<1x256xf32>
    %855 = vector.extract_strided_slice %854 {offsets = [0, 0], sizes = [1, 64], strides = [1, 1]} : vector<1x256xf32> to vector<1x64xf32>
    %856 = arith.negf %855 : vector<1x64xf32>
    %857 = math.exp %856 : vector<1x64xf32>
    %cst_291 = arith.constant 1.000000e+00 : f32
    %858 = vector.broadcast %cst_291 : f32 to vector<1x64xf32>
    %859 = arith.addf %858, %857 : vector<1x64xf32>
    %860 = arith.divf %858, %859 : vector<1x64xf32>
    %861 = vector.extract_strided_slice %854 {offsets = [0, 64], sizes = [1, 64], strides = [1, 1]} : vector<1x256xf32> to vector<1x64xf32>
    %862 = arith.negf %861 : vector<1x64xf32>
    %863 = math.exp %862 : vector<1x64xf32>
    %cst_292 = arith.constant 1.000000e+00 : f32
    %864 = vector.broadcast %cst_292 : f32 to vector<1x64xf32>
    %865 = arith.addf %864, %863 : vector<1x64xf32>
    %866 = arith.divf %864, %865 : vector<1x64xf32>
    %867 = vector.extract_strided_slice %854 {offsets = [0, 128], sizes = [1, 64], strides = [1, 1]} : vector<1x256xf32> to vector<1x64xf32>
    %868 = math.tanh %867 : vector<1x64xf32>
    %869 = vector.extract_strided_slice %854 {offsets = [0, 192], sizes = [1, 64], strides = [1, 1]} : vector<1x256xf32> to vector<1x64xf32>
    %870 = arith.negf %869 : vector<1x64xf32>
    %871 = math.exp %870 : vector<1x64xf32>
    %cst_293 = arith.constant 1.000000e+00 : f32
    %872 = vector.broadcast %cst_293 : f32 to vector<1x64xf32>
    %873 = arith.addf %872, %871 : vector<1x64xf32>
    %874 = arith.divf %872, %873 : vector<1x64xf32>
    %875 = arith.mulf %866, %819 : vector<1x64xf32>
    %876 = arith.mulf %860, %868 : vector<1x64xf32>
    %877 = arith.addf %875, %876 : vector<1x64xf32>
    %878 = math.tanh %877 : vector<1x64xf32>
    %879 = arith.mulf %874, %878 : vector<1x64xf32>
    %880 = arith.addf %822, %879 : vector<1x64xf32>
    %c0_294 = arith.constant 0 : index
    %c0_295 = arith.constant 0 : index
    %881 = vector.load %arg19[%c0_294, %c0_295] : memref<64x32xf32, #tpu.memory_space<vmem>>, vector<64x32xf32>
    %cst_296 = arith.constant dense<0.000000e+00> : vector<1x32xf32>
    %882 = tpu.matmul %851, %881, %cst_296 {dimension_numbers = #tpu.dot_dimension_numbers<[1], [0], [0], [1], [0, 0, 1, 1], [], []>} : vector<1x64xf32>, vector<64x32xf32>, vector<1x32xf32> -> vector<1x32xf32>
    %c0_297 = arith.constant 0 : index
    %c0_298 = arith.constant 0 : index
    %883 = vector.load %arg20[%c0_297, %c0_298] : memref<1x32xf32, #tpu.memory_space<vmem>>, vector<1x32xf32>
    %cst_299 = arith.constant 1.000000e+01 : f32
    %884 = vector.broadcast %cst_299 : f32 to vector<1x32xf32>
    %885 = arith.mulf %884, %883 : vector<1x32xf32>
    %886 = arith.addf %882, %885 : vector<1x32xf32>
    %c0_300 = arith.constant 0 : index
    %c0_301 = arith.constant 0 : index
    %887 = vector.load %arg19[%c0_300, %c0_301] : memref<64x32xf32, #tpu.memory_space<vmem>>, vector<64x32xf32>
    %cst_302 = arith.constant dense<0.000000e+00> : vector<1x32xf32>
    %888 = tpu.matmul %880, %887, %cst_302 {dimension_numbers = #tpu.dot_dimension_numbers<[1], [0], [0], [1], [0, 0, 1, 1], [], []>} : vector<1x64xf32>, vector<64x32xf32>, vector<1x32xf32> -> vector<1x32xf32>
    %c0_303 = arith.constant 0 : index
    %c0_304 = arith.constant 0 : index
    %889 = vector.load %arg20[%c0_303, %c0_304] : memref<1x32xf32, #tpu.memory_space<vmem>>, vector<1x32xf32>
    %cst_305 = arith.constant 1.000000e+01 : f32
    %890 = vector.broadcast %cst_305 : f32 to vector<1x32xf32>
    %891 = arith.mulf %890, %889 : vector<1x32xf32>
    %892 = arith.addf %888, %891 : vector<1x32xf32>
    %893 = arith.addf %886, %892 : vector<1x32xf32>
    %cst_306 = arith.constant 5.000000e-01 : f32
    %894 = vector.broadcast %cst_306 : f32 to vector<1x32xf32>
    %895 = arith.mulf %893, %894 : vector<1x32xf32>
    %896 = arith.subf %886, %895 : vector<1x32xf32>
    %897 = arith.mulf %896, %896 : vector<1x32xf32>
    %898 = arith.subf %892, %895 : vector<1x32xf32>
    %899 = arith.mulf %898, %898 : vector<1x32xf32>
    %900 = arith.addf %897, %899 : vector<1x32xf32>
    %cst_307 = arith.constant 5.000000e-01 : f32
    %901 = vector.broadcast %cst_307 : f32 to vector<1x32xf32>
    %902 = arith.mulf %900, %901 : vector<1x32xf32>
    %cst_308 = arith.constant 9.99999974E-6 : f32
    %903 = vector.broadcast %cst_308 : f32 to vector<1x32xf32>
    %904 = arith.addf %902, %903 : vector<1x32xf32>
    %905 = math.rsqrt %904 : vector<1x32xf32>
    %906 = arith.subf %886, %895 : vector<1x32xf32>
    %907 = arith.mulf %906, %905 : vector<1x32xf32>
    %c0_309 = arith.constant 0 : index
    %c0_310 = arith.constant 0 : index
    %908 = vector.load %arg21[%c0_309, %c0_310] : memref<1x32xf32, #tpu.memory_space<vmem>>, vector<1x32xf32>
    %909 = arith.mulf %907, %908 : vector<1x32xf32>
    %c0_311 = arith.constant 0 : index
    %c0_312 = arith.constant 0 : index
    %910 = vector.load %arg22[%c0_311, %c0_312] : memref<1x32xf32, #tpu.memory_space<vmem>>, vector<1x32xf32>
    %911 = arith.addf %909, %910 : vector<1x32xf32>
    %c0_313 = arith.constant 0 : index
    %c0_314 = arith.constant 0 : index
    %912 = vector.load %arg23[%c0_313, %c0_314] : memref<32x4xf32, #tpu.memory_space<vmem>>, vector<32x4xf32>
    %cst_315 = arith.constant dense<0.000000e+00> : vector<1x4xf32>
    %913 = tpu.matmul %911, %912, %cst_315 {dimension_numbers = #tpu.dot_dimension_numbers<[1], [0], [0], [1], [0, 0, 1, 1], [], []>} : vector<1x32xf32>, vector<32x4xf32>, vector<1x4xf32> -> vector<1x4xf32>
    %c0_316 = arith.constant 0 : index
    %c0_317 = arith.constant 0 : index
    %914 = vector.load %arg24[%c0_316, %c0_317] : memref<1x4xf32, #tpu.memory_space<vmem>>, vector<1x4xf32>
    %915 = arith.addf %913, %914 : vector<1x4xf32>
    %c0_318 = arith.constant 0 : index
    %c0_319 = arith.constant 0 : index
    %916 = vector.load %arg25[%c0_318, %c0_319] : memref<2x4xf32, #tpu.memory_space<vmem>>, vector<1x4xf32>
    tpu.vector_store %arg25[%c0_318, %c0_319], %915 {strides = array<i32>} : memref<2x4xf32, #tpu.memory_space<vmem>>, vector<1x4xf32>,
    %917 = arith.subf %892, %895 : vector<1x32xf32>
    %918 = arith.mulf %917, %905 : vector<1x32xf32>
    %c0_320 = arith.constant 0 : index
    %c0_321 = arith.constant 0 : index
    %919 = vector.load %arg21[%c0_320, %c0_321] : memref<1x32xf32, #tpu.memory_space<vmem>>, vector<1x32xf32>
    %920 = arith.mulf %918, %919 : vector<1x32xf32>
    %c0_322 = arith.constant 0 : index
    %c0_323 = arith.constant 0 : index
    %921 = vector.load %arg22[%c0_322, %c0_323] : memref<1x32xf32, #tpu.memory_space<vmem>>, vector<1x32xf32>
    %922 = arith.addf %920, %921 : vector<1x32xf32>
    %c0_324 = arith.constant 0 : index
    %c0_325 = arith.constant 0 : index
    %923 = vector.load %arg23[%c0_324, %c0_325] : memref<32x4xf32, #tpu.memory_space<vmem>>, vector<32x4xf32>
    %cst_326 = arith.constant dense<0.000000e+00> : vector<1x4xf32>
    %924 = tpu.matmul %922, %923, %cst_326 {dimension_numbers = #tpu.dot_dimension_numbers<[1], [0], [0], [1], [0, 0, 1, 1], [], []>} : vector<1x32xf32>, vector<32x4xf32>, vector<1x4xf32> -> vector<1x4xf32>
    %c0_327 = arith.constant 0 : index
    %c0_328 = arith.constant 0 : index
    %925 = vector.load %arg24[%c0_327, %c0_328] : memref<1x4xf32, #tpu.memory_space<vmem>>, vector<1x4xf32>
    %926 = arith.addf %924, %925 : vector<1x4xf32>
    %c1_329 = arith.constant 1 : index
    %c0_330 = arith.constant 0 : index
    %927 = vector.load %arg25[%c1_329, %c0_330] : memref<2x4xf32, #tpu.memory_space<vmem>>, vector<1x4xf32>
    tpu.vector_store %arg25[%c1_329, %c0_330], %926 {strides = array<i32>} : memref<2x4xf32, #tpu.memory_space<vmem>>, vector<1x4xf32>,
    return
  }
}

</mosaic_0001>

<llo_original>
// kernel: _lambda_.1
$region0: #{_lambda_.1}
  #allocation0 [shape = 'u32[]', space=smem, size = 0x4, offset = 0x4, fixed_abs, tag = 'smem constant byte address 0x4 - core index']
  #allocation1 [shape = 'u32[72,128]{1,0:T(1,128)}', space=vmem, size = 0x9000, scoped, tag = 'internal scratch']
  %s0 = inlined_call_operand.vmem [shape: f32[2,1,128], index: 0, kind: input, shape index: {}]
  %s1 = inlined_call_operand.hbm [shape: f32[3,12,1], index: 1, kind: input, shape index: {}]
  %s2 = inlined_call_operand.hbm [shape: f32[12,1], index: 2, kind: input, shape index: {}]
  %s3 = inlined_call_operand.hbm [shape: f32[3,12,12], index: 3, kind: input, shape index: {}]
  %s4 = inlined_call_operand.hbm [shape: f32[12,1], index: 4, kind: input, shape index: {}]
  %s5 = inlined_call_operand.hbm [shape: f32[121,61], index: 5, kind: input, shape index: {}]
  %s6 = inlined_call_operand.hbm [shape: f32[3,24,12], index: 6, kind: input, shape index: {}]
  %s7 = inlined_call_operand.hbm [shape: f32[24,1], index: 7, kind: input, shape index: {}]
  %s8 = inlined_call_operand.hbm [shape: f32[3,24,24], index: 8, kind: input, shape index: {}]
  %s9 = inlined_call_operand.hbm [shape: f32[24,1], index: 9, kind: input, shape index: {}]
  %s10 = inlined_call_operand.hbm [shape: f32[54,27], index: 10, kind: input, shape index: {}]
  %s11 = inlined_call_operand.hbm [shape: f32[3,36,24], index: 11, kind: input, shape index: {}]
  %s12 = inlined_call_operand.hbm [shape: f32[36,1], index: 12, kind: input, shape index: {}]
  %s13 = inlined_call_operand.hbm [shape: f32[3,36,36], index: 13, kind: input, shape index: {}]
  %s14 = inlined_call_operand.hbm [shape: f32[36,1], index: 14, kind: input, shape index: {}]
  %s15 = inlined_call_operand.hbm [shape: f32[10,20], index: 15, kind: input, shape index: {}]
  %s16 = inlined_call_operand.hbm [shape: f32[36,256], index: 16, kind: input, shape index: {}]
  %s17 = inlined_call_operand.hbm [shape: f32[64,256], index: 17, kind: input, shape index: {}]
  %s18 = inlined_call_operand.vmem [shape: f32[1,256], index: 18, kind: input, shape index: {}]
  %s19 = inlined_call_operand.hbm [shape: f32[64,32], index: 19, kind: input, shape index: {}]
  %s20 = inlined_call_operand.vmem [shape: f32[1,32], index: 20, kind: input, shape index: {}]
  %s21 = inlined_call_operand.vmem [shape: f32[1,32], index: 21, kind: input, shape index: {}]
  %s22 = inlined_call_operand.vmem [shape: f32[1,32], index: 22, kind: input, shape index: {}]
  %s23 = inlined_call_operand.hbm [shape: f32[32,4], index: 23, kind: input, shape index: {}]
  %s24 = inlined_call_operand.vmem [shape: f32[1,4], index: 24, kind: input, shape index: {}]
  %s25 = inlined_call_operand.hbm [shape: f32[2,4], index: 25, kind: output, shape index: {}]
  %s26 = sld [smem:[#allocation0]]
  $region186: #{_lambda_.1} parent=0
    _
  %s28 = ssub.s32 1, %s26
  %s29 = scalar_select 0, %s28, %s26
  $region1: #{_lambda_.1} parent=0
    #allocation2 [shape = 'u8[24576]{0}', space=vmem, size = 0x6000, scoped, tag = 'input window, operand 1, single buffered']
    #allocation3 [shape = 's32[1]{0}', space=sflag, size = 0x4, scoped, tag = 'scoped memory for _lambda_.1']
    #allocation4 [shape = 's32[1]{0}', space=sflag, size = 0x4, scoped, tag = 'scoped memory for _lambda_.1']
    #allocation5 [shape = 'u8[8192]{0}', space=vmem, size = 0x2000, scoped, tag = 'input window, operand 2, single buffered']
    #allocation6 [shape = 's32[1]{0}', space=sflag, size = 0x4, scoped, tag = 'scoped memory for _lambda_.1']
    #allocation7 [shape = 'u8[24576]{0}', space=vmem, size = 0x6000, scoped, tag = 'input window, operand 3, single buffered']
    #allocation8 [shape = 'u8[8192]{0}', space=vmem, size = 0x2000, scoped, tag = 'input window, operand 4, single buffered']
    #allocation9 [shape = 's32[1]{0}', space=sflag, size = 0x4, scoped, tag = 'scoped memory for _lambda_.1']
    #allocation10 [shape = 'u8[65536]{0}', space=vmem, size = 0x10000, scoped, tag = 'input window, operand 5, single buffered']
    #allocation11 [shape = 'u8[36864]{0}', space=vmem, size = 0x9000, scoped, tag = 'input window, operand 6, single buffered']
    #allocation12 [shape = 's32[1]{0}', space=sflag, size = 0x4, scoped, tag = 'scoped memory for _lambda_.1']
    #allocation13 [shape = 'u8[12288]{0}', space=vmem, size = 0x3000, scoped, tag = 'input window, operand 7, single buffered']
    #allocation14 [shape = 'u8[36864]{0}', space=vmem, size = 0x9000, scoped, tag = 'input window, operand 8, single buffered']
    #allocation15 [shape = 's32[1]{0}', space=sflag, size = 0x4, scoped, tag = 'scoped memory for _lambda_.1']
    #allocation16 [shape = 'u8[12288]{0}', space=vmem, size = 0x3000, scoped, tag = 'input window, operand 9, single buffered']
    #allocation17 [shape = 'u8[28672]{0}', space=vmem, size = 0x7000, scoped, tag = 'input window, operand 10, single buffered']
    #allocation18 [shape = 's32[1]{0}', space=sflag, size = 0x4, scoped, tag = 'scoped memory for _lambda_.1']
    #allocation19 [shape = 'u8[61440]{0}', space=vmem, size = 0xf000, scoped, tag = 'input window, operand 11, single buffered']
    #allocation20 [shape = 'u8[20480]{0}', space=vmem, size = 0x5000, scoped, tag = 'input window, operand 12, single buffered']
    #allocation21 [shape = 's32[1]{0}', space=sflag, size = 0x4, scoped, tag = 'scoped memory for _lambda_.1']
    #allocation22 [shape = 'u8[61440]{0}', space=vmem, size = 0xf000, scoped, tag = 'input window, operand 13, single buffered']
    #allocation23 [shape = 'u8[20480]{0}', space=vmem, size = 0x5000, scoped, tag = 'input window, operand 14, single buffered']
    #allocation24 [shape = 's32[1]{0}', space=sflag, size = 0x4, scoped, tag = 'scoped memory for _lambda_.1']
    #allocation25 [shape = 'u8[8192]{0}', space=vmem, size = 0x2000, scoped, tag = 'input window, operand 15, single buffered']
    #allocation26 [shape = 'u8[40960]{0}', space=vmem, size = 0xa000, scoped, tag = 'input window, operand 16, single buffered']
    #allocation27 [shape = 's32[1]{0}', space=sflag, size = 0x4, scoped, tag = 'scoped memory for _lambda_.1']
    #allocation28 [shape = 'u8[65536]{0}', space=vmem, size = 0x10000, scoped, tag = 'input window, operand 17, single buffered']
    #allocation29 [shape = 'u8[32768]{0}', space=vmem, size = 0x8000, scoped, tag = 'input window, operand 19, single buffered']
    #allocation30 [shape = 's32[1]{0}', space=sflag, size = 0x4, scoped, tag = 'scoped memory for _lambda_.1']
    #allocation31 [shape = 'u8[16384]{0}', space=vmem, size = 0x4000, scoped, tag = 'input window, operand 23, single buffered']
    #allocation32 [shape = 'u8[1024]{0}', space=vmem, size = 0x400, scoped, tag = 'output window, operand 0, single buffered']
    %30 = vsyncpa [#allocation3], 0
    %31 = vsyncpa [#allocation6], 0
    %32 = vsyncpa [#allocation9], 0
    %33 = vsyncpa [#allocation12], 0
    %34 = vsyncpa [#allocation15], 0
    %35 = vsyncpa [#allocation18], 0
    %36 = vsyncpa [#allocation21], 0
    %37 = vsyncpa [#allocation24], 0
    %38 = vsyncpa [#allocation27], 0
    %39 = vsyncpa [#allocation30], 0
    %40 = vsyncpa [#allocation4], 0
    // Predicated region
    $region2: #{_lambda_.1} parent=1 // pred_check
      _
    $region3: #{_lambda_.1} parent=1 // pred_check_branch
      %42 = sbr.rel (0) target = $region5
    $region4: #{_lambda_.1} parent=1 // pred_region
      _
    $region5: #{_lambda_.1} parent=1 // pred_fallthru
      _
    // Predicated region
    $region6: #{_lambda_.1} parent=1 // pred_check
      _
    $region7: #{_lambda_.1} parent=1 // pred_check_branch
      %44 = sbr.rel (0) target = $region9
    $region8: #{_lambda_.1} parent=1 // pred_region
      %46 = vsyncadd [#allocation3], 0
      %s47 = sshll.u32 %s1, 4
      %s48 = int_to_ptr.hbm [resolvable:$true] %s47
      %s49 = sshll.u32 [#allocation2], 4
      %s50 = int_to_ptr.vmem [resolvable:$true] %s49
      %55 = dma.hbm_to_vmem [thread:$0]  %s48, 768, %s50, [#allocation3], 128, 128, 8
    $region9: #{_lambda_.1} parent=1 // pred_fallthru
      _
    // Predicated region
    $region10: #{_lambda_.1} parent=1 // pred_check
      _
    $region11: #{_lambda_.1} parent=1 // pred_check_branch
      %57 = sbr.rel (0) target = $region13
    $region12: #{_lambda_.1} parent=1 // pred_region
      %59 = vsyncadd [#allocation6], 0
      %s60 = sshll.u32 %s2, 4
      %s61 = int_to_ptr.hbm [resolvable:$true] %s60
      %s62 = sshll.u32 [#allocation5], 4
      %s63 = int_to_ptr.vmem [resolvable:$true] %s62
      %68 = dma.hbm_to_vmem [thread:$0]  %s61, 256, %s63, [#allocation6], 128, 128, 8
    $region13: #{_lambda_.1} parent=1 // pred_fallthru
      _
    // Predicated region
    $region14: #{_lambda_.1} parent=1 // pred_check
      _
    $region15: #{_lambda_.1} parent=1 // pred_check_branch
      %70 = sbr.rel (0) target = $region17
    $region16: #{_lambda_.1} parent=1 // pred_region
      %72 = vsyncadd [#allocation6], 0
      %s73 = sshll.u32 %s3, 4
      %s74 = int_to_ptr.hbm [resolvable:$true] %s73
      %s75 = sshll.u32 [#allocation7], 4
      %s76 = int_to_ptr.vmem [resolvable:$true] %s75
      %81 = dma.hbm_to_vmem [thread:$0]  %s74, 768, %s76, [#allocation6], 128, 128, 8
    $region17: #{_lambda_.1} parent=1 // pred_fallthru
      _
    // Predicated region
    $region18: #{_lambda_.1} parent=1 // pred_check
      _
    $region19: #{_lambda_.1} parent=1 // pred_check_branch
      %83 = sbr.rel (0) target = $region21
    $region20: #{_lambda_.1} parent=1 // pred_region
      %85 = vsyncadd [#allocation9], 0
      %s86 = sshll.u32 %s4, 4
      %s87 = int_to_ptr.hbm [resolvable:$true] %s86
      %s88 = sshll.u32 [#allocation8], 4
      %s89 = int_to_ptr.vmem [resolvable:$true] %s88
      %94 = dma.hbm_to_vmem [thread:$0]  %s87, 256, %s89, [#allocation9], 128, 128, 8
    $region21: #{_lambda_.1} parent=1 // pred_fallthru
      _
    // Predicated region
    $region22: #{_lambda_.1} parent=1 // pred_check
      _
    $region23: #{_lambda_.1} parent=1 // pred_check_branch
      %96 = sbr.rel (0) target = $region25
    $region24: #{_lambda_.1} parent=1 // pred_region
      %98 = vsyncadd [#allocation9], 0
      %s99 = sshll.u32 %s5, 4
      %s100 = int_to_ptr.hbm [resolvable:$true] %s99
      %s101 = sshll.u32 [#allocation10], 4
      %s102 = int_to_ptr.vmem [resolvable:$true] %s101
      %107 = dma.hbm_to_vmem [thread:$0]  %s100, 2048, %s102, [#allocation9], 128, 128, 8
    $region25: #{_lambda_.1} parent=1 // pred_fallthru
      _
    // Predicated region
    $region26: #{_lambda_.1} parent=1 // pred_check
      _
    $region27: #{_lambda_.1} parent=1 // pred_check_branch
      %109 = sbr.rel (0) target = $region29
    $region28: #{_lambda_.1} parent=1 // pred_region
      %111 = vsyncadd [#allocation12], 0
      %s112 = sshll.u32 %s6, 4
      %s113 = int_to_ptr.hbm [resolvable:$true] %s112
      %s114 = sshll.u32 [#allocation11], 4
      %s115 = int_to_ptr.vmem [resolvable:$true] %s114
      %120 = dma.hbm_to_vmem [thread:$0]  %s113, 1152, %s115, [#allocation12], 128, 128, 8
    $region29: #{_lambda_.1} parent=1 // pred_fallthru
      _
    // Predicated region
    $region30: #{_lambda_.1} parent=1 // pred_check
      _
    $region31: #{_lambda_.1} parent=1 // pred_check_branch
      %122 = sbr.rel (0) target = $region33
    $region32: #{_lambda_.1} parent=1 // pred_region
      %124 = vsyncadd [#allocation12], 0
      %s125 = sshll.u32 %s7, 4
      %s126 = int_to_ptr.hbm [resolvable:$true] %s125
      %s127 = sshll.u32 [#allocation13], 4
      %s128 = int_to_ptr.vmem [resolvable:$true] %s127
      %133 = dma.hbm_to_vmem [thread:$0]  %s126, 384, %s128, [#allocation12], 128, 128, 8
    $region33: #{_lambda_.1} parent=1 // pred_fallthru
      _
    // Predicated region
    $region34: #{_lambda_.1} parent=1 // pred_check
      _
    $region35: #{_lambda_.1} parent=1 // pred_check_branch
      %135 = sbr.rel (0) target = $region37
    $region36: #{_lambda_.1} parent=1 // pred_region
      %137 = vsyncadd [#allocation15], 0
      %s138 = sshll.u32 %s8, 4
      %s139 = int_to_ptr.hbm [resolvable:$true] %s138
      %s140 = sshll.u32 [#allocation14], 4
      %s141 = int_to_ptr.vmem [resolvable:$true] %s140
      %146 = dma.hbm_to_vmem [thread:$0]  %s139, 1152, %s141, [#allocation15], 128, 128, 8
    $region37: #{_lambda_.1} parent=1 // pred_fallthru
      _
    // Predicated region
    $region38: #{_lambda_.1} parent=1 // pred_check
      _
    $region39: #{_lambda_.1} parent=1 // pred_check_branch
      %148 = sbr.rel (0) target = $region41
    $region40: #{_lambda_.1} parent=1 // pred_region
      %150 = vsyncadd [#allocation15], 0
      %s151 = sshll.u32 %s9, 4
      %s152 = int_to_ptr.hbm [resolvable:$true] %s151
      %s153 = sshll.u32 [#allocation16], 4
      %s154 = int_to_ptr.vmem [resolvable:$true] %s153
      %159 = dma.hbm_to_vmem [thread:$0]  %s152, 384, %s154, [#allocation15], 128, 128, 8
    $region41: #{_lambda_.1} parent=1 // pred_fallthru
      _
    // Predicated region
    $region42: #{_lambda_.1} parent=1 // pred_check
      _
    $region43: #{_lambda_.1} parent=1 // pred_check_branch
      %161 = sbr.rel (0) target = $region45
    $region44: #{_lambda_.1} parent=1 // pred_region
      %163 = vsyncadd [#allocation18], 0
      %s164 = sshll.u32 %s10, 4
      %s165 = int_to_ptr.hbm [resolvable:$true] %s164
      %s166 = sshll.u32 [#allocation17], 4
      %s167 = int_to_ptr.vmem [resolvable:$true] %s166
      %172 = dma.hbm_to_vmem [thread:$0]  %s165, 896, %s167, [#allocation18], 128, 128, 8
    $region45: #{_lambda_.1} parent=1 // pred_fallthru
      _
    // Predicated region
    $region46: #{_lambda_.1} parent=1 // pred_check
      _
    $region47: #{_lambda_.1} parent=1 // pred_check_branch
      %174 = sbr.rel (0) target = $region49
    $region48: #{_lambda_.1} parent=1 // pred_region
      %176 = vsyncadd [#allocation18], 0
      %s177 = sshll.u32 %s11, 4
      %s178 = int_to_ptr.hbm [resolvable:$true] %s177
      %s179 = sshll.u32 [#allocation19], 4
      %s180 = int_to_ptr.vmem [resolvable:$true] %s179
      %185 = dma.hbm_to_vmem [thread:$0]  %s178, 1920, %s180, [#allocation18], 128, 128, 8
    $region49: #{_lambda_.1} parent=1 // pred_fallthru
      _
    // Predicated region
    $region50: #{_lambda_.1} parent=1 // pred_check
      _
    $region51: #{_lambda_.1} parent=1 // pred_check_branch
      %187 = sbr.rel (0) target = $region53
    $region52: #{_lambda_.1} parent=1 // pred_region
      %189 = vsyncadd [#allocation21], 0
      %s190 = sshll.u32 %s12, 4
      %s191 = int_to_ptr.hbm [resolvable:$true] %s190
      %s192 = sshll.u32 [#allocation20], 4
      %s193 = int_to_ptr.vmem [resolvable:$true] %s192
      %198 = dma.hbm_to_vmem [thread:$0]  %s191, 640, %s193, [#allocation21], 128, 128, 8
    $region53: #{_lambda_.1} parent=1 // pred_fallthru
      _
    // Predicated region
    $region54: #{_lambda_.1} parent=1 // pred_check
      _
    $region55: #{_lambda_.1} parent=1 // pred_check_branch
      %200 = sbr.rel (0) target = $region57
    $region56: #{_lambda_.1} parent=1 // pred_region
      %202 = vsyncadd [#allocation21], 0
      %s203 = sshll.u32 %s13, 4
      %s204 = int_to_ptr.hbm [resolvable:$true] %s203
      %s205 = sshll.u32 [#allocation22], 4
      %s206 = int_to_ptr.vmem [resolvable:$true] %s205
      %211 = dma.hbm_to_vmem [thread:$0]  %s204, 1920, %s206, [#allocation21], 128, 128, 8
    $region57: #{_lambda_.1} parent=1 // pred_fallthru
      _
    // Predicated region
    $region58: #{_lambda_.1} parent=1 // pred_check
      _
    $region59: #{_lambda_.1} parent=1 // pred_check_branch
      %213 = sbr.rel (0) target = $region61
    $region60: #{_lambda_.1} parent=1 // pred_region
      %215 = vsyncadd [#allocation24], 0
      %s216 = sshll.u32 %s14, 4
      %s217 = int_to_ptr.hbm [resolvable:$true] %s216
      %s218 = sshll.u32 [#allocation23], 4
      %s219 = int_to_ptr.vmem [resolvable:$true] %s218
      %224 = dma.hbm_to_vmem [thread:$0]  %s217, 640, %s219, [#allocation24], 128, 128, 8
    $region61: #{_lambda_.1} parent=1 // pred_fallthru
      _
    // Predicated region
    $region62: #{_lambda_.1} parent=1 // pred_check
      _
    $region63: #{_lambda_.1} parent=1 // pred_check_branch
      %226 = sbr.rel (0) target = $region65
    $region64: #{_lambda_.1} parent=1 // pred_region
      %228 = vsyncadd [#allocation24], 0
      %s229 = sshll.u32 %s15, 4
      %s230 = int_to_ptr.hbm [resolvable:$true] %s229
      %s231 = sshll.u32 [#allocation25], 4
      %s232 = int_to_ptr.vmem [resolvable:$true] %s231
      %237 = dma.hbm_to_vmem [thread:$0]  %s230, 256, %s232, [#allocation24], 128, 128, 8
    $region65: #{_lambda_.1} parent=1 // pred_fallthru
      _
    // Predicated region
    $region66: #{_lambda_.1} parent=1 // pred_check
      _
    $region67: #{_lambda_.1} parent=1 // pred_check_branch
      %239 = sbr.rel (0) target = $region69
    $region68: #{_lambda_.1} parent=1 // pred_region
      %241 = vsyncadd [#allocation27], 0
      %s242 = sshll.u32 %s16, 4
      %s243 = int_to_ptr.hbm [resolvable:$true] %s242
      %s244 = sshll.u32 [#allocation26], 4
      %s245 = int_to_ptr.vmem [resolvable:$true] %s244
      %250 = dma.hbm_to_vmem [thread:$0]  %s243, 1280, %s245, [#allocation27], 256, 256, 16
    $region69: #{_lambda_.1} parent=1 // pred_fallthru
      _
    // Predicated region
    $region70: #{_lambda_.1} parent=1 // pred_check
      _
    $region71: #{_lambda_.1} parent=1 // pred_check_branch
      %252 = sbr.rel (0) target = $region73
    $region72: #{_lambda_.1} parent=1 // pred_region
      %254 = vsyncadd [#allocation27], 0
      %s255 = sshll.u32 %s17, 4
      %s256 = int_to_ptr.hbm [resolvable:$true] %s255
      %s257 = sshll.u32 [#allocation28], 4
      %s258 = int_to_ptr.vmem [resolvable:$true] %s257
      %263 = dma.hbm_to_vmem [thread:$0]  %s256, 2048, %s258, [#allocation27], 256, 256, 16
    $region73: #{_lambda_.1} parent=1 // pred_fallthru
      _
    // Predicated region
    $region74: #{_lambda_.1} parent=1 // pred_check
      _
    $region75: #{_lambda_.1} parent=1 // pred_check_branch
      %265 = sbr.rel (0) target = $region77
    $region76: #{_lambda_.1} parent=1 // pred_region
      _
    $region77: #{_lambda_.1} parent=1 // pred_fallthru
      _
    // Predicated region
    $region78: #{_lambda_.1} parent=1 // pred_check
      _
    $region79: #{_lambda_.1} parent=1 // pred_check_branch
      %267 = sbr.rel (0) target = $region81
    $region80: #{_lambda_.1} parent=1 // pred_region
      %269 = vsyncadd [#allocation30], 0
      %s270 = sshll.u32 %s19, 4
      %s271 = int_to_ptr.hbm [resolvable:$true] %s270
      %s272 = sshll.u32 [#allocation29], 4
      %s273 = int_to_ptr.vmem [resolvable:$true] %s272
      %278 = dma.hbm_to_vmem [thread:$0]  %s271, 1024, %s273, [#allocation30], 128, 128, 8
    $region81: #{_lambda_.1} parent=1 // pred_fallthru
      _
    // Predicated region
    $region82: #{_lambda_.1} parent=1 // pred_check
      _
    $region83: #{_lambda_.1} parent=1 // pred_check_branch
      %280 = sbr.rel (0) target = $region85
    $region84: #{_lambda_.1} parent=1 // pred_region
      _
    $region85: #{_lambda_.1} parent=1 // pred_fallthru
      _
    // Predicated region
    $region86: #{_lambda_.1} parent=1 // pred_check
      _
    $region87: #{_lambda_.1} parent=1 // pred_check_branch
      %282 = sbr.rel (0) target = $region89
    $region88: #{_lambda_.1} parent=1 // pred_region
      _
    $region89: #{_lambda_.1} parent=1 // pred_fallthru
      _
    // Predicated region
    $region90: #{_lambda_.1} parent=1 // pred_check
      _
    $region91: #{_lambda_.1} parent=1 // pred_check_branch
      %284 = sbr.rel (0) target = $region93
    $region92: #{_lambda_.1} parent=1 // pred_region
      _
    $region93: #{_lambda_.1} parent=1 // pred_fallthru
      _
    // Predicated region
    $region94: #{_lambda_.1} parent=1 // pred_check
      _
    $region95: #{_lambda_.1} parent=1 // pred_check_branch
      %286 = sbr.rel (0) target = $region97
    $region96: #{_lambda_.1} parent=1 // pred_region
      %288 = vsyncadd [#allocation30], 0
      %s289 = sshll.u32 %s23, 4
      %s290 = int_to_ptr.hbm [resolvable:$true] %s289
      %s291 = sshll.u32 [#allocation31], 4
      %s292 = int_to_ptr.vmem [resolvable:$true] %s291
      %297 = dma.hbm_to_vmem [thread:$0]  %s290, 512, %s292, [#allocation30], 128, 128, 8
    $region97: #{_lambda_.1} parent=1 // pred_fallthru
      _
    // Predicated region
    $region98: #{_lambda_.1} parent=1 // pred_check
      _
    $region99: #{_lambda_.1} parent=1 // pred_check_branch
      %299 = sbr.rel (0) target = $region101
    $region100: #{_lambda_.1} parent=1 // pred_region
      _
    $region101: #{_lambda_.1} parent=1 // pred_fallthru
      _
    // Predicated region
    $region102: #{_lambda_.1} parent=1 // pred_check
      _
    $region103: #{_lambda_.1} parent=1 // pred_check_branch
      %301 = sbr.rel (0) target = $region105
    $region104: #{_lambda_.1} parent=1 // pred_region
      %303 = dma.done [#allocation3], 768
    $region105: #{_lambda_.1} parent=1 // pred_fallthru
      _
    // Predicated region
    $region106: #{_lambda_.1} parent=1 // pred_check
      _
    $region107: #{_lambda_.1} parent=1 // pred_check_branch
      %305 = sbr.rel (0) target = $region109
    $region108: #{_lambda_.1} parent=1 // pred_region
      %307 = dma.done [#allocation6], 256
    $region109: #{_lambda_.1} parent=1 // pred_fallthru
      _
    // Predicated region
    $region110: #{_lambda_.1} parent=1 // pred_check
      _
    $region111: #{_lambda_.1} parent=1 // pred_check_branch
      %309 = sbr.rel (0) target = $region113
    $region112: #{_lambda_.1} parent=1 // pred_region
      %311 = dma.done [#allocation6], 768
    $region113: #{_lambda_.1} parent=1 // pred_fallthru
      _
    // Predicated region
    $region114: #{_lambda_.1} parent=1 // pred_check
      _
    $region115: #{_lambda_.1} parent=1 // pred_check_branch
      %313 = sbr.rel (0) target = $region117
    $region116: #{_lambda_.1} parent=1 // pred_region
      %315 = dma.done [#allocation9], 256
    $region117: #{_lambda_.1} parent=1 // pred_fallthru
      _
    // Predicated region
    $region118: #{_lambda_.1} parent=1 // pred_check
      _
    $region119: #{_lambda_.1} parent=1 // pred_check_branch
      %317 = sbr.rel (0) target = $region121
    $region120: #{_lambda_.1} parent=1 // pred_region
      %319 = dma.done [#allocation9], 2048
    $region121: #{_lambda_.1} parent=1 // pred_fallthru
      _
    // Predicated region
    $region122: #{_lambda_.1} parent=1 // pred_check
      _
    $region123: #{_lambda_.1} parent=1 // pred_check_branch
      %321 = sbr.rel (0) target = $region125
    $region124: #{_lambda_.1} parent=1 // pred_region
      %323 = dma.done [#allocation12], 1152
    $region125: #{_lambda_.1} parent=1 // pred_fallthru
      _
    // Predicated region
    $region126: #{_lambda_.1} parent=1 // pred_check
      _
    $region127: #{_lambda_.1} parent=1 // pred_check_branch
      %325 = sbr.rel (0) target = $region129
    $region128: #{_lambda_.1} parent=1 // pred_region
      %327 = dma.done [#allocation12], 384
    $region129: #{_lambda_.1} parent=1 // pred_fallthru
      _
    // Predicated region
    $region130: #{_lambda_.1} parent=1 // pred_check
      _
    $region131: #{_lambda_.1} parent=1 // pred_check_branch
      %329 = sbr.rel (0) target = $region133
    $region132: #{_lambda_.1} parent=1 // pred_region
      %331 = dma.done [#allocation15], 1152
    $region133: #{_lambda_.1} parent=1 // pred_fallthru
      _
    // Predicated region
    $region134: #{_lambda_.1} parent=1 // pred_check
      _
    $region135: #{_lambda_.1} parent=1 // pred_check_branch
      %333 = sbr.rel (0) target = $region137
    $region136: #{_lambda_.1} parent=1 // pred_region
      %335 = dma.done [#allocation15], 384
    $region137: #{_lambda_.1} parent=1 // pred_fallthru
      _
    // Predicated region
    $region138: #{_lambda_.1} parent=1 // pred_check
      _
    $region139: #{_lambda_.1} parent=1 // pred_check_branch
      %337 = sbr.rel (0) target = $region141
    $region140: #{_lambda_.1} parent=1 // pred_region
      %339 = dma.done [#allocation18], 896
    $region141: #{_lambda_.1} parent=1 // pred_fallthru
      _
    // Predicated region
    $region142: #{_lambda_.1} parent=1 // pred_check
      _
    $region143: #{_lambda_.1} parent=1 // pred_check_branch
      %341 = sbr.rel (0) target = $region145
    $region144: #{_lambda_.1} parent=1 // pred_region
      %343 = dma.done [#allocation18], 1920
    $region145: #{_lambda_.1} parent=1 // pred_fallthru
      _
    // Predicated region
    $region146: #{_lambda_.1} parent=1 // pred_check
      _
    $region147: #{_lambda_.1} parent=1 // pred_check_branch
      %345 = sbr.rel (0) target = $region149
    $region148: #{_lambda_.1} parent=1 // pred_region
      %347 = dma.done [#allocation21], 640
    $region149: #{_lambda_.1} parent=1 // pred_fallthru
      _
    // Predicated region
    $region150: #{_lambda_.1} parent=1 // pred_check
      _
    $region151: #{_lambda_.1} parent=1 // pred_check_branch
      %349 = sbr.rel (0) target = $region153
    $region152: #{_lambda_.1} parent=1 // pred_region
      %351 = dma.done [#allocation21], 1920
    $region153: #{_lambda_.1} parent=1 // pred_fallthru
      _
    // Predicated region
    $region154: #{_lambda_.1} parent=1 // pred_check
      _
    $region155: #{_lambda_.1} parent=1 // pred_check_branch
      %353 = sbr.rel (0) target = $region157
    $region156: #{_lambda_.1} parent=1 // pred_region
      %355 = dma.done [#allocation24], 640
    $region157: #{_lambda_.1} parent=1 // pred_fallthru
      _
    // Predicated region
    $region158: #{_lambda_.1} parent=1 // pred_check
      _
    $region159: #{_lambda_.1} parent=1 // pred_check_branch
      %357 = sbr.rel (0) target = $region161
    $region160: #{_lambda_.1} parent=1 // pred_region
      %359 = dma.done [#allocation24], 256
    $region161: #{_lambda_.1} parent=1 // pred_fallthru
      _
    // Predicated region
    $region162: #{_lambda_.1} parent=1 // pred_check
      _
    $region163: #{_lambda_.1} parent=1 // pred_check_branch
      %361 = sbr.rel (0) target = $region165
    $region164: #{_lambda_.1} parent=1 // pred_region
      %363 = dma.done [#allocation27], 1280
    $region165: #{_lambda_.1} parent=1 // pred_fallthru
      _
    // Predicated region
    $region166: #{_lambda_.1} parent=1 // pred_check
      _
    $region167: #{_lambda_.1} parent=1 // pred_check_branch
      %365 = sbr.rel (0) target = $region169
    $region168: #{_lambda_.1} parent=1 // pred_region
      %367 = dma.done [#allocation27], 2048
    $region169: #{_lambda_.1} parent=1 // pred_fallthru
      _
    // Predicated region
    $region170: #{_lambda_.1} parent=1 // pred_check
      _
    $region171: #{_lambda_.1} parent=1 // pred_check_branch
      %369 = sbr.rel (0) target = $region173
    $region172: #{_lambda_.1} parent=1 // pred_region
      %371 = dma.done [#allocation30], 1024
    $region173: #{_lambda_.1} parent=1 // pred_fallthru
      _
    // Predicated region
    $region174: #{_lambda_.1} parent=1 // pred_check
      _
    $region175: #{_lambda_.1} parent=1 // pred_check_branch
      %373 = sbr.rel (0) target = $region177
    $region176: #{_lambda_.1} parent=1 // pred_region
      %375 = dma.done [#allocation30], 512
    $region177: #{_lambda_.1} parent=1 // pred_fallthru
      _
    %v376 = vld [vmem:[#allocation26] sm:$0xff]
    %v377 = vld [vmem:[#allocation26 + $0x8] sm:$0xff]
    %v378 = vld [vmem:[#allocation26 + $0x10] sm:$0xff]
    %v379 = vld [vmem:[#allocation26 + $0x18] sm:$0xff]
    %v380 = vld [vmem:[#allocation26 + $0x20] sm:$0xff]
    %v381 = vld [vmem:[#allocation26 + $0x28] sm:$0xff]
    %v382 = vld [vmem:[#allocation26 + $0x30] sm:$0xff]
    %v383 = vld [vmem:[#allocation26 + $0x38] sm:$0xff]
    %v384 = vld [vmem:[#allocation26 + $0x40] sm:$0xf]
    %v385 = vld [vmem:[#allocation26 + $0x48] sm:$0xf]
    %v386 = vld [vmem:[#allocation28] sm:$0xff]
    %v387 = vld [vmem:[#allocation28 + $0x8] sm:$0xff]
    %v388 = vld [vmem:[#allocation28 + $0x10] sm:$0xff]
    %v389 = vld [vmem:[#allocation28 + $0x18] sm:$0xff]
    %v390 = vld [vmem:[#allocation28 + $0x20] sm:$0xff]
    %v391 = vld [vmem:[#allocation28 + $0x28] sm:$0xff]
    %v392 = vld [vmem:[#allocation28 + $0x30] sm:$0xff]
    %v393 = vld [vmem:[#allocation28 + $0x38] sm:$0xff]
    %v394 = vld [vmem:[#allocation28 + $0x40] sm:$0xff]
    %v395 = vld [vmem:[#allocation28 + $0x48] sm:$0xff]
    %v396 = vld [vmem:[#allocation28 + $0x50] sm:$0xff]
    %v397 = vld [vmem:[#allocation28 + $0x58] sm:$0xff]
    %v398 = vld [vmem:[#allocation28 + $0x60] sm:$0xff]
    %v399 = vld [vmem:[#allocation28 + $0x68] sm:$0xff]
    %v400 = vld [vmem:[#allocation28 + $0x70] sm:$0xff]
    %v401 = vld [vmem:[#allocation28 + $0x78] sm:$0xff]
    %v402 = vld [vmem:[%s18] sm:$0x3]
    %v403 = vld [vmem:[%s0] sm:$0x1]
    %v404 = vld [vmem:[#allocation2] sm:$0xff]
    %v405 = vld [vmem:[#allocation2 + $0x8] sm:$0xf]
    %s406 = scalar_lea.vmem [#allocation2], 16
    %v407 = vld [vmem:[%s406] sm:$0xff]
    %v408 = vld [vmem:[%s406 + $0x8] sm:$0xf]
    %v410 = vperm.slane %v403, 0
    %411 = vrot.lane.b32.xlu0 %v410, 127
    %v412 = vpop.permute.xlu0 %411
    %vm413 = vcmask 7168
    %v415 = vsel %vm413, %v407, 0
    %v418 = vsel %vm413, %v408, 0
    %vm420 = vcmask 1040384
    %v421 = vsel %vm420, %v412, 0
    %423 = vmatpush.msra.mxu0 0.0
    %424 = vmatpush.msra.mxu0 0.0
    %425 = vmatpush.msra.mxu0 0.0
    %426 = vmatpush.msra.mxu0 0.0
    %427 = vmatpush.msra.mxu0 0.0
    %428 = vmatpush.msra.mxu0 0.0
    %429 = vmatpush.msra.mxu0 0.0
    %430 = vmatpush.msra.mxu0 0.0
    %431 = vmatpush.msra.mxu0 0.0
    %432 = vmatpush.msra.mxu0 0.0
    %433 = vmatpush.msra.mxu0 0.0
    %434 = vmatpush.msra.mxu0 0.0
    %435 = vmatpush.msra.mxu0 0.0
    %436 = vmatpush.msra.mxu0 0.0
    %437 = vmatpush.msra.mxu0 0.0
    %438 = vmatpush.msra.mxu0 %v421
    %439 = vmatmul.f32.gmra.mxu0 %v415
    %v440 = vpop.f32.mrf.mxu0
    %v441 = vadd.f32 0.0, %v440
    %442 = vmatmul.f32.gmra.mxu0 %v418
    %v443 = vpop.f32.mrf.mxu0
    %v444 = vadd.f32 0.0, %v443
    %445 = vdwg.mxu0
    %v447 = vsel %vm413, %v404, 0
    %v450 = vsel %vm413, %v405, 0
    %v452 = vsel %vm420, %v403, 0
    %454 = vmatpush.msra.mxu0 0.0
    %455 = vmatpush.msra.mxu0 0.0
    %456 = vmatpush.msra.mxu0 0.0
    %457 = vmatpush.msra.mxu0 0.0
    %458 = vmatpush.msra.mxu0 0.0
    %459 = vmatpush.msra.mxu0 0.0
    %460 = vmatpush.msra.mxu0 0.0
    %461 = vmatpush.msra.mxu0 0.0
    %462 = vmatpush.msra.mxu0 0.0
    %463 = vmatpush.msra.mxu0 0.0
    %464 = vmatpush.msra.mxu0 0.0
    %465 = vmatpush.msra.mxu0 0.0
    %466 = vmatpush.msra.mxu0 0.0
    %467 = vmatpush.msra.mxu0 0.0
    %468 = vmatpush.msra.mxu0 0.0
    %469 = vmatpush.msra.mxu0 %v452
    %470 = vmatmul.f32.gmra.mxu0 %v447
    %v471 = vpop.f32.mrf.mxu0
    %v472 = vadd.f32 %v441, %v471
    %473 = vmatmul.f32.gmra.mxu0 %v450
    %v474 = vpop.f32.mrf.mxu0
    %v475 = vadd.f32 %v444, %v474
    %476 = vdwg.mxu0
    %s477 = scalar_lea.vmem [#allocation2], 32
    %v478 = vld [vmem:[%s477] sm:$0xff]
    %v479 = vld [vmem:[%s477 + $0x8] sm:$0xf]
    %480 = vrot.lane.b32.xlu0 %v410, 126
    %v481 = vpop.permute.xlu0 %480
    %v483 = vsel %vm413, %v478, 0
    %v486 = vsel %vm413, %v479, 0
    %v488 = vsel %vm420, %v481, 0
    %490 = vmatpush.msra.mxu0 0.0
    %491 = vmatpush.msra.mxu0 0.0
    %492 = vmatpush.msra.mxu0 0.0
    %493 = vmatpush.msra.mxu0 0.0
    %494 = vmatpush.msra.mxu0 0.0
    %495 = vmatpush.msra.mxu0 0.0
    %496 = vmatpush.msra.mxu0 0.0
    %497 = vmatpush.msra.mxu0 0.0
    %498 = vmatpush.msra.mxu0 0.0
    %499 = vmatpush.msra.mxu0 0.0
    %500 = vmatpush.msra.mxu0 0.0
    %501 = vmatpush.msra.mxu0 0.0
    %502 = vmatpush.msra.mxu0 0.0
    %503 = vmatpush.msra.mxu0 0.0
    %504 = vmatpush.msra.mxu0 0.0
    %505 = vmatpush.msra.mxu0 %v488
    %506 = vmatmul.f32.gmra.mxu0 %v483
    %v507 = vpop.f32.mrf.mxu0
    %v508 = vadd.f32 0.0, %v507
    %509 = vmatmul.f32.gmra.mxu0 %v486
    %v510 = vpop.f32.mrf.mxu0
    %v511 = vadd.f32 0.0, %v510
    %512 = vdwg.mxu0
    %v513 = vadd.f32 %v472, %v508
    %v514 = vadd.f32 %v475, %v511
    %v515 = vld [vmem:[#allocation5] sm:$0xff]
    %v516 = vld [vmem:[#allocation5 + $0x8] sm:$0xf]
    %518 = vset.pattern.permute.xlu0 0
    %519 = vperm.xlu0 %518, %v515
    %v520 = vpop.permute.xlu0 %519
    %523 = vset.pattern.permute.xlu0 0
    %524 = vperm.xlu0 %523, %v516
    %v525 = vpop.permute.xlu0 %524
    %v527 = vadd.f32 %v513, %v520
    %v528 = vadd.f32 %v514, %v525
    %v529 = vmax.f32 %v527, 0.0
    %v530 = vmax.f32 %v528, 0.0
    %v531 = vld [vmem:[#allocation7] sm:$0xff]
    %v532 = vld [vmem:[#allocation7 + $0x8] sm:$0xf]
    %s533 = scalar_lea.vmem [#allocation7], 16
    %v534 = vld [vmem:[%s533] sm:$0xff]
    %v535 = vld [vmem:[%s533 + $0x8] sm:$0xf]
    %538 = vrot.lane.b32.xlu0 %v529, 127
    %v539 = vpop.permute.xlu0 %538
    %540 = vrot.lane.b32.xlu0 %v530, 127
    %v541 = vpop.permute.xlu0 %540
    %vm543 = vcmask 97280
    %v545 = vsel %vm543, %v534, 0
    %v548 = vsel %vm543, %v535, 0
    %vm550 = vcmask 1043456
    %v551 = vsel %vm550, %v541, 0
    %553 = vmatpush.msra.mxu0 0.0
    %554 = vmatpush.msra.mxu0 0.0
    %555 = vmatpush.msra.mxu0 0.0
    %556 = vmatpush.msra.mxu0 0.0
    %557 = vmatpush.msra.mxu0 0.0
    %558 = vmatpush.msra.mxu0 0.0
    %559 = vmatpush.msra.mxu0 0.0
    %560 = vmatpush.msra.mxu0 0.0
    %561 = vmatpush.msra.mxu0 0.0
    %562 = vmatpush.msra.mxu0 0.0
    %563 = vmatpush.msra.mxu0 0.0
    %564 = vmatpush.msra.mxu0 0.0
    %565 = vmatpush.msra.mxu0 0.0
    %566 = vmatpush.msra.mxu0 0.0
    %567 = vmatpush.msra.mxu0 %v551
    %568 = vmatpush.msra.mxu0 %v539
    %569 = vmatmul.f32.gmra.mxu0 %v545
    %v570 = vpop.f32.mrf.mxu0
    %v571 = vadd.f32 0.0, %v570
    %572 = vmatmul.f32.gmra.mxu0 %v548
    %v573 = vpop.f32.mrf.mxu0
    %v574 = vadd.f32 0.0, %v573
    %575 = vdwg.mxu0
    %v577 = vsel %vm543, %v531, 0
    %v580 = vsel %vm543, %v532, 0
    %v582 = vsel %vm550, %v530, 0
    %584 = vmatpush.msra.mxu0 0.0
    %585 = vmatpush.msra.mxu0 0.0
    %586 = vmatpush.msra.mxu0 0.0
    %587 = vmatpush.msra.mxu0 0.0
    %588 = vmatpush.msra.mxu0 0.0
    %589 = vmatpush.msra.mxu0 0.0
    %590 = vmatpush.msra.mxu0 0.0
    %591 = vmatpush.msra.mxu0 0.0
    %592 = vmatpush.msra.mxu0 0.0
    %593 = vmatpush.msra.mxu0 0.0
    %594 = vmatpush.msra.mxu0 0.0
    %595 = vmatpush.msra.mxu0 0.0
    %596 = vmatpush.msra.mxu0 0.0
    %597 = vmatpush.msra.mxu0 0.0
    %598 = vmatpush.msra.mxu0 %v582
    %599 = vmatpush.msra.mxu0 %v529
    %600 = vmatmul.f32.gmra.mxu0 %v577
    %v601 = vpop.f32.mrf.mxu0
    %v602 = vadd.f32 %v571, %v601
    %603 = vmatmul.f32.gmra.mxu0 %v580
    %v604 = vpop.f32.mrf.mxu0
    %v605 = vadd.f32 %v574, %v604
    %606 = vdwg.mxu0
    %s607 = scalar_lea.vmem [#allocation7], 32
    %v608 = vld [vmem:[%s607] sm:$0xff]
    %v609 = vld [vmem:[%s607 + $0x8] sm:$0xf]
    %610 = vrot.lane.b32.xlu0 %v529, 126
    %v611 = vpop.permute.xlu0 %610
    %612 = vrot.lane.b32.xlu0 %v530, 126
    %v613 = vpop.permute.xlu0 %612
    %v616 = vsel %vm543, %v608, 0
    %v619 = vsel %vm543, %v609, 0
    %v621 = vsel %vm550, %v613, 0
    %623 = vmatpush.msra.mxu0 0.0
    %624 = vmatpush.msra.mxu0 0.0
    %625 = vmatpush.msra.mxu0 0.0
    %626 = vmatpush.msra.mxu0 0.0
    %627 = vmatpush.msra.mxu0 0.0
    %628 = vmatpush.msra.mxu0 0.0
    %629 = vmatpush.msra.mxu0 0.0
    %630 = vmatpush.msra.mxu0 0.0
    %631 = vmatpush.msra.mxu0 0.0
    %632 = vmatpush.msra.mxu0 0.0
    %633 = vmatpush.msra.mxu0 0.0
    %634 = vmatpush.msra.mxu0 0.0
    %635 = vmatpush.msra.mxu0 0.0
    %636 = vmatpush.msra.mxu0 0.0
    %637 = vmatpush.msra.mxu0 %v621
    %638 = vmatpush.msra.mxu0 %v611
    %639 = vmatmul.f32.gmra.mxu0 %v616
    %v640 = vpop.f32.mrf.mxu0
    %v641 = vadd.f32 0.0, %v640
    %642 = vmatmul.f32.gmra.mxu0 %v619
    %v643 = vpop.f32.mrf.mxu0
    %v644 = vadd.f32 0.0, %v643
    %645 = vdwg.mxu0
    %v646 = vadd.f32 %v602, %v641
    %v647 = vadd.f32 %v605, %v644
    %v648 = vld [vmem:[#allocation8] sm:$0xff]
    %v649 = vld [vmem:[#allocation8 + $0x8] sm:$0xf]
    %651 = vset.pattern.permute.xlu0 0
    %652 = vperm.xlu0 %651, %v648
    %v653 = vpop.permute.xlu0 %652
    %656 = vset.pattern.permute.xlu0 0
    %657 = vperm.xlu0 %656, %v649
    %v658 = vpop.permute.xlu0 %657
    %v660 = vadd.f32 %v646, %v653
    %v661 = vadd.f32 %v647, %v658
    %v662 = vmax.f32 %v660, 0.0
    %v663 = vmax.f32 %v661, 0.0
    %666 = vrot.lane.b32.xlu0 %v662, 127
    %v667 = vpop.permute.xlu0 %666
    %668 = vrot.lane.b32.xlu0 %v663, 127
    %v669 = vpop.permute.xlu0 %668
    %v672 = vmax.f32 %v662, %v667
    %v673 = vmax.f32 %v663, %v669
    %674 = vrot.lane.b32.xlu0 %v662, 126
    %v675 = vpop.permute.xlu0 %674
    %676 = vrot.lane.b32.xlu0 %v663, 126
    %v677 = vpop.permute.xlu0 %676
    %v680 = vmax.f32 %v672, %v675
    %v681 = vmax.f32 %v673, %v677
    %682 = vrot.lane.b32.xlu0 %v662, 125
    %v683 = vpop.permute.xlu0 %682
    %684 = vrot.lane.b32.xlu0 %v663, 125
    %v685 = vpop.permute.xlu0 %684
    %v688 = vmax.f32 %v680, %v683
    %v689 = vmax.f32 %v681, %v685
    %v690 = vld [vmem:[#allocation10] sm:$0xff]
    %v691 = vld [vmem:[#allocation10 + $0x8] sm:$0xff]
    %v692 = vld [vmem:[#allocation10 + $0x10] sm:$0xff]
    %v693 = vld [vmem:[#allocation10 + $0x18] sm:$0xff]
    %v694 = vld [vmem:[#allocation10 + $0x20] sm:$0xff]
    %v695 = vld [vmem:[#allocation10 + $0x28] sm:$0xff]
    %v696 = vld [vmem:[#allocation10 + $0x30] sm:$0xff]
    %v697 = vld [vmem:[#allocation10 + $0x38] sm:$0xff]
    %v698 = vld [vmem:[#allocation10 + $0x40] sm:$0xff]
    %v699 = vld [vmem:[#allocation10 + $0x48] sm:$0xff]
    %v700 = vld [vmem:[#allocation10 + $0x50] sm:$0xff]
    %v701 = vld [vmem:[#allocation10 + $0x58] sm:$0xff]
    %v702 = vld [vmem:[#allocation10 + $0x60] sm:$0xff]
    %v703 = vld [vmem:[#allocation10 + $0x68] sm:$0xff]
    %v704 = vld [vmem:[#allocation10 + $0x70] sm:$0xff]
    %v705 = vld [vmem:[#allocation10 + $0x78] sm:$0x1]
    %vm706 = vcmask 990208
    %v708 = vsel %vm706, %v688, 0
    %v711 = vsel %vm706, %v689, 0
    %v714 = vsel %vm420, %v705, 0
    %716 = vmatpush.msra.mxu0 %v714
    %717 = vmatpush.msra.mxu0 %v704
    %718 = vmatpush.msra.mxu0 %v703
    %719 = vmatpush.msra.mxu0 %v702
    %720 = vmatpush.msra.mxu0 %v701
    %721 = vmatpush.msra.mxu0 %v700
    %722 = vmatpush.msra.mxu0 %v699
    %723 = vmatpush.msra.mxu0 %v698
    %724 = vmatpush.msra.mxu0 %v697
    %725 = vmatpush.msra.mxu0 %v696
    %726 = vmatpush.msra.mxu0 %v695
    %727 = vmatpush.msra.mxu0 %v694
    %728 = vmatpush.msra.mxu0 %v693
    %729 = vmatpush.msra.mxu0 %v692
    %730 = vmatpush.msra.mxu0 %v691
    %731 = vmatpush.msra.mxu0 %v690
    %732 = vmatmul.f32.gmra.mxu0 %v708
    %v733 = vpop.f32.mrf.mxu0
    %v734 = vadd.f32 0.0, %v733
    %735 = vmatmul.f32.gmra.mxu0 %v711
    %v736 = vpop.f32.mrf.mxu0
    %v737 = vadd.f32 0.0, %v736
    %738 = vdwg.mxu0
    %v739 = vld [vmem:[#allocation11] sm:$0xff]
    %v740 = vld [vmem:[#allocation11 + $0x8] sm:$0xff]
    %v741 = vld [vmem:[#allocation11 + $0x10] sm:$0xff]
    %s742 = scalar_lea.vmem [#allocation11], 24
    %v743 = vld [vmem:[%s742] sm:$0xff]
    %v744 = vld [vmem:[%s742 + $0x8] sm:$0xff]
    %v745 = vld [vmem:[%s742 + $0x10] sm:$0xff]
    %748 = vrot.lane.b32.xlu0 %v734, 127
    %v749 = vpop.permute.xlu0 %748
    %750 = vrot.lane.b32.xlu0 %v737, 127
    %v751 = vpop.permute.xlu0 %750
    %v754 = vsel %vm543, %v743, 0
    %v757 = vsel %vm543, %v744, 0
    %v760 = vsel %vm543, %v745, 0
    %v762 = vsel %vm550, %v751, 0
    %764 = vmatpush.msra.mxu0 0.0
    %765 = vmatpush.msra.mxu0 0.0
    %766 = vmatpush.msra.mxu0 0.0
    %767 = vmatpush.msra.mxu0 0.0
    %768 = vmatpush.msra.mxu0 0.0
    %769 = vmatpush.msra.mxu0 0.0
    %770 = vmatpush.msra.mxu0 0.0
    %771 = vmatpush.msra.mxu0 0.0
    %772 = vmatpush.msra.mxu0 0.0
    %773 = vmatpush.msra.mxu0 0.0
    %774 = vmatpush.msra.mxu0 0.0
    %775 = vmatpush.msra.mxu0 0.0
    %776 = vmatpush.msra.mxu0 0.0
    %777 = vmatpush.msra.mxu0 0.0
    %778 = vmatpush.msra.mxu0 %v762
    %779 = vmatpush.msra.mxu0 %v749
    %780 = vmatmul.f32.gmra.mxu0 %v754
    %v781 = vpop.f32.mrf.mxu0
    %v782 = vadd.f32 0.0, %v781
    %783 = vmatmul.f32.gmra.mxu0 %v757
    %v784 = vpop.f32.mrf.mxu0
    %v785 = vadd.f32 0.0, %v784
    %786 = vmatmul.f32.gmra.mxu0 %v760
    %v787 = vpop.f32.mrf.mxu0
    %v788 = vadd.f32 0.0, %v787
    %789 = vdwg.mxu0
    %v791 = vsel %vm543, %v739, 0
    %v794 = vsel %vm543, %v740, 0
    %v797 = vsel %vm543, %v741, 0
    %v799 = vsel %vm550, %v737, 0
    %801 = vmatpush.msra.mxu0 0.0
    %802 = vmatpush.msra.mxu0 0.0
    %803 = vmatpush.msra.mxu0 0.0
    %804 = vmatpush.msra.mxu0 0.0
    %805 = vmatpush.msra.mxu0 0.0
    %806 = vmatpush.msra.mxu0 0.0
    %807 = vmatpush.msra.mxu0 0.0
    %808 = vmatpush.msra.mxu0 0.0
    %809 = vmatpush.msra.mxu0 0.0
    %810 = vmatpush.msra.mxu0 0.0
    %811 = vmatpush.msra.mxu0 0.0
    %812 = vmatpush.msra.mxu0 0.0
    %813 = vmatpush.msra.mxu0 0.0
    %814 = vmatpush.msra.mxu0 0.0
    %815 = vmatpush.msra.mxu0 %v799
    %816 = vmatpush.msra.mxu0 %v734
    %817 = vmatmul.f32.gmra.mxu0 %v791
    %v818 = vpop.f32.mrf.mxu0
    %v819 = vadd.f32 %v782, %v818
    %820 = vmatmul.f32.gmra.mxu0 %v794
    %v821 = vpop.f32.mrf.mxu0
    %v822 = vadd.f32 %v785, %v821
    %823 = vmatmul.f32.gmra.mxu0 %v797
    %v824 = vpop.f32.mrf.mxu0
    %v825 = vadd.f32 %v788, %v824
    %826 = vdwg.mxu0
    %s827 = scalar_lea.vmem [#allocation11], 48
    %v828 = vld [vmem:[%s827] sm:$0xff]
    %v829 = vld [vmem:[%s827 + $0x8] sm:$0xff]
    %v830 = vld [vmem:[%s827 + $0x10] sm:$0xff]
    %831 = vrot.lane.b32.xlu0 %v734, 126
    %v832 = vpop.permute.xlu0 %831
    %833 = vrot.lane.b32.xlu0 %v737, 126
    %v834 = vpop.permute.xlu0 %833
    %v837 = vsel %vm543, %v828, 0
    %v840 = vsel %vm543, %v829, 0
    %v843 = vsel %vm543, %v830, 0
    %v845 = vsel %vm550, %v834, 0
    %847 = vmatpush.msra.mxu0 0.0
    %848 = vmatpush.msra.mxu0 0.0
    %849 = vmatpush.msra.mxu0 0.0
    %850 = vmatpush.msra.mxu0 0.0
    %851 = vmatpush.msra.mxu0 0.0
    %852 = vmatpush.msra.mxu0 0.0
    %853 = vmatpush.msra.mxu0 0.0
    %854 = vmatpush.msra.mxu0 0.0
    %855 = vmatpush.msra.mxu0 0.0
    %856 = vmatpush.msra.mxu0 0.0
    %857 = vmatpush.msra.mxu0 0.0
    %858 = vmatpush.msra.mxu0 0.0
    %859 = vmatpush.msra.mxu0 0.0
    %860 = vmatpush.msra.mxu0 0.0
    %861 = vmatpush.msra.mxu0 %v845
    %862 = vmatpush.msra.mxu0 %v832
    %863 = vmatmul.f32.gmra.mxu0 %v837
    %v864 = vpop.f32.mrf.mxu0
    %v865 = vadd.f32 0.0, %v864
    %866 = vmatmul.f32.gmra.mxu0 %v840
    %v867 = vpop.f32.mrf.mxu0
    %v868 = vadd.f32 0.0, %v867
    %869 = vmatmul.f32.gmra.mxu0 %v843
    %v870 = vpop.f32.mrf.mxu0
    %v871 = vadd.f32 0.0, %v870
    %872 = vdwg.mxu0
    %v873 = vadd.f32 %v819, %v865
    %v874 = vadd.f32 %v822, %v868
    %v875 = vadd.f32 %v825, %v871
    %v876 = vld [vmem:[#allocation13] sm:$0xff]
    %v877 = vld [vmem:[#allocation13 + $0x8] sm:$0xff]
    %v878 = vld [vmem:[#allocation13 + $0x10] sm:$0xff]
    %880 = vset.pattern.permute.xlu0 0
    %881 = vperm.xlu0 %880, %v876
    %v882 = vpop.permute.xlu0 %881
    %885 = vset.pattern.permute.xlu0 0
    %886 = vperm.xlu0 %885, %v877
    %v887 = vpop.permute.xlu0 %886
    %890 = vset.pattern.permute.xlu0 0
    %891 = vperm.xlu0 %890, %v878
    %v892 = vpop.permute.xlu0 %891
    %v894 = vadd.f32 %v873, %v882
    %v895 = vadd.f32 %v874, %v887
    %v896 = vadd.f32 %v875, %v892
    %v897 = vmax.f32 %v894, 0.0
    %v898 = vmax.f32 %v895, 0.0
    %v899 = vmax.f32 %v896, 0.0
    %v900 = vld [vmem:[#allocation14] sm:$0xff]
    %v901 = vld [vmem:[#allocation14 + $0x8] sm:$0xff]
    %v902 = vld [vmem:[#allocation14 + $0x10] sm:$0xff]
    %s903 = scalar_lea.vmem [#allocation14], 24
    %v904 = vld [vmem:[%s903] sm:$0xff]
    %v905 = vld [vmem:[%s903 + $0x8] sm:$0xff]
    %v906 = vld [vmem:[%s903 + $0x10] sm:$0xff]
    %910 = vrot.lane.b32.xlu0 %v897, 127
    %v911 = vpop.permute.xlu0 %910
    %912 = vrot.lane.b32.xlu0 %v898, 127
    %v913 = vpop.permute.xlu0 %912
    %914 = vrot.lane.b32.xlu0 %v899, 127
    %v915 = vpop.permute.xlu0 %914
    %vm919 = vcmask 195584
    %v921 = vsel %vm919, %v904, 0
    %v924 = vsel %vm919, %v905, 0
    %v927 = vsel %vm919, %v906, 0
    %929 = vmatpush.msra.mxu0 0.0
    %930 = vmatpush.msra.mxu0 0.0
    %931 = vmatpush.msra.mxu0 0.0
    %932 = vmatpush.msra.mxu0 0.0
    %933 = vmatpush.msra.mxu0 0.0
    %934 = vmatpush.msra.mxu0 0.0
    %935 = vmatpush.msra.mxu0 0.0
    %936 = vmatpush.msra.mxu0 0.0
    %937 = vmatpush.msra.mxu0 0.0
    %938 = vmatpush.msra.mxu0 0.0
    %939 = vmatpush.msra.mxu0 0.0
    %940 = vmatpush.msra.mxu0 0.0
    %941 = vmatpush.msra.mxu0 0.0
    %942 = vmatpush.msra.mxu0 %v915
    %943 = vmatpush.msra.mxu0 %v913
    %944 = vmatpush.msra.mxu0 %v911
    %945 = vmatmul.f32.gmra.mxu0 %v921
    %v946 = vpop.f32.mrf.mxu0
    %v947 = vadd.f32 0.0, %v946
    %948 = vmatmul.f32.gmra.mxu0 %v924
    %v949 = vpop.f32.mrf.mxu0
    %v950 = vadd.f32 0.0, %v949
    %951 = vmatmul.f32.gmra.mxu0 %v927
    %v952 = vpop.f32.mrf.mxu0
    %v953 = vadd.f32 0.0, %v952
    %954 = vdwg.mxu0
    %v956 = vsel %vm919, %v900, 0
    %v959 = vsel %vm919, %v901, 0
    %v962 = vsel %vm919, %v902, 0
    %964 = vmatpush.msra.mxu0 0.0
    %965 = vmatpush.msra.mxu0 0.0
    %966 = vmatpush.msra.mxu0 0.0
    %967 = vmatpush.msra.mxu0 0.0
    %968 = vmatpush.msra.mxu0 0.0
    %969 = vmatpush.msra.mxu0 0.0
    %970 = vmatpush.msra.mxu0 0.0
    %971 = vmatpush.msra.mxu0 0.0
    %972 = vmatpush.msra.mxu0 0.0
    %973 = vmatpush.msra.mxu0 0.0
    %974 = vmatpush.msra.mxu0 0.0
    %975 = vmatpush.msra.mxu0 0.0
    %976 = vmatpush.msra.mxu0 0.0
    %977 = vmatpush.msra.mxu0 %v899
    %978 = vmatpush.msra.mxu0 %v898
    %979 = vmatpush.msra.mxu0 %v897
    %980 = vmatmul.f32.gmra.mxu0 %v956
    %v981 = vpop.f32.mrf.mxu0
    %v982 = vadd.f32 %v947, %v981
    %983 = vmatmul.f32.gmra.mxu0 %v959
    %v984 = vpop.f32.mrf.mxu0
    %v985 = vadd.f32 %v950, %v984
    %986 = vmatmul.f32.gmra.mxu0 %v962
    %v987 = vpop.f32.mrf.mxu0
    %v988 = vadd.f32 %v953, %v987
    %989 = vdwg.mxu0
    %s990 = scalar_lea.vmem [#allocation14], 48
    %v991 = vld [vmem:[%s990] sm:$0xff]
    %v992 = vld [vmem:[%s990 + $0x8] sm:$0xff]
    %v993 = vld [vmem:[%s990 + $0x10] sm:$0xff]
    %994 = vrot.lane.b32.xlu0 %v897, 126
    %v995 = vpop.permute.xlu0 %994
    %996 = vrot.lane.b32.xlu0 %v898, 126
    %v997 = vpop.permute.xlu0 %996
    %998 = vrot.lane.b32.xlu0 %v899, 126
    %v999 = vpop.permute.xlu0 %998
    %v1004 = vsel %vm919, %v991, 0
    %v1007 = vsel %vm919, %v992, 0
    %v1010 = vsel %vm919, %v993, 0
    %1012 = vmatpush.msra.mxu0 0.0
    %1013 = vmatpush.msra.mxu0 0.0
    %1014 = vmatpush.msra.mxu0 0.0
    %1015 = vmatpush.msra.mxu0 0.0
    %1016 = vmatpush.msra.mxu0 0.0
    %1017 = vmatpush.msra.mxu0 0.0
    %1018 = vmatpush.msra.mxu0 0.0
    %1019 = vmatpush.msra.mxu0 0.0
    %1020 = vmatpush.msra.mxu0 0.0
    %1021 = vmatpush.msra.mxu0 0.0
    %1022 = vmatpush.msra.mxu0 0.0
    %1023 = vmatpush.msra.mxu0 0.0
    %1024 = vmatpush.msra.mxu0 0.0
    %1025 = vmatpush.msra.mxu0 %v999
    %1026 = vmatpush.msra.mxu0 %v997
    %1027 = vmatpush.msra.mxu0 %v995
    %1028 = vmatmul.f32.gmra.mxu0 %v1004
    %v1029 = vpop.f32.mrf.mxu0
    %v1030 = vadd.f32 0.0, %v1029
    %1031 = vmatmul.f32.gmra.mxu0 %v1007
    %v1032 = vpop.f32.mrf.mxu0
    %v1033 = vadd.f32 0.0, %v1032
    %1034 = vmatmul.f32.gmra.mxu0 %v1010
    %v1035 = vpop.f32.mrf.mxu0
    %v1036 = vadd.f32 0.0, %v1035
    %1037 = vdwg.mxu0
    %v1038 = vadd.f32 %v982, %v1030
    %v1039 = vadd.f32 %v985, %v1033
    %v1040 = vadd.f32 %v988, %v1036
    %v1041 = vld [vmem:[#allocation16] sm:$0xff]
    %v1042 = vld [vmem:[#allocation16 + $0x8] sm:$0xff]
    %v1043 = vld [vmem:[#allocation16 + $0x10] sm:$0xff]
    %1045 = vset.pattern.permute.xlu0 0
    %1046 = vperm.xlu0 %1045, %v1041
    %v1047 = vpop.permute.xlu0 %1046
    %1050 = vset.pattern.permute.xlu0 0
    %1051 = vperm.xlu0 %1050, %v1042
    %v1052 = vpop.permute.xlu0 %1051
    %1055 = vset.pattern.permute.xlu0 0
    %1056 = vperm.xlu0 %1055, %v1043
    %v1057 = vpop.permute.xlu0 %1056
    %v1059 = vadd.f32 %v1038, %v1047
    %v1060 = vadd.f32 %v1039, %v1052
    %v1061 = vadd.f32 %v1040, %v1057
    %v1062 = vmax.f32 %v1059, 0.0
    %v1063 = vmax.f32 %v1060, 0.0
    %v1064 = vmax.f32 %v1061, 0.0
    %1068 = vrot.lane.b32.xlu0 %v1062, 127
    %v1069 = vpop.permute.xlu0 %1068
    %1070 = vrot.lane.b32.xlu0 %v1063, 127
    %v1071 = vpop.permute.xlu0 %1070
    %1072 = vrot.lane.b32.xlu0 %v1064, 127
    %v1073 = vpop.permute.xlu0 %1072
    %v1077 = vmax.f32 %v1062, %v1069
    %v1078 = vmax.f32 %v1063, %v1071
    %v1079 = vmax.f32 %v1064, %v1073
    %1080 = vrot.lane.b32.xlu0 %v1062, 126
    %v1081 = vpop.permute.xlu0 %1080
    %1082 = vrot.lane.b32.xlu0 %v1063, 126
    %v1083 = vpop.permute.xlu0 %1082
    %1084 = vrot.lane.b32.xlu0 %v1064, 126
    %v1085 = vpop.permute.xlu0 %1084
    %v1089 = vmax.f32 %v1077, %v1081
    %v1090 = vmax.f32 %v1078, %v1083
    %v1091 = vmax.f32 %v1079, %v1085
    %1092 = vrot.lane.b32.xlu0 %v1062, 125
    %v1093 = vpop.permute.xlu0 %1092
    %1094 = vrot.lane.b32.xlu0 %v1063, 125
    %v1095 = vpop.permute.xlu0 %1094
    %1096 = vrot.lane.b32.xlu0 %v1064, 125
    %v1097 = vpop.permute.xlu0 %1096
    %v1101 = vmax.f32 %v1089, %v1093
    %v1102 = vmax.f32 %v1090, %v1095
    %v1103 = vmax.f32 %v1091, %v1097
    %v1104 = vld [vmem:[#allocation17] sm:$0xff]
    %v1105 = vld [vmem:[#allocation17 + $0x8] sm:$0xff]
    %v1106 = vld [vmem:[#allocation17 + $0x10] sm:$0xff]
    %v1107 = vld [vmem:[#allocation17 + $0x18] sm:$0xff]
    %v1108 = vld [vmem:[#allocation17 + $0x20] sm:$0xff]
    %v1109 = vld [vmem:[#allocation17 + $0x28] sm:$0xff]
    %v1110 = vld [vmem:[#allocation17 + $0x30] sm:$0x3f]
    %vm1111 = vcmask 441344
    %v1113 = vsel %vm1111, %v1101, 0
    %v1116 = vsel %vm1111, %v1102, 0
    %v1119 = vsel %vm1111, %v1103, 0
    %vm1121 = vcmask 1045504
    %v1123 = vsel %vm1121, %v1110, 0
    %1125 = vmatpush.msra.mxu0 0.0
    %1126 = vmatpush.msra.mxu0 0.0
    %1127 = vmatpush.msra.mxu0 0.0
    %1128 = vmatpush.msra.mxu0 0.0
    %1129 = vmatpush.msra.mxu0 0.0
    %1130 = vmatpush.msra.mxu0 0.0
    %1131 = vmatpush.msra.mxu0 0.0
    %1132 = vmatpush.msra.mxu0 0.0
    %1133 = vmatpush.msra.mxu0 0.0
    %1134 = vmatpush.msra.mxu0 %v1123
    %1135 = vmatpush.msra.mxu0 %v1109
    %1136 = vmatpush.msra.mxu0 %v1108
    %1137 = vmatpush.msra.mxu0 %v1107
    %1138 = vmatpush.msra.mxu0 %v1106
    %1139 = vmatpush.msra.mxu0 %v1105
    %1140 = vmatpush.msra.mxu0 %v1104
    %1141 = vmatmul.f32.gmra.mxu0 %v1113
    %v1142 = vpop.f32.mrf.mxu0
    %v1143 = vadd.f32 0.0, %v1142
    %1144 = vmatmul.f32.gmra.mxu0 %v1116
    %v1145 = vpop.f32.mrf.mxu0
    %v1146 = vadd.f32 0.0, %v1145
    %1147 = vmatmul.f32.gmra.mxu0 %v1119
    %v1148 = vpop.f32.mrf.mxu0
    %v1149 = vadd.f32 0.0, %v1148
    %1150 = vdwg.mxu0
    %v1151 = vld [vmem:[#allocation19] sm:$0xff]
    %v1152 = vld [vmem:[#allocation19 + $0x8] sm:$0xff]
    %v1153 = vld [vmem:[#allocation19 + $0x10] sm:$0xff]
    %v1154 = vld [vmem:[#allocation19 + $0x18] sm:$0xff]
    %v1155 = vld [vmem:[#allocation19 + $0x20] sm:$0xf]
    %s1156 = scalar_lea.vmem [#allocation19], 40
    %v1157 = vld [vmem:[%s1156] sm:$0xff]
    %v1158 = vld [vmem:[%s1156 + $0x8] sm:$0xff]
    %v1159 = vld [vmem:[%s1156 + $0x10] sm:$0xff]
    %v1160 = vld [vmem:[%s1156 + $0x18] sm:$0xff]
    %v1161 = vld [vmem:[%s1156 + $0x20] sm:$0xf]
    %1165 = vrot.lane.b32.xlu0 %v1143, 127
    %v1166 = vpop.permute.xlu0 %1165
    %1167 = vrot.lane.b32.xlu0 %v1146, 127
    %v1168 = vpop.permute.xlu0 %1167
    %1169 = vrot.lane.b32.xlu0 %v1149, 127
    %v1170 = vpop.permute.xlu0 %1169
    %v1175 = vsel %vm919, %v1157, 0
    %v1178 = vsel %vm919, %v1158, 0
    %v1181 = vsel %vm919, %v1159, 0
    %v1184 = vsel %vm919, %v1160, 0
    %v1187 = vsel %vm919, %v1161, 0
    %1189 = vmatpush.msra.mxu0 0.0
    %1190 = vmatpush.msra.mxu0 0.0
    %1191 = vmatpush.msra.mxu0 0.0
    %1192 = vmatpush.msra.mxu0 0.0
    %1193 = vmatpush.msra.mxu0 0.0
    %1194 = vmatpush.msra.mxu0 0.0
    %1195 = vmatpush.msra.mxu0 0.0
    %1196 = vmatpush.msra.mxu0 0.0
    %1197 = vmatpush.msra.mxu0 0.0
    %1198 = vmatpush.msra.mxu0 0.0
    %1199 = vmatpush.msra.mxu0 0.0
    %1200 = vmatpush.msra.mxu0 0.0
    %1201 = vmatpush.msra.mxu0 0.0
    %1202 = vmatpush.msra.mxu0 %v1170
    %1203 = vmatpush.msra.mxu0 %v1168
    %1204 = vmatpush.msra.mxu0 %v1166
    %1205 = vmatmul.f32.gmra.mxu0 %v1175
    %v1206 = vpop.f32.mrf.mxu0
    %v1207 = vadd.f32 0.0, %v1206
    %1208 = vmatmul.f32.gmra.mxu0 %v1178
    %v1209 = vpop.f32.mrf.mxu0
    %v1210 = vadd.f32 0.0, %v1209
    %1211 = vmatmul.f32.gmra.mxu0 %v1181
    %v1212 = vpop.f32.mrf.mxu0
    %v1213 = vadd.f32 0.0, %v1212
    %1214 = vmatmul.f32.gmra.mxu0 %v1184
    %v1215 = vpop.f32.mrf.mxu0
    %v1216 = vadd.f32 0.0, %v1215
    %1217 = vmatmul.f32.gmra.mxu0 %v1187
    %v1218 = vpop.f32.mrf.mxu0
    %v1219 = vadd.f32 0.0, %v1218
    %1220 = vdwg.mxu0
    %v1222 = vsel %vm919, %v1151, 0
    %v1225 = vsel %vm919, %v1152, 0
    %v1228 = vsel %vm919, %v1153, 0
    %v1231 = vsel %vm919, %v1154, 0
    %v1234 = vsel %vm919, %v1155, 0
    %1236 = vmatpush.msra.mxu0 0.0
    %1237 = vmatpush.msra.mxu0 0.0
    %1238 = vmatpush.msra.mxu0 0.0
    %1239 = vmatpush.msra.mxu0 0.0
    %1240 = vmatpush.msra.mxu0 0.0
    %1241 = vmatpush.msra.mxu0 0.0
    %1242 = vmatpush.msra.mxu0 0.0
    %1243 = vmatpush.msra.mxu0 0.0
    %1244 = vmatpush.msra.mxu0 0.0
    %1245 = vmatpush.msra.mxu0 0.0
    %1246 = vmatpush.msra.mxu0 0.0
    %1247 = vmatpush.msra.mxu0 0.0
    %1248 = vmatpush.msra.mxu0 0.0
    %1249 = vmatpush.msra.mxu0 %v1149
    %1250 = vmatpush.msra.mxu0 %v1146
    %1251 = vmatpush.msra.mxu0 %v1143
    %1252 = vmatmul.f32.gmra.mxu0 %v1222
    %v1253 = vpop.f32.mrf.mxu0
    %v1254 = vadd.f32 %v1207, %v1253
    %1255 = vmatmul.f32.gmra.mxu0 %v1225
    %v1256 = vpop.f32.mrf.mxu0
    %v1257 = vadd.f32 %v1210, %v1256
    %1258 = vmatmul.f32.gmra.mxu0 %v1228
    %v1259 = vpop.f32.mrf.mxu0
    %v1260 = vadd.f32 %v1213, %v1259
    %1261 = vmatmul.f32.gmra.mxu0 %v1231
    %v1262 = vpop.f32.mrf.mxu0
    %v1263 = vadd.f32 %v1216, %v1262
    %1264 = vmatmul.f32.gmra.mxu0 %v1234
    %v1265 = vpop.f32.mrf.mxu0
    %v1266 = vadd.f32 %v1219, %v1265
    %1267 = vdwg.mxu0
    %s1268 = scalar_lea.vmem [#allocation19], 80
    %v1269 = vld [vmem:[%s1268] sm:$0xff]
    %v1270 = vld [vmem:[%s1268 + $0x8] sm:$0xff]
    %v1271 = vld [vmem:[%s1268 + $0x10] sm:$0xff]
    %v1272 = vld [vmem:[%s1268 + $0x18] sm:$0xff]
    %v1273 = vld [vmem:[%s1268 + $0x20] sm:$0xf]
    %1274 = vrot.lane.b32.xlu0 %v1143, 126
    %v1275 = vpop.permute.xlu0 %1274
    %1276 = vrot.lane.b32.xlu0 %v1146, 126
    %v1277 = vpop.permute.xlu0 %1276
    %1278 = vrot.lane.b32.xlu0 %v1149, 126
    %v1279 = vpop.permute.xlu0 %1278
    %v1284 = vsel %vm919, %v1269, 0
    %v1287 = vsel %vm919, %v1270, 0
    %v1290 = vsel %vm919, %v1271, 0
    %v1293 = vsel %vm919, %v1272, 0
    %v1296 = vsel %vm919, %v1273, 0
    %1298 = vmatpush.msra.mxu0 0.0
    %1299 = vmatpush.msra.mxu0 0.0
    %1300 = vmatpush.msra.mxu0 0.0
    %1301 = vmatpush.msra.mxu0 0.0
    %1302 = vmatpush.msra.mxu0 0.0
    %1303 = vmatpush.msra.mxu0 0.0
    %1304 = vmatpush.msra.mxu0 0.0
    %1305 = vmatpush.msra.mxu0 0.0
    %1306 = vmatpush.msra.mxu0 0.0
    %1307 = vmatpush.msra.mxu0 0.0
    %1308 = vmatpush.msra.mxu0 0.0
    %1309 = vmatpush.msra.mxu0 0.0
    %1310 = vmatpush.msra.mxu0 0.0
    %1311 = vmatpush.msra.mxu0 %v1279
    %1312 = vmatpush.msra.mxu0 %v1277
    %1313 = vmatpush.msra.mxu0 %v1275
    %1314 = vmatmul.f32.gmra.mxu0 %v1284
    %v1315 = vpop.f32.mrf.mxu0
    %v1316 = vadd.f32 0.0, %v1315
    %1317 = vmatmul.f32.gmra.mxu0 %v1287
    %v1318 = vpop.f32.mrf.mxu0
    %v1319 = vadd.f32 0.0, %v1318
    %1320 = vmatmul.f32.gmra.mxu0 %v1290
    %v1321 = vpop.f32.mrf.mxu0
    %v1322 = vadd.f32 0.0, %v1321
    %1323 = vmatmul.f32.gmra.mxu0 %v1293
    %v1324 = vpop.f32.mrf.mxu0
    %v1325 = vadd.f32 0.0, %v1324
    %1326 = vmatmul.f32.gmra.mxu0 %v1296
    %v1327 = vpop.f32.mrf.mxu0
    %v1328 = vadd.f32 0.0, %v1327
    %1329 = vdwg.mxu0
    %v1330 = vadd.f32 %v1254, %v1316
    %v1331 = vadd.f32 %v1257, %v1319
    %v1332 = vadd.f32 %v1260, %v1322
    %v1333 = vadd.f32 %v1263, %v1325
    %v1334 = vadd.f32 %v1266, %v1328
    %v1335 = vld [vmem:[#allocation20] sm:$0xff]
    %v1336 = vld [vmem:[#allocation20 + $0x8] sm:$0xff]
    %v1337 = vld [vmem:[#allocation20 + $0x10] sm:$0xff]
    %v1338 = vld [vmem:[#allocation20 + $0x18] sm:$0xff]
    %v1339 = vld [vmem:[#allocation20 + $0x20] sm:$0xf]
    %1341 = vset.pattern.permute.xlu0 0
    %1342 = vperm.xlu0 %1341, %v1335
    %v1343 = vpop.permute.xlu0 %1342
    %1346 = vset.pattern.permute.xlu0 0
    %1347 = vperm.xlu0 %1346, %v1336
    %v1348 = vpop.permute.xlu0 %1347
    %1351 = vset.pattern.permute.xlu0 0
    %1352 = vperm.xlu0 %1351, %v1337
    %v1353 = vpop.permute.xlu0 %1352
    %1356 = vset.pattern.permute.xlu0 0
    %1357 = vperm.xlu0 %1356, %v1338
    %v1358 = vpop.permute.xlu0 %1357
    %1361 = vset.pattern.permute.xlu0 0
    %1362 = vperm.xlu0 %1361, %v1339
    %v1363 = vpop.permute.xlu0 %1362
    %v1365 = vadd.f32 %v1330, %v1343
    %v1366 = vadd.f32 %v1331, %v1348
    %v1367 = vadd.f32 %v1332, %v1353
    %v1368 = vadd.f32 %v1333, %v1358
    %v1369 = vadd.f32 %v1334, %v1363
    %v1370 = vmax.f32 %v1365, 0.0
    %v1371 = vmax.f32 %v1366, 0.0
    %v1372 = vmax.f32 %v1367, 0.0
    %v1373 = vmax.f32 %v1368, 0.0
    %v1374 = vmax.f32 %v1369, 0.0
    %v1375 = vld [vmem:[#allocation22] sm:$0xff]
    %v1376 = vld [vmem:[#allocation22 + $0x8] sm:$0xff]
    %v1377 = vld [vmem:[#allocation22 + $0x10] sm:$0xff]
    %v1378 = vld [vmem:[#allocation22 + $0x18] sm:$0xff]
    %v1379 = vld [vmem:[#allocation22 + $0x20] sm:$0xf]
    %s1380 = scalar_lea.vmem [#allocation22], 40
    %v1381 = vld [vmem:[%s1380] sm:$0xff]
    %v1382 = vld [vmem:[%s1380 + $0x8] sm:$0xff]
    %v1383 = vld [vmem:[%s1380 + $0x10] sm:$0xff]
    %v1384 = vld [vmem:[%s1380 + $0x18] sm:$0xff]
    %v1385 = vld [vmem:[%s1380 + $0x20] sm:$0xf]
    %1391 = vrot.lane.b32.xlu0 %v1370, 127
    %v1392 = vpop.permute.xlu0 %1391
    %1393 = vrot.lane.b32.xlu0 %v1371, 127
    %v1394 = vpop.permute.xlu0 %1393
    %1395 = vrot.lane.b32.xlu0 %v1372, 127
    %v1396 = vpop.permute.xlu0 %1395
    %1397 = vrot.lane.b32.xlu0 %v1373, 127
    %v1398 = vpop.permute.xlu0 %1397
    %1399 = vrot.lane.b32.xlu0 %v1374, 127
    %v1400 = vpop.permute.xlu0 %1399
    %vm1405 = vcmask 293888
    %v1407 = vsel %vm1405, %v1381, 0
    %v1410 = vsel %vm1405, %v1382, 0
    %v1413 = vsel %vm1405, %v1383, 0
    %v1416 = vsel %vm1405, %v1384, 0
    %v1419 = vsel %vm1405, %v1385, 0
    %v1421 = vsel %vm550, %v1400, 0
    %1423 = vmatpush.msra.mxu0 0.0
    %1424 = vmatpush.msra.mxu0 0.0
    %1425 = vmatpush.msra.mxu0 0.0
    %1426 = vmatpush.msra.mxu0 0.0
    %1427 = vmatpush.msra.mxu0 0.0
    %1428 = vmatpush.msra.mxu0 0.0
    %1429 = vmatpush.msra.mxu0 0.0
    %1430 = vmatpush.msra.mxu0 0.0
    %1431 = vmatpush.msra.mxu0 0.0
    %1432 = vmatpush.msra.mxu0 0.0
    %1433 = vmatpush.msra.mxu0 0.0
    %1434 = vmatpush.msra.mxu0 %v1421
    %1435 = vmatpush.msra.mxu0 %v1398
    %1436 = vmatpush.msra.mxu0 %v1396
    %1437 = vmatpush.msra.mxu0 %v1394
    %1438 = vmatpush.msra.mxu0 %v1392
    %1439 = vmatmul.f32.gmra.mxu0 %v1407
    %v1440 = vpop.f32.mrf.mxu0
    %v1441 = vadd.f32 0.0, %v1440
    %1442 = vmatmul.f32.gmra.mxu0 %v1410
    %v1443 = vpop.f32.mrf.mxu0
    %v1444 = vadd.f32 0.0, %v1443
    %1445 = vmatmul.f32.gmra.mxu0 %v1413
    %v1446 = vpop.f32.mrf.mxu0
    %v1447 = vadd.f32 0.0, %v1446
    %1448 = vmatmul.f32.gmra.mxu0 %v1416
    %v1449 = vpop.f32.mrf.mxu0
    %v1450 = vadd.f32 0.0, %v1449
    %1451 = vmatmul.f32.gmra.mxu0 %v1419
    %v1452 = vpop.f32.mrf.mxu0
    %v1453 = vadd.f32 0.0, %v1452
    %1454 = vdwg.mxu0
    %v1456 = vsel %vm1405, %v1375, 0
    %v1459 = vsel %vm1405, %v1376, 0
    %v1462 = vsel %vm1405, %v1377, 0
    %v1465 = vsel %vm1405, %v1378, 0
    %v1468 = vsel %vm1405, %v1379, 0
    %v1470 = vsel %vm550, %v1374, 0
    %1472 = vmatpush.msra.mxu0 0.0
    %1473 = vmatpush.msra.mxu0 0.0
    %1474 = vmatpush.msra.mxu0 0.0
    %1475 = vmatpush.msra.mxu0 0.0
    %1476 = vmatpush.msra.mxu0 0.0
    %1477 = vmatpush.msra.mxu0 0.0
    %1478 = vmatpush.msra.mxu0 0.0
    %1479 = vmatpush.msra.mxu0 0.0
    %1480 = vmatpush.msra.mxu0 0.0
    %1481 = vmatpush.msra.mxu0 0.0
    %1482 = vmatpush.msra.mxu0 0.0
    %1483 = vmatpush.msra.mxu0 %v1470
    %1484 = vmatpush.msra.mxu0 %v1373
    %1485 = vmatpush.msra.mxu0 %v1372
    %1486 = vmatpush.msra.mxu0 %v1371
    %1487 = vmatpush.msra.mxu0 %v1370
    %1488 = vmatmul.f32.gmra.mxu0 %v1456
    %v1489 = vpop.f32.mrf.mxu0
    %v1490 = vadd.f32 %v1441, %v1489
    %1491 = vmatmul.f32.gmra.mxu0 %v1459
    %v1492 = vpop.f32.mrf.mxu0
    %v1493 = vadd.f32 %v1444, %v1492
    %1494 = vmatmul.f32.gmra.mxu0 %v1462
    %v1495 = vpop.f32.mrf.mxu0
    %v1496 = vadd.f32 %v1447, %v1495
    %1497 = vmatmul.f32.gmra.mxu0 %v1465
    %v1498 = vpop.f32.mrf.mxu0
    %v1499 = vadd.f32 %v1450, %v1498
    %1500 = vmatmul.f32.gmra.mxu0 %v1468
    %v1501 = vpop.f32.mrf.mxu0
    %v1502 = vadd.f32 %v1453, %v1501
    %1503 = vdwg.mxu0
    %s1504 = scalar_lea.vmem [#allocation22], 80
    %v1505 = vld [vmem:[%s1504] sm:$0xff]
    %v1506 = vld [vmem:[%s1504 + $0x8] sm:$0xff]
    %v1507 = vld [vmem:[%s1504 + $0x10] sm:$0xff]
    %v1508 = vld [vmem:[%s1504 + $0x18] sm:$0xff]
    %v1509 = vld [vmem:[%s1504 + $0x20] sm:$0xf]
    %1510 = vrot.lane.b32.xlu0 %v1370, 126
    %v1511 = vpop.permute.xlu0 %1510
    %1512 = vrot.lane.b32.xlu0 %v1371, 126
    %v1513 = vpop.permute.xlu0 %1512
    %1514 = vrot.lane.b32.xlu0 %v1372, 126
    %v1515 = vpop.permute.xlu0 %1514
    %1516 = vrot.lane.b32.xlu0 %v1373, 126
    %v1517 = vpop.permute.xlu0 %1516
    %1518 = vrot.lane.b32.xlu0 %v1374, 126
    %v1519 = vpop.permute.xlu0 %1518
    %v1525 = vsel %vm1405, %v1505, 0
    %v1528 = vsel %vm1405, %v1506, 0
    %v1531 = vsel %vm1405, %v1507, 0
    %v1534 = vsel %vm1405, %v1508, 0
    %v1537 = vsel %vm1405, %v1509, 0
    %v1539 = vsel %vm550, %v1519, 0
    %1541 = vmatpush.msra.mxu0 0.0
    %1542 = vmatpush.msra.mxu0 0.0
    %1543 = vmatpush.msra.mxu0 0.0
    %1544 = vmatpush.msra.mxu0 0.0
    %1545 = vmatpush.msra.mxu0 0.0
    %1546 = vmatpush.msra.mxu0 0.0
    %1547 = vmatpush.msra.mxu0 0.0
    %1548 = vmatpush.msra.mxu0 0.0
    %1549 = vmatpush.msra.mxu0 0.0
    %1550 = vmatpush.msra.mxu0 0.0
    %1551 = vmatpush.msra.mxu0 0.0
    %1552 = vmatpush.msra.mxu0 %v1539
    %1553 = vmatpush.msra.mxu0 %v1517
    %1554 = vmatpush.msra.mxu0 %v1515
    %1555 = vmatpush.msra.mxu0 %v1513
    %1556 = vmatpush.msra.mxu0 %v1511
    %1557 = vmatmul.f32.gmra.mxu0 %v1525
    %v1558 = vpop.f32.mrf.mxu0
    %v1559 = vadd.f32 0.0, %v1558
    %1560 = vmatmul.f32.gmra.mxu0 %v1528
    %v1561 = vpop.f32.mrf.mxu0
    %v1562 = vadd.f32 0.0, %v1561
    %1563 = vmatmul.f32.gmra.mxu0 %v1531
    %v1564 = vpop.f32.mrf.mxu0
    %v1565 = vadd.f32 0.0, %v1564
    %1566 = vmatmul.f32.gmra.mxu0 %v1534
    %v1567 = vpop.f32.mrf.mxu0
    %v1568 = vadd.f32 0.0, %v1567
    %1569 = vmatmul.f32.gmra.mxu0 %v1537
    %v1570 = vpop.f32.mrf.mxu0
    %v1571 = vadd.f32 0.0, %v1570
    %1572 = vdwg.mxu0
    %v1573 = vadd.f32 %v1490, %v1559
    %v1574 = vadd.f32 %v1493, %v1562
    %v1575 = vadd.f32 %v1496, %v1565
    %v1576 = vadd.f32 %v1499, %v1568
    %v1577 = vadd.f32 %v1502, %v1571
    %v1578 = vld [vmem:[#allocation23] sm:$0xff]
    %v1579 = vld [vmem:[#allocation23 + $0x8] sm:$0xff]
    %v1580 = vld [vmem:[#allocation23 + $0x10] sm:$0xff]
    %v1581 = vld [vmem:[#allocation23 + $0x18] sm:$0xff]
    %v1582 = vld [vmem:[#allocation23 + $0x20] sm:$0xf]
    %1584 = vset.pattern.permute.xlu0 0
    %1585 = vperm.xlu0 %1584, %v1578
    %v1586 = vpop.permute.xlu0 %1585
    %1589 = vset.pattern.permute.xlu0 0
    %1590 = vperm.xlu0 %1589, %v1579
    %v1591 = vpop.permute.xlu0 %1590
    %1594 = vset.pattern.permute.xlu0 0
    %1595 = vperm.xlu0 %1594, %v1580
    %v1596 = vpop.permute.xlu0 %1595
    %1599 = vset.pattern.permute.xlu0 0
    %1600 = vperm.xlu0 %1599, %v1581
    %v1601 = vpop.permute.xlu0 %1600
    %1604 = vset.pattern.permute.xlu0 0
    %1605 = vperm.xlu0 %1604, %v1582
    %v1606 = vpop.permute.xlu0 %1605
    %v1608 = vadd.f32 %v1573, %v1586
    %v1609 = vadd.f32 %v1574, %v1591
    %v1610 = vadd.f32 %v1575, %v1596
    %v1611 = vadd.f32 %v1576, %v1601
    %v1612 = vadd.f32 %v1577, %v1606
    %v1613 = vmax.f32 %v1608, 0.0
    %v1614 = vmax.f32 %v1609, 0.0
    %v1615 = vmax.f32 %v1610, 0.0
    %v1616 = vmax.f32 %v1611, 0.0
    %v1617 = vmax.f32 %v1612, 0.0
    %1623 = vrot.lane.b32.xlu0 %v1613, 127
    %v1624 = vpop.permute.xlu0 %1623
    %1625 = vrot.lane.b32.xlu0 %v1614, 127
    %v1626 = vpop.permute.xlu0 %1625
    %1627 = vrot.lane.b32.xlu0 %v1615, 127
    %v1628 = vpop.permute.xlu0 %1627
    %1629 = vrot.lane.b32.xlu0 %v1616, 127
    %v1630 = vpop.permute.xlu0 %1629
    %1631 = vrot.lane.b32.xlu0 %v1617, 127
    %v1632 = vpop.permute.xlu0 %1631
    %v1638 = vmax.f32 %v1613, %v1624
    %v1639 = vmax.f32 %v1614, %v1626
    %v1640 = vmax.f32 %v1615, %v1628
    %v1641 = vmax.f32 %v1616, %v1630
    %v1642 = vmax.f32 %v1617, %v1632
    %1643 = vrot.lane.b32.xlu0 %v1613, 126
    %v1644 = vpop.permute.xlu0 %1643
    %1645 = vrot.lane.b32.xlu0 %v1614, 126
    %v1646 = vpop.permute.xlu0 %1645
    %1647 = vrot.lane.b32.xlu0 %v1615, 126
    %v1648 = vpop.permute.xlu0 %1647
    %1649 = vrot.lane.b32.xlu0 %v1616, 126
    %v1650 = vpop.permute.xlu0 %1649
    %1651 = vrot.lane.b32.xlu0 %v1617, 126
    %v1652 = vpop.permute.xlu0 %1651
    %v1658 = vmax.f32 %v1638, %v1644
    %v1659 = vmax.f32 %v1639, %v1646
    %v1660 = vmax.f32 %v1640, %v1648
    %v1661 = vmax.f32 %v1641, %v1650
    %v1662 = vmax.f32 %v1642, %v1652
    %1663 = vrot.lane.b32.xlu0 %v1613, 125
    %v1664 = vpop.permute.xlu0 %1663
    %1665 = vrot.lane.b32.xlu0 %v1614, 125
    %v1666 = vpop.permute.xlu0 %1665
    %1667 = vrot.lane.b32.xlu0 %v1615, 125
    %v1668 = vpop.permute.xlu0 %1667
    %1669 = vrot.lane.b32.xlu0 %v1616, 125
    %v1670 = vpop.permute.xlu0 %1669
    %1671 = vrot.lane.b32.xlu0 %v1617, 125
    %v1672 = vpop.permute.xlu0 %1671
    %v1678 = vmax.f32 %v1658, %v1664
    %v1679 = vmax.f32 %v1659, %v1666
    %v1680 = vmax.f32 %v1660, %v1668
    %v1681 = vmax.f32 %v1661, %v1670
    %v1682 = vmax.f32 %v1662, %v1672
    %v1683 = vld [vmem:[#allocation25] sm:$0xff]
    %v1684 = vld [vmem:[#allocation25 + $0x8] sm:$0x3]
    %vm1685 = vcmask 162816
    %v1687 = vsel %vm1685, %v1683, 0
    %v1690 = vsel %vm1685, %v1684, 0
    %v1693 = vsel %vm1685, %v1678, 0
    %v1696 = vsel %vm1685, %v1679, 0
    %v1699 = vsel %vm1685, %v1680, 0
    %v1702 = vsel %vm1685, %v1681, 0
    %v1705 = vsel %vm1685, %v1682, 0
    %1707 = vmatpush.xpose.msra.mxu0 0.0
    %1708 = vmatpush.xpose.msra.mxu0 0.0
    %1709 = vmatpush.xpose.msra.mxu0 0.0
    %1710 = vmatpush.xpose.msra.mxu0 0.0
    %1711 = vmatpush.xpose.msra.mxu0 0.0
    %1712 = vmatpush.xpose.msra.mxu0 0.0
    %1713 = vmatpush.xpose.msra.mxu0 0.0
    %1714 = vmatpush.xpose.msra.mxu0 0.0
    %1715 = vmatpush.xpose.msra.mxu0 0.0
    %1716 = vmatpush.xpose.msra.mxu0 0.0
    %1717 = vmatpush.xpose.msra.mxu0 0.0
    %1718 = vmatpush.xpose.msra.mxu0 %v1705
    %1719 = vmatpush.xpose.msra.mxu0 %v1702
    %1720 = vmatpush.xpose.msra.mxu0 %v1699
    %1721 = vmatpush.xpose.msra.mxu0 %v1696
    %1722 = vmatpush.xpose.msra.mxu0 %v1693
    %1723 = vmatmul.f32.gmra.mxu0 %v1687
    %v1724 = vpop.f32.mrf.mxu0
    %v1725 = vadd.f32 0.0, %v1724
    %1726 = vmatmul.f32.gmra.mxu0 %v1690
    %v1727 = vpop.f32.mrf.mxu0
    %v1728 = vadd.f32 0.0, %v1727
    %1729 = vdwg.mxu0
    %v1731 = vperm.slane %v402, 0
    %v1732 = vperm.slane %v402, 1
    %v1736 = vsel %vm1405, %v1725, 0
    %v1739 = vsel %vm1405, %v1728, 0
    %v1742 = vsel %vm550, %v384, 0
    %v1745 = vsel %vm550, %v385, 0
    %1747 = vmatpush.msra.mxu0 0.0
    %1748 = vmatpush.msra.mxu0 0.0
    %1749 = vmatpush.msra.mxu0 0.0
    %1750 = vmatpush.msra.mxu0 0.0
    %1751 = vmatpush.msra.mxu0 0.0
    %1752 = vmatpush.msra.mxu0 0.0
    %1753 = vmatpush.msra.mxu0 0.0
    %1754 = vmatpush.msra.mxu0 0.0
    %1755 = vmatpush.msra.mxu0 0.0
    %1756 = vmatpush.msra.mxu0 0.0
    %1757 = vmatpush.msra.mxu0 0.0
    %1758 = vmatpush.msra.mxu0 %v1742
    %1759 = vmatpush.msra.mxu0 %v382
    %1760 = vmatpush.msra.mxu0 %v380
    %1761 = vmatpush.msra.mxu0 %v378
    %1762 = vmatpush.msra.mxu0 %v376
    %1763 = vmatmul.f32.gmra.mxu0 %v1736
    %v1764 = vpop.f32.mrf.mxu0
    %v1765 = vadd.f32 %v1731, %v1764
    %1766 = vmatmul.f32.gmra.mxu0 %v1739
    %v1767 = vpop.f32.mrf.mxu0
    %v1768 = vadd.f32 %v1731, %v1767
    %1769 = vdwg.mxu0
    %1770 = vmatpush.msra.mxu0 0.0
    %1771 = vmatpush.msra.mxu0 0.0
    %1772 = vmatpush.msra.mxu0 0.0
    %1773 = vmatpush.msra.mxu0 0.0
    %1774 = vmatpush.msra.mxu0 0.0
    %1775 = vmatpush.msra.mxu0 0.0
    %1776 = vmatpush.msra.mxu0 0.0
    %1777 = vmatpush.msra.mxu0 0.0
    %1778 = vmatpush.msra.mxu0 0.0
    %1779 = vmatpush.msra.mxu0 0.0
    %1780 = vmatpush.msra.mxu0 0.0
    %1781 = vmatpush.msra.mxu0 %v1745
    %1782 = vmatpush.msra.mxu0 %v383
    %1783 = vmatpush.msra.mxu0 %v381
    %1784 = vmatpush.msra.mxu0 %v379
    %1785 = vmatpush.msra.mxu0 %v377
    %1786 = vmatmul.f32.gmra.mxu0 %v1736
    %v1787 = vpop.f32.mrf.mxu0
    %v1788 = vadd.f32 %v1732, %v1787
    %1789 = vmatmul.f32.gmra.mxu0 %v1739
    %v1790 = vpop.f32.mrf.mxu0
    %v1791 = vadd.f32 %v1732, %v1790
    %1792 = vdwg.mxu0
    %s1793 = scalar_lea.vmem %s0, 1
    %v1794 = vld [vmem:[%s1793] sm:$0x1]
    %v1796 = vperm.slane %v1794, 0
    %1797 = vrot.lane.b32.xlu0 %v1796, 127
    %v1798 = vpop.permute.xlu0 %1797
    %v1799 = vsel %vm420, %v1798, 0
    %1801 = vmatpush.msra.mxu0 0.0
    %1802 = vmatpush.msra.mxu0 0.0
    %1803 = vmatpush.msra.mxu0 0.0
    %1804 = vmatpush.msra.mxu0 0.0
    %1805 = vmatpush.msra.mxu0 0.0
    %1806 = vmatpush.msra.mxu0 0.0
    %1807 = vmatpush.msra.mxu0 0.0
    %1808 = vmatpush.msra.mxu0 0.0
    %1809 = vmatpush.msra.mxu0 0.0
    %1810 = vmatpush.msra.mxu0 0.0
    %1811 = vmatpush.msra.mxu0 0.0
    %1812 = vmatpush.msra.mxu0 0.0
    %1813 = vmatpush.msra.mxu0 0.0
    %1814 = vmatpush.msra.mxu0 0.0
    %1815 = vmatpush.msra.mxu0 0.0
    %1816 = vmatpush.msra.mxu0 %v1799
    %1817 = vmatmul.f32.gmra.mxu0 %v415
    %v1818 = vpop.f32.mrf.mxu0
    %v1819 = vadd.f32 0.0, %v1818
    %1820 = vmatmul.f32.gmra.mxu0 %v418
    %v1821 = vpop.f32.mrf.mxu0
    %v1822 = vadd.f32 0.0, %v1821
    %1823 = vdwg.mxu0
    %v1824 = vsel %vm420, %v1794, 0
    %1826 = vmatpush.msra.mxu0 0.0
    %1827 = vmatpush.msra.mxu0 0.0
    %1828 = vmatpush.msra.mxu0 0.0
    %1829 = vmatpush.msra.mxu0 0.0
    %1830 = vmatpush.msra.mxu0 0.0
    %1831 = vmatpush.msra.mxu0 0.0
    %1832 = vmatpush.msra.mxu0 0.0
    %1833 = vmatpush.msra.mxu0 0.0
    %1834 = vmatpush.msra.mxu0 0.0
    %1835 = vmatpush.msra.mxu0 0.0
    %1836 = vmatpush.msra.mxu0 0.0
    %1837 = vmatpush.msra.mxu0 0.0
    %1838 = vmatpush.msra.mxu0 0.0
    %1839 = vmatpush.msra.mxu0 0.0
    %1840 = vmatpush.msra.mxu0 0.0
    %1841 = vmatpush.msra.mxu0 %v1824
    %1842 = vmatmul.f32.gmra.mxu0 %v447
    %v1843 = vpop.f32.mrf.mxu0
    %v1844 = vadd.f32 %v1819, %v1843
    %1845 = vmatmul.f32.gmra.mxu0 %v450
    %v1846 = vpop.f32.mrf.mxu0
    %v1847 = vadd.f32 %v1822, %v1846
    %1848 = vdwg.mxu0
    %1849 = vrot.lane.b32.xlu0 %v1796, 126
    %v1850 = vpop.permute.xlu0 %1849
    %v1851 = vsel %vm420, %v1850, 0
    %1853 = vmatpush.msra.mxu0 0.0
    %1854 = vmatpush.msra.mxu0 0.0
    %1855 = vmatpush.msra.mxu0 0.0
    %1856 = vmatpush.msra.mxu0 0.0
    %1857 = vmatpush.msra.mxu0 0.0
    %1858 = vmatpush.msra.mxu0 0.0
    %1859 = vmatpush.msra.mxu0 0.0
    %1860 = vmatpush.msra.mxu0 0.0
    %1861 = vmatpush.msra.mxu0 0.0
    %1862 = vmatpush.msra.mxu0 0.0
    %1863 = vmatpush.msra.mxu0 0.0
    %1864 = vmatpush.msra.mxu0 0.0
    %1865 = vmatpush.msra.mxu0 0.0
    %1866 = vmatpush.msra.mxu0 0.0
    %1867 = vmatpush.msra.mxu0 0.0
    %1868 = vmatpush.msra.mxu0 %v1851
    %1869 = vmatmul.f32.gmra.mxu0 %v483
    %v1870 = vpop.f32.mrf.mxu0
    %v1871 = vadd.f32 0.0, %v1870
    %1872 = vmatmul.f32.gmra.mxu0 %v486
    %v1873 = vpop.f32.mrf.mxu0
    %v1874 = vadd.f32 0.0, %v1873
    %1875 = vdwg.mxu0
    %v1876 = vadd.f32 %v1844, %v1871
    %v1877 = vadd.f32 %v1847, %v1874
    %v1878 = vadd.f32 %v1876, %v520
    %v1879 = vadd.f32 %v1877, %v525
    %v1880 = vmax.f32 %v1878, 0.0
    %v1881 = vmax.f32 %v1879, 0.0
    %1884 = vrot.lane.b32.xlu0 %v1880, 127
    %v1885 = vpop.permute.xlu0 %1884
    %1886 = vrot.lane.b32.xlu0 %v1881, 127
    %v1887 = vpop.permute.xlu0 %1886
    %v1889 = vsel %vm550, %v1887, 0
    %1891 = vmatpush.msra.mxu0 0.0
    %1892 = vmatpush.msra.mxu0 0.0
    %1893 = vmatpush.msra.mxu0 0.0
    %1894 = vmatpush.msra.mxu0 0.0
    %1895 = vmatpush.msra.mxu0 0.0
    %1896 = vmatpush.msra.mxu0 0.0
    %1897 = vmatpush.msra.mxu0 0.0
    %1898 = vmatpush.msra.mxu0 0.0
    %1899 = vmatpush.msra.mxu0 0.0
    %1900 = vmatpush.msra.mxu0 0.0
    %1901 = vmatpush.msra.mxu0 0.0
    %1902 = vmatpush.msra.mxu0 0.0
    %1903 = vmatpush.msra.mxu0 0.0
    %1904 = vmatpush.msra.mxu0 0.0
    %1905 = vmatpush.msra.mxu0 %v1889
    %1906 = vmatpush.msra.mxu0 %v1885
    %1907 = vmatmul.f32.gmra.mxu0 %v545
    %v1908 = vpop.f32.mrf.mxu0
    %v1909 = vadd.f32 0.0, %v1908
    %1910 = vmatmul.f32.gmra.mxu0 %v548
    %v1911 = vpop.f32.mrf.mxu0
    %v1912 = vadd.f32 0.0, %v1911
    %1913 = vdwg.mxu0
    %v1914 = vsel %vm550, %v1881, 0
    %1916 = vmatpush.msra.mxu0 0.0
    %1917 = vmatpush.msra.mxu0 0.0
    %1918 = vmatpush.msra.mxu0 0.0
    %1919 = vmatpush.msra.mxu0 0.0
    %1920 = vmatpush.msra.mxu0 0.0
    %1921 = vmatpush.msra.mxu0 0.0
    %1922 = vmatpush.msra.mxu0 0.0
    %1923 = vmatpush.msra.mxu0 0.0
    %1924 = vmatpush.msra.mxu0 0.0
    %1925 = vmatpush.msra.mxu0 0.0
    %1926 = vmatpush.msra.mxu0 0.0
    %1927 = vmatpush.msra.mxu0 0.0
    %1928 = vmatpush.msra.mxu0 0.0
    %1929 = vmatpush.msra.mxu0 0.0
    %1930 = vmatpush.msra.mxu0 %v1914
    %1931 = vmatpush.msra.mxu0 %v1880
    %1932 = vmatmul.f32.gmra.mxu0 %v577
    %v1933 = vpop.f32.mrf.mxu0
    %v1934 = vadd.f32 %v1909, %v1933
    %1935 = vmatmul.f32.gmra.mxu0 %v580
    %v1936 = vpop.f32.mrf.mxu0
    %v1937 = vadd.f32 %v1912, %v1936
    %1938 = vdwg.mxu0
    %1939 = vrot.lane.b32.xlu0 %v1880, 126
    %v1940 = vpop.permute.xlu0 %1939
    %1941 = vrot.lane.b32.xlu0 %v1881, 126
    %v1942 = vpop.permute.xlu0 %1941
    %v1944 = vsel %vm550, %v1942, 0
    %1946 = vmatpush.msra.mxu0 0.0
    %1947 = vmatpush.msra.mxu0 0.0
    %1948 = vmatpush.msra.mxu0 0.0
    %1949 = vmatpush.msra.mxu0 0.0
    %1950 = vmatpush.msra.mxu0 0.0
    %1951 = vmatpush.msra.mxu0 0.0
    %1952 = vmatpush.msra.mxu0 0.0
    %1953 = vmatpush.msra.mxu0 0.0
    %1954 = vmatpush.msra.mxu0 0.0
    %1955 = vmatpush.msra.mxu0 0.0
    %1956 = vmatpush.msra.mxu0 0.0
    %1957 = vmatpush.msra.mxu0 0.0
    %1958 = vmatpush.msra.mxu0 0.0
    %1959 = vmatpush.msra.mxu0 0.0
    %1960 = vmatpush.msra.mxu0 %v1944
    %1961 = vmatpush.msra.mxu0 %v1940
    %1962 = vmatmul.f32.gmra.mxu0 %v616
    %v1963 = vpop.f32.mrf.mxu0
    %v1964 = vadd.f32 0.0, %v1963
    %1965 = vmatmul.f32.gmra.mxu0 %v619
    %v1966 = vpop.f32.mrf.mxu0
    %v1967 = vadd.f32 0.0, %v1966
    %1968 = vdwg.mxu0
    %v1969 = vadd.f32 %v1934, %v1964
    %v1970 = vadd.f32 %v1937, %v1967
    %v1971 = vadd.f32 %v1969, %v653
    %v1972 = vadd.f32 %v1970, %v658
    %v1973 = vmax.f32 %v1971, 0.0
    %v1974 = vmax.f32 %v1972, 0.0
    %1977 = vrot.lane.b32.xlu0 %v1973, 127
    %v1978 = vpop.permute.xlu0 %1977
    %1979 = vrot.lane.b32.xlu0 %v1974, 127
    %v1980 = vpop.permute.xlu0 %1979
    %v1983 = vmax.f32 %v1973, %v1978
    %v1984 = vmax.f32 %v1974, %v1980
    %1985 = vrot.lane.b32.xlu0 %v1973, 126
    %v1986 = vpop.permute.xlu0 %1985
    %1987 = vrot.lane.b32.xlu0 %v1974, 126
    %v1988 = vpop.permute.xlu0 %1987
    %v1991 = vmax.f32 %v1983, %v1986
    %v1992 = vmax.f32 %v1984, %v1988
    %1993 = vrot.lane.b32.xlu0 %v1973, 125
    %v1994 = vpop.permute.xlu0 %1993
    %1995 = vrot.lane.b32.xlu0 %v1974, 125
    %v1996 = vpop.permute.xlu0 %1995
    %v1999 = vmax.f32 %v1991, %v1994
    %v2000 = vmax.f32 %v1992, %v1996
    %v2002 = vsel %vm706, %v1999, 0
    %v2005 = vsel %vm706, %v2000, 0
    %2007 = vmatpush.msra.mxu0 %v714
    %2008 = vmatpush.msra.mxu0 %v704
    %2009 = vmatpush.msra.mxu0 %v703
    %2010 = vmatpush.msra.mxu0 %v702
    %2011 = vmatpush.msra.mxu0 %v701
    %2012 = vmatpush.msra.mxu0 %v700
    %2013 = vmatpush.msra.mxu0 %v699
    %2014 = vmatpush.msra.mxu0 %v698
    %2015 = vmatpush.msra.mxu0 %v697
    %2016 = vmatpush.msra.mxu0 %v696
    %2017 = vmatpush.msra.mxu0 %v695
    %2018 = vmatpush.msra.mxu0 %v694
    %2019 = vmatpush.msra.mxu0 %v693
    %2020 = vmatpush.msra.mxu0 %v692
    %2021 = vmatpush.msra.mxu0 %v691
    %2022 = vmatpush.msra.mxu0 %v690
    %2023 = vmatmul.f32.gmra.mxu0 %v2002
    %v2024 = vpop.f32.mrf.mxu0
    %v2025 = vadd.f32 0.0, %v2024
    %2026 = vmatmul.f32.gmra.mxu0 %v2005
    %v2027 = vpop.f32.mrf.mxu0
    %v2028 = vadd.f32 0.0, %v2027
    %2029 = vdwg.mxu0
    %2032 = vrot.lane.b32.xlu0 %v2025, 127
    %v2033 = vpop.permute.xlu0 %2032
    %2034 = vrot.lane.b32.xlu0 %v2028, 127
    %v2035 = vpop.permute.xlu0 %2034
    %v2037 = vsel %vm550, %v2035, 0
    %2039 = vmatpush.msra.mxu0 0.0
    %2040 = vmatpush.msra.mxu0 0.0
    %2041 = vmatpush.msra.mxu0 0.0
    %2042 = vmatpush.msra.mxu0 0.0
    %2043 = vmatpush.msra.mxu0 0.0
    %2044 = vmatpush.msra.mxu0 0.0
    %2045 = vmatpush.msra.mxu0 0.0
    %2046 = vmatpush.msra.mxu0 0.0
    %2047 = vmatpush.msra.mxu0 0.0
    %2048 = vmatpush.msra.mxu0 0.0
    %2049 = vmatpush.msra.mxu0 0.0
    %2050 = vmatpush.msra.mxu0 0.0
    %2051 = vmatpush.msra.mxu0 0.0
    %2052 = vmatpush.msra.mxu0 0.0
    %2053 = vmatpush.msra.mxu0 %v2037
    %2054 = vmatpush.msra.mxu0 %v2033
    %2055 = vmatmul.f32.gmra.mxu0 %v754
    %v2056 = vpop.f32.mrf.mxu0
    %v2057 = vadd.f32 0.0, %v2056
    %2058 = vmatmul.f32.gmra.mxu0 %v757
    %v2059 = vpop.f32.mrf.mxu0
    %v2060 = vadd.f32 0.0, %v2059
    %2061 = vmatmul.f32.gmra.mxu0 %v760
    %v2062 = vpop.f32.mrf.mxu0
    %v2063 = vadd.f32 0.0, %v2062
    %2064 = vdwg.mxu0
    %v2065 = vsel %vm550, %v2028, 0
    %2067 = vmatpush.msra.mxu0 0.0
    %2068 = vmatpush.msra.mxu0 0.0
    %2069 = vmatpush.msra.mxu0 0.0
    %2070 = vmatpush.msra.mxu0 0.0
    %2071 = vmatpush.msra.mxu0 0.0
    %2072 = vmatpush.msra.mxu0 0.0
    %2073 = vmatpush.msra.mxu0 0.0
    %2074 = vmatpush.msra.mxu0 0.0
    %2075 = vmatpush.msra.mxu0 0.0
    %2076 = vmatpush.msra.mxu0 0.0
    %2077 = vmatpush.msra.mxu0 0.0
    %2078 = vmatpush.msra.mxu0 0.0
    %2079 = vmatpush.msra.mxu0 0.0
    %2080 = vmatpush.msra.mxu0 0.0
    %2081 = vmatpush.msra.mxu0 %v2065
    %2082 = vmatpush.msra.mxu0 %v2025
    %2083 = vmatmul.f32.gmra.mxu0 %v791
    %v2084 = vpop.f32.mrf.mxu0
    %v2085 = vadd.f32 %v2057, %v2084
    %2086 = vmatmul.f32.gmra.mxu0 %v794
    %v2087 = vpop.f32.mrf.mxu0
    %v2088 = vadd.f32 %v2060, %v2087
    %2089 = vmatmul.f32.gmra.mxu0 %v797
    %v2090 = vpop.f32.mrf.mxu0
    %v2091 = vadd.f32 %v2063, %v2090
    %2092 = vdwg.mxu0
    %2093 = vrot.lane.b32.xlu0 %v2025, 126
    %v2094 = vpop.permute.xlu0 %2093
    %2095 = vrot.lane.b32.xlu0 %v2028, 126
    %v2096 = vpop.permute.xlu0 %2095
    %v2098 = vsel %vm550, %v2096, 0
    %2100 = vmatpush.msra.mxu0 0.0
    %2101 = vmatpush.msra.mxu0 0.0
    %2102 = vmatpush.msra.mxu0 0.0
    %2103 = vmatpush.msra.mxu0 0.0
    %2104 = vmatpush.msra.mxu0 0.0
    %2105 = vmatpush.msra.mxu0 0.0
    %2106 = vmatpush.msra.mxu0 0.0
    %2107 = vmatpush.msra.mxu0 0.0
    %2108 = vmatpush.msra.mxu0 0.0
    %2109 = vmatpush.msra.mxu0 0.0
    %2110 = vmatpush.msra.mxu0 0.0
    %2111 = vmatpush.msra.mxu0 0.0
    %2112 = vmatpush.msra.mxu0 0.0
    %2113 = vmatpush.msra.mxu0 0.0
    %2114 = vmatpush.msra.mxu0 %v2098
    %2115 = vmatpush.msra.mxu0 %v2094
    %2116 = vmatmul.f32.gmra.mxu0 %v837
    %v2117 = vpop.f32.mrf.mxu0
    %v2118 = vadd.f32 0.0, %v2117
    %2119 = vmatmul.f32.gmra.mxu0 %v840
    %v2120 = vpop.f32.mrf.mxu0
    %v2121 = vadd.f32 0.0, %v2120
    %2122 = vmatmul.f32.gmra.mxu0 %v843
    %v2123 = vpop.f32.mrf.mxu0
    %v2124 = vadd.f32 0.0, %v2123
    %2125 = vdwg.mxu0
    %v2126 = vadd.f32 %v2085, %v2118
    %v2127 = vadd.f32 %v2088, %v2121
    %v2128 = vadd.f32 %v2091, %v2124
    %v2129 = vadd.f32 %v2126, %v882
    %v2130 = vadd.f32 %v2127, %v887
    %v2131 = vadd.f32 %v2128, %v892
    %v2132 = vmax.f32 %v2129, 0.0
    %v2133 = vmax.f32 %v2130, 0.0
    %v2134 = vmax.f32 %v2131, 0.0
    %2138 = vrot.lane.b32.xlu0 %v2132, 127
    %v2139 = vpop.permute.xlu0 %2138
    %2140 = vrot.lane.b32.xlu0 %v2133, 127
    %v2141 = vpop.permute.xlu0 %2140
    %2142 = vrot.lane.b32.xlu0 %v2134, 127
    %v2143 = vpop.permute.xlu0 %2142
    %2147 = vmatpush.msra.mxu0 0.0
    %2148 = vmatpush.msra.mxu0 0.0
    %2149 = vmatpush.msra.mxu0 0.0
    %2150 = vmatpush.msra.mxu0 0.0
    %2151 = vmatpush.msra.mxu0 0.0
    %2152 = vmatpush.msra.mxu0 0.0
    %2153 = vmatpush.msra.mxu0 0.0
    %2154 = vmatpush.msra.mxu0 0.0
    %2155 = vmatpush.msra.mxu0 0.0
    %2156 = vmatpush.msra.mxu0 0.0
    %2157 = vmatpush.msra.mxu0 0.0
    %2158 = vmatpush.msra.mxu0 0.0
    %2159 = vmatpush.msra.mxu0 0.0
    %2160 = vmatpush.msra.mxu0 %v2143
    %2161 = vmatpush.msra.mxu0 %v2141
    %2162 = vmatpush.msra.mxu0 %v2139
    %2163 = vmatmul.f32.gmra.mxu0 %v921
    %v2164 = vpop.f32.mrf.mxu0
    %v2165 = vadd.f32 0.0, %v2164
    %2166 = vmatmul.f32.gmra.mxu0 %v924
    %v2167 = vpop.f32.mrf.mxu0
    %v2168 = vadd.f32 0.0, %v2167
    %2169 = vmatmul.f32.gmra.mxu0 %v927
    %v2170 = vpop.f32.mrf.mxu0
    %v2171 = vadd.f32 0.0, %v2170
    %2172 = vdwg.mxu0
    %2173 = vmatpush.msra.mxu0 0.0
    %2174 = vmatpush.msra.mxu0 0.0
    %2175 = vmatpush.msra.mxu0 0.0
    %2176 = vmatpush.msra.mxu0 0.0
    %2177 = vmatpush.msra.mxu0 0.0
    %2178 = vmatpush.msra.mxu0 0.0
    %2179 = vmatpush.msra.mxu0 0.0
    %2180 = vmatpush.msra.mxu0 0.0
    %2181 = vmatpush.msra.mxu0 0.0
    %2182 = vmatpush.msra.mxu0 0.0
    %2183 = vmatpush.msra.mxu0 0.0
    %2184 = vmatpush.msra.mxu0 0.0
    %2185 = vmatpush.msra.mxu0 0.0
    %2186 = vmatpush.msra.mxu0 %v2134
    %2187 = vmatpush.msra.mxu0 %v2133
    %2188 = vmatpush.msra.mxu0 %v2132
    %2189 = vmatmul.f32.gmra.mxu0 %v956
    %v2190 = vpop.f32.mrf.mxu0
    %v2191 = vadd.f32 %v2165, %v2190
    %2192 = vmatmul.f32.gmra.mxu0 %v959
    %v2193 = vpop.f32.mrf.mxu0
    %v2194 = vadd.f32 %v2168, %v2193
    %2195 = vmatmul.f32.gmra.mxu0 %v962
    %v2196 = vpop.f32.mrf.mxu0
    %v2197 = vadd.f32 %v2171, %v2196
    %2198 = vdwg.mxu0
    %2199 = vrot.lane.b32.xlu0 %v2132, 126
    %v2200 = vpop.permute.xlu0 %2199
    %2201 = vrot.lane.b32.xlu0 %v2133, 126
    %v2202 = vpop.permute.xlu0 %2201
    %2203 = vrot.lane.b32.xlu0 %v2134, 126
    %v2204 = vpop.permute.xlu0 %2203
    %2208 = vmatpush.msra.mxu0 0.0
    %2209 = vmatpush.msra.mxu0 0.0
    %2210 = vmatpush.msra.mxu0 0.0
    %2211 = vmatpush.msra.mxu0 0.0
    %2212 = vmatpush.msra.mxu0 0.0
    %2213 = vmatpush.msra.mxu0 0.0
    %2214 = vmatpush.msra.mxu0 0.0
    %2215 = vmatpush.msra.mxu0 0.0
    %2216 = vmatpush.msra.mxu0 0.0
    %2217 = vmatpush.msra.mxu0 0.0
    %2218 = vmatpush.msra.mxu0 0.0
    %2219 = vmatpush.msra.mxu0 0.0
    %2220 = vmatpush.msra.mxu0 0.0
    %2221 = vmatpush.msra.mxu0 %v2204
    %2222 = vmatpush.msra.mxu0 %v2202
    %2223 = vmatpush.msra.mxu0 %v2200
    %2224 = vmatmul.f32.gmra.mxu0 %v1004
    %v2225 = vpop.f32.mrf.mxu0
    %v2226 = vadd.f32 0.0, %v2225
    %2227 = vmatmul.f32.gmra.mxu0 %v1007
    %v2228 = vpop.f32.mrf.mxu0
    %v2229 = vadd.f32 0.0, %v2228
    %2230 = vmatmul.f32.gmra.mxu0 %v1010
    %v2231 = vpop.f32.mrf.mxu0
    %v2232 = vadd.f32 0.0, %v2231
    %2233 = vdwg.mxu0
    %v2234 = vadd.f32 %v2191, %v2226
    %v2235 = vadd.f32 %v2194, %v2229
    %v2236 = vadd.f32 %v2197, %v2232
    %v2237 = vadd.f32 %v2234, %v1047
    %v2238 = vadd.f32 %v2235, %v1052
    %v2239 = vadd.f32 %v2236, %v1057
    %v2240 = vmax.f32 %v2237, 0.0
    %v2241 = vmax.f32 %v2238, 0.0
    %v2242 = vmax.f32 %v2239, 0.0
    %2246 = vrot.lane.b32.xlu0 %v2240, 127
    %v2247 = vpop.permute.xlu0 %2246
    %2248 = vrot.lane.b32.xlu0 %v2241, 127
    %v2249 = vpop.permute.xlu0 %2248
    %2250 = vrot.lane.b32.xlu0 %v2242, 127
    %v2251 = vpop.permute.xlu0 %2250
    %v2255 = vmax.f32 %v2240, %v2247
    %v2256 = vmax.f32 %v2241, %v2249
    %v2257 = vmax.f32 %v2242, %v2251
    %2258 = vrot.lane.b32.xlu0 %v2240, 126
    %v2259 = vpop.permute.xlu0 %2258
    %2260 = vrot.lane.b32.xlu0 %v2241, 126
    %v2261 = vpop.permute.xlu0 %2260
    %2262 = vrot.lane.b32.xlu0 %v2242, 126
    %v2263 = vpop.permute.xlu0 %2262
    %v2267 = vmax.f32 %v2255, %v2259
    %v2268 = vmax.f32 %v2256, %v2261
    %v2269 = vmax.f32 %v2257, %v2263
    %2270 = vrot.lane.b32.xlu0 %v2240, 125
    %v2271 = vpop.permute.xlu0 %2270
    %2272 = vrot.lane.b32.xlu0 %v2241, 125
    %v2273 = vpop.permute.xlu0 %2272
    %2274 = vrot.lane.b32.xlu0 %v2242, 125
    %v2275 = vpop.permute.xlu0 %2274
    %v2279 = vmax.f32 %v2267, %v2271
    %v2280 = vmax.f32 %v2268, %v2273
    %v2281 = vmax.f32 %v2269, %v2275
    %v2283 = vsel %vm1111, %v2279, 0
    %v2286 = vsel %vm1111, %v2280, 0
    %v2289 = vsel %vm1111, %v2281, 0
    %2291 = vmatpush.msra.mxu0 0.0
    %2292 = vmatpush.msra.mxu0 0.0
    %2293 = vmatpush.msra.mxu0 0.0
    %2294 = vmatpush.msra.mxu0 0.0
    %2295 = vmatpush.msra.mxu0 0.0
    %2296 = vmatpush.msra.mxu0 0.0
    %2297 = vmatpush.msra.mxu0 0.0
    %2298 = vmatpush.msra.mxu0 0.0
    %2299 = vmatpush.msra.mxu0 0.0
    %2300 = vmatpush.msra.mxu0 %v1123
    %2301 = vmatpush.msra.mxu0 %v1109
    %2302 = vmatpush.msra.mxu0 %v1108
    %2303 = vmatpush.msra.mxu0 %v1107
    %2304 = vmatpush.msra.mxu0 %v1106
    %2305 = vmatpush.msra.mxu0 %v1105
    %2306 = vmatpush.msra.mxu0 %v1104
    %2307 = vmatmul.f32.gmra.mxu0 %v2283
    %v2308 = vpop.f32.mrf.mxu0
    %v2309 = vadd.f32 0.0, %v2308
    %2310 = vmatmul.f32.gmra.mxu0 %v2286
    %v2311 = vpop.f32.mrf.mxu0
    %v2312 = vadd.f32 0.0, %v2311
    %2313 = vmatmul.f32.gmra.mxu0 %v2289
    %v2314 = vpop.f32.mrf.mxu0
    %v2315 = vadd.f32 0.0, %v2314
    %2316 = vdwg.mxu0
    %2320 = vrot.lane.b32.xlu0 %v2309, 127
    %v2321 = vpop.permute.xlu0 %2320
    %2322 = vrot.lane.b32.xlu0 %v2312, 127
    %v2323 = vpop.permute.xlu0 %2322
    %2324 = vrot.lane.b32.xlu0 %v2315, 127
    %v2325 = vpop.permute.xlu0 %2324
    %2329 = vmatpush.msra.mxu0 0.0
    %2330 = vmatpush.msra.mxu0 0.0
    %2331 = vmatpush.msra.mxu0 0.0
    %2332 = vmatpush.msra.mxu0 0.0
    %2333 = vmatpush.msra.mxu0 0.0
    %2334 = vmatpush.msra.mxu0 0.0
    %2335 = vmatpush.msra.mxu0 0.0
    %2336 = vmatpush.msra.mxu0 0.0
    %2337 = vmatpush.msra.mxu0 0.0
    %2338 = vmatpush.msra.mxu0 0.0
    %2339 = vmatpush.msra.mxu0 0.0
    %2340 = vmatpush.msra.mxu0 0.0
    %2341 = vmatpush.msra.mxu0 0.0
    %2342 = vmatpush.msra.mxu0 %v2325
    %2343 = vmatpush.msra.mxu0 %v2323
    %2344 = vmatpush.msra.mxu0 %v2321
    %2345 = vmatmul.f32.gmra.mxu0 %v1175
    %v2346 = vpop.f32.mrf.mxu0
    %v2347 = vadd.f32 0.0, %v2346
    %2348 = vmatmul.f32.gmra.mxu0 %v1178
    %v2349 = vpop.f32.mrf.mxu0
    %v2350 = vadd.f32 0.0, %v2349
    %2351 = vmatmul.f32.gmra.mxu0 %v1181
    %v2352 = vpop.f32.mrf.mxu0
    %v2353 = vadd.f32 0.0, %v2352
    %2354 = vmatmul.f32.gmra.mxu0 %v1184
    %v2355 = vpop.f32.mrf.mxu0
    %v2356 = vadd.f32 0.0, %v2355
    %2357 = vmatmul.f32.gmra.mxu0 %v1187
    %v2358 = vpop.f32.mrf.mxu0
    %v2359 = vadd.f32 0.0, %v2358
    %2360 = vdwg.mxu0
    %2361 = vmatpush.msra.mxu0 0.0
    %2362 = vmatpush.msra.mxu0 0.0
    %2363 = vmatpush.msra.mxu0 0.0
    %2364 = vmatpush.msra.mxu0 0.0
    %2365 = vmatpush.msra.mxu0 0.0
    %2366 = vmatpush.msra.mxu0 0.0
    %2367 = vmatpush.msra.mxu0 0.0
    %2368 = vmatpush.msra.mxu0 0.0
    %2369 = vmatpush.msra.mxu0 0.0
    %2370 = vmatpush.msra.mxu0 0.0
    %2371 = vmatpush.msra.mxu0 0.0
    %2372 = vmatpush.msra.mxu0 0.0
    %2373 = vmatpush.msra.mxu0 0.0
    %2374 = vmatpush.msra.mxu0 %v2315
    %2375 = vmatpush.msra.mxu0 %v2312
    %2376 = vmatpush.msra.mxu0 %v2309
    %2377 = vmatmul.f32.gmra.mxu0 %v1222
    %v2378 = vpop.f32.mrf.mxu0
    %v2379 = vadd.f32 %v2347, %v2378
    %2380 = vmatmul.f32.gmra.mxu0 %v1225
    %v2381 = vpop.f32.mrf.mxu0
    %v2382 = vadd.f32 %v2350, %v2381
    %2383 = vmatmul.f32.gmra.mxu0 %v1228
    %v2384 = vpop.f32.mrf.mxu0
    %v2385 = vadd.f32 %v2353, %v2384
    %2386 = vmatmul.f32.gmra.mxu0 %v1231
    %v2387 = vpop.f32.mrf.mxu0
    %v2388 = vadd.f32 %v2356, %v2387
    %2389 = vmatmul.f32.gmra.mxu0 %v1234
    %v2390 = vpop.f32.mrf.mxu0
    %v2391 = vadd.f32 %v2359, %v2390
    %2392 = vdwg.mxu0
    %2393 = vrot.lane.b32.xlu0 %v2309, 126
    %v2394 = vpop.permute.xlu0 %2393
    %2395 = vrot.lane.b32.xlu0 %v2312, 126
    %v2396 = vpop.permute.xlu0 %2395
    %2397 = vrot.lane.b32.xlu0 %v2315, 126
    %v2398 = vpop.permute.xlu0 %2397
    %2402 = vmatpush.msra.mxu0 0.0
    %2403 = vmatpush.msra.mxu0 0.0
    %2404 = vmatpush.msra.mxu0 0.0
    %2405 = vmatpush.msra.mxu0 0.0
    %2406 = vmatpush.msra.mxu0 0.0
    %2407 = vmatpush.msra.mxu0 0.0
    %2408 = vmatpush.msra.mxu0 0.0
    %2409 = vmatpush.msra.mxu0 0.0
    %2410 = vmatpush.msra.mxu0 0.0
    %2411 = vmatpush.msra.mxu0 0.0
    %2412 = vmatpush.msra.mxu0 0.0
    %2413 = vmatpush.msra.mxu0 0.0
    %2414 = vmatpush.msra.mxu0 0.0
    %2415 = vmatpush.msra.mxu0 %v2398
    %2416 = vmatpush.msra.mxu0 %v2396
    %2417 = vmatpush.msra.mxu0 %v2394
    %2418 = vmatmul.f32.gmra.mxu0 %v1284
    %v2419 = vpop.f32.mrf.mxu0
    %v2420 = vadd.f32 0.0, %v2419
    %2421 = vmatmul.f32.gmra.mxu0 %v1287
    %v2422 = vpop.f32.mrf.mxu0
    %v2423 = vadd.f32 0.0, %v2422
    %2424 = vmatmul.f32.gmra.mxu0 %v1290
    %v2425 = vpop.f32.mrf.mxu0
    %v2426 = vadd.f32 0.0, %v2425
    %2427 = vmatmul.f32.gmra.mxu0 %v1293
    %v2428 = vpop.f32.mrf.mxu0
    %v2429 = vadd.f32 0.0, %v2428
    %2430 = vmatmul.f32.gmra.mxu0 %v1296
    %v2431 = vpop.f32.mrf.mxu0
    %v2432 = vadd.f32 0.0, %v2431
    %2433 = vdwg.mxu0
    %v2434 = vadd.f32 %v2379, %v2420
    %v2435 = vadd.f32 %v2382, %v2423
    %v2436 = vadd.f32 %v2385, %v2426
    %v2437 = vadd.f32 %v2388, %v2429
    %v2438 = vadd.f32 %v2391, %v2432
    %v2439 = vadd.f32 %v2434, %v1343
    %v2440 = vadd.f32 %v2435, %v1348
    %v2441 = vadd.f32 %v2436, %v1353
    %v2442 = vadd.f32 %v2437, %v1358
    %v2443 = vadd.f32 %v2438, %v1363
    %v2444 = vmax.f32 %v2439, 0.0
    %v2445 = vmax.f32 %v2440, 0.0
    %v2446 = vmax.f32 %v2441, 0.0
    %v2447 = vmax.f32 %v2442, 0.0
    %v2448 = vmax.f32 %v2443, 0.0
    %2454 = vrot.lane.b32.xlu0 %v2444, 127
    %v2455 = vpop.permute.xlu0 %2454
    %2456 = vrot.lane.b32.xlu0 %v2445, 127
    %v2457 = vpop.permute.xlu0 %2456
    %2458 = vrot.lane.b32.xlu0 %v2446, 127
    %v2459 = vpop.permute.xlu0 %2458
    %2460 = vrot.lane.b32.xlu0 %v2447, 127
    %v2461 = vpop.permute.xlu0 %2460
    %2462 = vrot.lane.b32.xlu0 %v2448, 127
    %v2463 = vpop.permute.xlu0 %2462
    %v2468 = vsel %vm550, %v2463, 0
    %2470 = vmatpush.msra.mxu0 0.0
    %2471 = vmatpush.msra.mxu0 0.0
    %2472 = vmatpush.msra.mxu0 0.0
    %2473 = vmatpush.msra.mxu0 0.0
    %2474 = vmatpush.msra.mxu0 0.0
    %2475 = vmatpush.msra.mxu0 0.0
    %2476 = vmatpush.msra.mxu0 0.0
    %2477 = vmatpush.msra.mxu0 0.0
    %2478 = vmatpush.msra.mxu0 0.0
    %2479 = vmatpush.msra.mxu0 0.0
    %2480 = vmatpush.msra.mxu0 0.0
    %2481 = vmatpush.msra.mxu0 %v2468
    %2482 = vmatpush.msra.mxu0 %v2461
    %2483 = vmatpush.msra.mxu0 %v2459
    %2484 = vmatpush.msra.mxu0 %v2457
    %2485 = vmatpush.msra.mxu0 %v2455
    %2486 = vmatmul.f32.gmra.mxu0 %v1407
    %v2487 = vpop.f32.mrf.mxu0
    %v2488 = vadd.f32 0.0, %v2487
    %2489 = vmatmul.f32.gmra.mxu0 %v1410
    %v2490 = vpop.f32.mrf.mxu0
    %v2491 = vadd.f32 0.0, %v2490
    %2492 = vmatmul.f32.gmra.mxu0 %v1413
    %v2493 = vpop.f32.mrf.mxu0
    %v2494 = vadd.f32 0.0, %v2493
    %2495 = vmatmul.f32.gmra.mxu0 %v1416
    %v2496 = vpop.f32.mrf.mxu0
    %v2497 = vadd.f32 0.0, %v2496
    %2498 = vmatmul.f32.gmra.mxu0 %v1419
    %v2499 = vpop.f32.mrf.mxu0
    %v2500 = vadd.f32 0.0, %v2499
    %2501 = vdwg.mxu0
    %v2502 = vsel %vm550, %v2448, 0
    %2504 = vmatpush.msra.mxu0 0.0
    %2505 = vmatpush.msra.mxu0 0.0
    %2506 = vmatpush.msra.mxu0 0.0
    %2507 = vmatpush.msra.mxu0 0.0
    %2508 = vmatpush.msra.mxu0 0.0
    %2509 = vmatpush.msra.mxu0 0.0
    %2510 = vmatpush.msra.mxu0 0.0
    %2511 = vmatpush.msra.mxu0 0.0
    %2512 = vmatpush.msra.mxu0 0.0
    %2513 = vmatpush.msra.mxu0 0.0
    %2514 = vmatpush.msra.mxu0 0.0
    %2515 = vmatpush.msra.mxu0 %v2502
    %2516 = vmatpush.msra.mxu0 %v2447
    %2517 = vmatpush.msra.mxu0 %v2446
    %2518 = vmatpush.msra.mxu0 %v2445
    %2519 = vmatpush.msra.mxu0 %v2444
    %2520 = vmatmul.f32.gmra.mxu0 %v1456
    %v2521 = vpop.f32.mrf.mxu0
    %v2522 = vadd.f32 %v2488, %v2521
    %2523 = vmatmul.f32.gmra.mxu0 %v1459
    %v2524 = vpop.f32.mrf.mxu0
    %v2525 = vadd.f32 %v2491, %v2524
    %2526 = vmatmul.f32.gmra.mxu0 %v1462
    %v2527 = vpop.f32.mrf.mxu0
    %v2528 = vadd.f32 %v2494, %v2527
    %2529 = vmatmul.f32.gmra.mxu0 %v1465
    %v2530 = vpop.f32.mrf.mxu0
    %v2531 = vadd.f32 %v2497, %v2530
    %2532 = vmatmul.f32.gmra.mxu0 %v1468
    %v2533 = vpop.f32.mrf.mxu0
    %v2534 = vadd.f32 %v2500, %v2533
    %2535 = vdwg.mxu0
    %2536 = vrot.lane.b32.xlu0 %v2444, 126
    %v2537 = vpop.permute.xlu0 %2536
    %2538 = vrot.lane.b32.xlu0 %v2445, 126
    %v2539 = vpop.permute.xlu0 %2538
    %2540 = vrot.lane.b32.xlu0 %v2446, 126
    %v2541 = vpop.permute.xlu0 %2540
    %2542 = vrot.lane.b32.xlu0 %v2447, 126
    %v2543 = vpop.permute.xlu0 %2542
    %2544 = vrot.lane.b32.xlu0 %v2448, 126
    %v2545 = vpop.permute.xlu0 %2544
    %v2550 = vsel %vm550, %v2545, 0
    %2552 = vmatpush.msra.mxu0 0.0
    %2553 = vmatpush.msra.mxu0 0.0
    %2554 = vmatpush.msra.mxu0 0.0
    %2555 = vmatpush.msra.mxu0 0.0
    %2556 = vmatpush.msra.mxu0 0.0
    %2557 = vmatpush.msra.mxu0 0.0
    %2558 = vmatpush.msra.mxu0 0.0
    %2559 = vmatpush.msra.mxu0 0.0
    %2560 = vmatpush.msra.mxu0 0.0
    %2561 = vmatpush.msra.mxu0 0.0
    %2562 = vmatpush.msra.mxu0 0.0
    %2563 = vmatpush.msra.mxu0 %v2550
    %2564 = vmatpush.msra.mxu0 %v2543
    %2565 = vmatpush.msra.mxu0 %v2541
    %2566 = vmatpush.msra.mxu0 %v2539
    %2567 = vmatpush.msra.mxu0 %v2537
    %2568 = vmatmul.f32.gmra.mxu0 %v1525
    %v2569 = vpop.f32.mrf.mxu0
    %v2570 = vadd.f32 0.0, %v2569
    %2571 = vmatmul.f32.gmra.mxu0 %v1528
    %v2572 = vpop.f32.mrf.mxu0
    %v2573 = vadd.f32 0.0, %v2572
    %2574 = vmatmul.f32.gmra.mxu0 %v1531
    %v2575 = vpop.f32.mrf.mxu0
    %v2576 = vadd.f32 0.0, %v2575
    %2577 = vmatmul.f32.gmra.mxu0 %v1534
    %v2578 = vpop.f32.mrf.mxu0
    %v2579 = vadd.f32 0.0, %v2578
    %2580 = vmatmul.f32.gmra.mxu0 %v1537
    %v2581 = vpop.f32.mrf.mxu0
    %v2582 = vadd.f32 0.0, %v2581
    %2583 = vdwg.mxu0
    %v2584 = vadd.f32 %v2522, %v2570
    %v2585 = vadd.f32 %v2525, %v2573
    %v2586 = vadd.f32 %v2528, %v2576
    %v2587 = vadd.f32 %v2531, %v2579
    %v2588 = vadd.f32 %v2534, %v2582
    %v2589 = vadd.f32 %v2584, %v1586
    %v2590 = vadd.f32 %v2585, %v1591
    %v2591 = vadd.f32 %v2586, %v1596
    %v2592 = vadd.f32 %v2587, %v1601
    %v2593 = vadd.f32 %v2588, %v1606
    %v2594 = vmax.f32 %v2589, 0.0
    %v2595 = vmax.f32 %v2590, 0.0
    %v2596 = vmax.f32 %v2591, 0.0
    %v2597 = vmax.f32 %v2592, 0.0
    %v2598 = vmax.f32 %v2593, 0.0
    %2604 = vrot.lane.b32.xlu0 %v2594, 127
    %v2605 = vpop.permute.xlu0 %2604
    %2606 = vrot.lane.b32.xlu0 %v2595, 127
    %v2607 = vpop.permute.xlu0 %2606
    %2608 = vrot.lane.b32.xlu0 %v2596, 127
    %v2609 = vpop.permute.xlu0 %2608
    %2610 = vrot.lane.b32.xlu0 %v2597, 127
    %v2611 = vpop.permute.xlu0 %2610
    %2612 = vrot.lane.b32.xlu0 %v2598, 127
    %v2613 = vpop.permute.xlu0 %2612
    %v2619 = vmax.f32 %v2594, %v2605
    %v2620 = vmax.f32 %v2595, %v2607
    %v2621 = vmax.f32 %v2596, %v2609
    %v2622 = vmax.f32 %v2597, %v2611
    %v2623 = vmax.f32 %v2598, %v2613
    %2624 = vrot.lane.b32.xlu0 %v2594, 126
    %v2625 = vpop.permute.xlu0 %2624
    %2626 = vrot.lane.b32.xlu0 %v2595, 126
    %v2627 = vpop.permute.xlu0 %2626
    %2628 = vrot.lane.b32.xlu0 %v2596, 126
    %v2629 = vpop.permute.xlu0 %2628
    %2630 = vrot.lane.b32.xlu0 %v2597, 126
    %v2631 = vpop.permute.xlu0 %2630
    %2632 = vrot.lane.b32.xlu0 %v2598, 126
    %v2633 = vpop.permute.xlu0 %2632
    %v2639 = vmax.f32 %v2619, %v2625
    %v2640 = vmax.f32 %v2620, %v2627
    %v2641 = vmax.f32 %v2621, %v2629
    %v2642 = vmax.f32 %v2622, %v2631
    %v2643 = vmax.f32 %v2623, %v2633
    %2644 = vrot.lane.b32.xlu0 %v2594, 125
    %v2645 = vpop.permute.xlu0 %2644
    %2646 = vrot.lane.b32.xlu0 %v2595, 125
    %v2647 = vpop.permute.xlu0 %2646
    %2648 = vrot.lane.b32.xlu0 %v2596, 125
    %v2649 = vpop.permute.xlu0 %2648
    %2650 = vrot.lane.b32.xlu0 %v2597, 125
    %v2651 = vpop.permute.xlu0 %2650
    %2652 = vrot.lane.b32.xlu0 %v2598, 125
    %v2653 = vpop.permute.xlu0 %2652
    %v2659 = vmax.f32 %v2639, %v2645
    %v2660 = vmax.f32 %v2640, %v2647
    %v2661 = vmax.f32 %v2641, %v2649
    %v2662 = vmax.f32 %v2642, %v2651
    %v2663 = vmax.f32 %v2643, %v2653
    %v2665 = vsel %vm1685, %v2659, 0
    %v2668 = vsel %vm1685, %v2660, 0
    %v2671 = vsel %vm1685, %v2661, 0
    %v2674 = vsel %vm1685, %v2662, 0
    %v2677 = vsel %vm1685, %v2663, 0
    %2679 = vmatpush.xpose.msra.mxu0 0.0
    %2680 = vmatpush.xpose.msra.mxu0 0.0
    %2681 = vmatpush.xpose.msra.mxu0 0.0
    %2682 = vmatpush.xpose.msra.mxu0 0.0
    %2683 = vmatpush.xpose.msra.mxu0 0.0
    %2684 = vmatpush.xpose.msra.mxu0 0.0
    %2685 = vmatpush.xpose.msra.mxu0 0.0
    %2686 = vmatpush.xpose.msra.mxu0 0.0
    %2687 = vmatpush.xpose.msra.mxu0 0.0
    %2688 = vmatpush.xpose.msra.mxu0 0.0
    %2689 = vmatpush.xpose.msra.mxu0 0.0
    %2690 = vmatpush.xpose.msra.mxu0 %v2677
    %2691 = vmatpush.xpose.msra.mxu0 %v2674
    %2692 = vmatpush.xpose.msra.mxu0 %v2671
    %2693 = vmatpush.xpose.msra.mxu0 %v2668
    %2694 = vmatpush.xpose.msra.mxu0 %v2665
    %2695 = vmatmul.f32.gmra.mxu0 %v1687
    %v2696 = vpop.f32.mrf.mxu0
    %v2697 = vadd.f32 0.0, %v2696
    %2698 = vmatmul.f32.gmra.mxu0 %v1690
    %v2699 = vpop.f32.mrf.mxu0
    %v2700 = vadd.f32 0.0, %v2699
    %2701 = vdwg.mxu0
    %v2703 = vsel %vm1405, %v2697, 0
    %v2706 = vsel %vm1405, %v2700, 0
    %2708 = vmatpush.msra.mxu0 0.0
    %2709 = vmatpush.msra.mxu0 0.0
    %2710 = vmatpush.msra.mxu0 0.0
    %2711 = vmatpush.msra.mxu0 0.0
    %2712 = vmatpush.msra.mxu0 0.0
    %2713 = vmatpush.msra.mxu0 0.0
    %2714 = vmatpush.msra.mxu0 0.0
    %2715 = vmatpush.msra.mxu0 0.0
    %2716 = vmatpush.msra.mxu0 0.0
    %2717 = vmatpush.msra.mxu0 0.0
    %2718 = vmatpush.msra.mxu0 0.0
    %2719 = vmatpush.msra.mxu0 %v1742
    %2720 = vmatpush.msra.mxu0 %v382
    %2721 = vmatpush.msra.mxu0 %v380
    %2722 = vmatpush.msra.mxu0 %v378
    %2723 = vmatpush.msra.mxu0 %v376
    %2724 = vmatmul.f32.gmra.mxu0 %v2703
    %v2725 = vpop.f32.mrf.mxu0
    %v2726 = vadd.f32 %v1731, %v2725
    %2727 = vmatmul.f32.gmra.mxu0 %v2706
    %v2728 = vpop.f32.mrf.mxu0
    %v2729 = vadd.f32 %v1731, %v2728
    %2730 = vdwg.mxu0
    %2731 = vmatpush.msra.mxu0 0.0
    %2732 = vmatpush.msra.mxu0 0.0
    %2733 = vmatpush.msra.mxu0 0.0
    %2734 = vmatpush.msra.mxu0 0.0
    %2735 = vmatpush.msra.mxu0 0.0
    %2736 = vmatpush.msra.mxu0 0.0
    %2737 = vmatpush.msra.mxu0 0.0
    %2738 = vmatpush.msra.mxu0 0.0
    %2739 = vmatpush.msra.mxu0 0.0
    %2740 = vmatpush.msra.mxu0 0.0
    %2741 = vmatpush.msra.mxu0 0.0
    %2742 = vmatpush.msra.mxu0 %v1745
    %2743 = vmatpush.msra.mxu0 %v383
    %2744 = vmatpush.msra.mxu0 %v381
    %2745 = vmatpush.msra.mxu0 %v379
    %2746 = vmatpush.msra.mxu0 %v377
    %2747 = vmatmul.f32.gmra.mxu0 %v2703
    %v2748 = vpop.f32.mrf.mxu0
    %v2749 = vadd.f32 %v1732, %v2748
    %2750 = vmatmul.f32.gmra.mxu0 %v2706
    %v2751 = vpop.f32.mrf.mxu0
    %v2752 = vadd.f32 %v1732, %v2751
    %2753 = vdwg.mxu0
    %vm2754 = vcmask 523264
    %v2756 = vsel %vm2754, 0.0, 0
    %2758 = vmatpush.msra.mxu0 0.0
    %2759 = vmatpush.msra.mxu0 0.0
    %2760 = vmatpush.msra.mxu0 0.0
    %2761 = vmatpush.msra.mxu0 0.0
    %2762 = vmatpush.msra.mxu0 0.0
    %2763 = vmatpush.msra.mxu0 0.0
    %2764 = vmatpush.msra.mxu0 0.0
    %2765 = vmatpush.msra.mxu0 0.0
    %2766 = vmatpush.msra.mxu0 %v400
    %2767 = vmatpush.msra.mxu0 %v398
    %2768 = vmatpush.msra.mxu0 %v396
    %2769 = vmatpush.msra.mxu0 %v394
    %2770 = vmatpush.msra.mxu0 %v392
    %2771 = vmatpush.msra.mxu0 %v390
    %2772 = vmatpush.msra.mxu0 %v388
    %2773 = vmatpush.msra.mxu0 %v386
    %2774 = vmatmul.f32.gmra.mxu0 %v2756
    %v2775 = vpop.f32.mrf.mxu0
    %v2776 = vadd.f32 0.0, %v2775
    %2777 = vdwg.mxu0
    %2778 = vmatpush.msra.mxu0 0.0
    %2779 = vmatpush.msra.mxu0 0.0
    %2780 = vmatpush.msra.mxu0 0.0
    %2781 = vmatpush.msra.mxu0 0.0
    %2782 = vmatpush.msra.mxu0 0.0
    %2783 = vmatpush.msra.mxu0 0.0
    %2784 = vmatpush.msra.mxu0 0.0
    %2785 = vmatpush.msra.mxu0 0.0
    %2786 = vmatpush.msra.mxu0 %v401
    %2787 = vmatpush.msra.mxu0 %v399
    %2788 = vmatpush.msra.mxu0 %v397
    %2789 = vmatpush.msra.mxu0 %v395
    %2790 = vmatpush.msra.mxu0 %v393
    %2791 = vmatpush.msra.mxu0 %v391
    %2792 = vmatpush.msra.mxu0 %v389
    %2793 = vmatpush.msra.mxu0 %v387
    %2794 = vmatmul.f32.gmra.mxu0 %v2756
    %v2795 = vpop.f32.mrf.mxu0
    %v2796 = vadd.f32 0.0, %v2795
    %2797 = vdwg.mxu0
    %v2798 = vadd.f32 %v1765, %v2776
    %v2799 = vadd.f32 %v1788, %v2796
    %v2800 = vxor.u32 %v2798, 2147483648
    %v2801 = vmul.f32 %v2800, 1.442695
    %v2802 = vpow.pop %v2801
    %v2803 = vadd.f32 %v2802, 1.0
    %v2804 = vrcp.pop %v2803
    %v2805 = vmul.f32 %v2803, %v2804
    %v2806 = vsub.f32 1.0, %v2805
    %v2807 = vmul.f32 %v2804, %v2806
    %v2808 = vadd.f32 %v2804, %v2807
    %vm2809 = vweird.f32 %v2803
    %vm2810 = vweird.f32 %v2804
    %vm2811 = vmor %vm2809, %vm2810
    %v2812 = vsel %vm2811, %v2804, %v2808
    %v2813 = vand.u32 2147483647, %v2803
    %vm2814 = vcmp.eq.f32.partialorder %v2813, 8.507059e+37
    %v2815 = vand.u32 %v2803, 2147483648
    %v2816 = vor.u32 1.1754944e-38, %v2815
    %v2817 = vsel %vm2814, %v2816, %v2812
    %v2818 = vmul.f32 1.0, %v2817
    %v2819 = vtanh.pop %v2799
    %v2820 = vxor.u32 %v2799, 2147483648
    %v2821 = vmul.f32 %v2820, 1.442695
    %v2822 = vpow.pop %v2821
    %v2823 = vadd.f32 %v2822, 1.0
    %v2824 = vrcp.pop %v2823
    %v2825 = vmul.f32 %v2823, %v2824
    %v2826 = vsub.f32 1.0, %v2825
    %v2827 = vmul.f32 %v2824, %v2826
    %v2828 = vadd.f32 %v2824, %v2827
    %vm2829 = vweird.f32 %v2823
    %vm2830 = vweird.f32 %v2824
    %vm2831 = vmor %vm2829, %vm2830
    %v2832 = vsel %vm2831, %v2824, %v2828
    %v2833 = vand.u32 2147483647, %v2823
    %vm2834 = vcmp.eq.f32.partialorder %v2833, 8.507059e+37
    %v2835 = vand.u32 %v2823, 2147483648
    %v2836 = vor.u32 1.1754944e-38, %v2835
    %v2837 = vsel %vm2834, %v2836, %v2832
    %v2838 = vmul.f32 1.0, %v2837
    %v2839 = vmul.f32 %v2818, 0.0
    %v2840 = vmul.f32 %v2818, %v2819
    %2842 = vrot.lane.b32.xlu0 %v2840, 64
    %v2843 = vpop.permute.xlu0 %2842
    %v2845 = vadd.f32 %v2839, %v2843
    %v2846 = vtanh.pop %v2845
    %v2847 = vmul.f32 %v2838, %v2846
    %v2848 = vadd.f32 %v2847, 0.0
    %v2849 = vadd.f32 %v2726, %v2776
    %v2850 = vadd.f32 %v2749, %v2796
    %v2851 = vxor.u32 %v2849, 2147483648
    %v2852 = vmul.f32 %v2851, 1.442695
    %v2853 = vpow.pop %v2852
    %v2854 = vadd.f32 %v2853, 1.0
    %v2855 = vrcp.pop %v2854
    %v2856 = vmul.f32 %v2854, %v2855
    %v2857 = vsub.f32 1.0, %v2856
    %v2858 = vmul.f32 %v2855, %v2857
    %v2859 = vadd.f32 %v2855, %v2858
    %vm2860 = vweird.f32 %v2854
    %vm2861 = vweird.f32 %v2855
    %vm2862 = vmor %vm2860, %vm2861
    %v2863 = vsel %vm2862, %v2855, %v2859
    %v2864 = vand.u32 2147483647, %v2854
    %vm2865 = vcmp.eq.f32.partialorder %v2864, 8.507059e+37
    %v2866 = vand.u32 %v2854, 2147483648
    %v2867 = vor.u32 1.1754944e-38, %v2866
    %v2868 = vsel %vm2865, %v2867, %v2863
    %v2869 = vmul.f32 1.0, %v2868
    %v2870 = vtanh.pop %v2850
    %v2871 = vxor.u32 %v2850, 2147483648
    %v2872 = vmul.f32 %v2871, 1.442695
    %v2873 = vpow.pop %v2872
    %v2874 = vadd.f32 %v2873, 1.0
    %v2875 = vrcp.pop %v2874
    %v2876 = vmul.f32 %v2874, %v2875
    %v2877 = vsub.f32 1.0, %v2876
    %v2878 = vmul.f32 %v2875, %v2877
    %v2879 = vadd.f32 %v2875, %v2878
    %vm2880 = vweird.f32 %v2874
    %vm2881 = vweird.f32 %v2875
    %vm2882 = vmor %vm2880, %vm2881
    %v2883 = vsel %vm2882, %v2875, %v2879
    %v2884 = vand.u32 2147483647, %v2874
    %vm2885 = vcmp.eq.f32.partialorder %v2884, 8.507059e+37
    %v2886 = vand.u32 %v2874, 2147483648
    %v2887 = vor.u32 1.1754944e-38, %v2886
    %v2888 = vsel %vm2885, %v2887, %v2883
    %v2889 = vmul.f32 1.0, %v2888
    %v2890 = vmul.f32 %v2869, 0.0
    %v2891 = vmul.f32 %v2869, %v2870
    %2893 = vrot.lane.b32.xlu0 %v2891, 64
    %v2894 = vpop.permute.xlu0 %2893
    %v2896 = vadd.f32 %v2890, %v2894
    %v2897 = vtanh.pop %v2896
    %v2898 = vmul.f32 %v2889, %v2897
    %v2899 = vadd.f32 %v2898, 0.0
    %2901 = vrot.lane.b32.xlu0 %v2847, 64
    %v2902 = vpop.permute.xlu0 %2901
    %v2903 = vsel %vm2754, %v2902, 0
    %2905 = vmatpush.msra.mxu0 0.0
    %2906 = vmatpush.msra.mxu0 0.0
    %2907 = vmatpush.msra.mxu0 0.0
    %2908 = vmatpush.msra.mxu0 0.0
    %2909 = vmatpush.msra.mxu0 0.0
    %2910 = vmatpush.msra.mxu0 0.0
    %2911 = vmatpush.msra.mxu0 0.0
    %2912 = vmatpush.msra.mxu0 0.0
    %2913 = vmatpush.msra.mxu0 %v400
    %2914 = vmatpush.msra.mxu0 %v398
    %2915 = vmatpush.msra.mxu0 %v396
    %2916 = vmatpush.msra.mxu0 %v394
    %2917 = vmatpush.msra.mxu0 %v392
    %2918 = vmatpush.msra.mxu0 %v390
    %2919 = vmatpush.msra.mxu0 %v388
    %2920 = vmatpush.msra.mxu0 %v386
    %2921 = vmatmul.f32.gmra.mxu0 %v2903
    %v2922 = vpop.f32.mrf.mxu0
    %v2923 = vadd.f32 0.0, %v2922
    %2924 = vdwg.mxu0
    %2925 = vmatpush.msra.mxu0 0.0
    %2926 = vmatpush.msra.mxu0 0.0
    %2927 = vmatpush.msra.mxu0 0.0
    %2928 = vmatpush.msra.mxu0 0.0
    %2929 = vmatpush.msra.mxu0 0.0
    %2930 = vmatpush.msra.mxu0 0.0
    %2931 = vmatpush.msra.mxu0 0.0
    %2932 = vmatpush.msra.mxu0 0.0
    %2933 = vmatpush.msra.mxu0 %v401
    %2934 = vmatpush.msra.mxu0 %v399
    %2935 = vmatpush.msra.mxu0 %v397
    %2936 = vmatpush.msra.mxu0 %v395
    %2937 = vmatpush.msra.mxu0 %v393
    %2938 = vmatpush.msra.mxu0 %v391
    %2939 = vmatpush.msra.mxu0 %v389
    %2940 = vmatpush.msra.mxu0 %v387
    %2941 = vmatmul.f32.gmra.mxu0 %v2903
    %v2942 = vpop.f32.mrf.mxu0
    %v2943 = vadd.f32 0.0, %v2942
    %2944 = vdwg.mxu0
    %v2947 = vrot.slane %v2923, 7
    %v2948 = vrot.slane %v2943, 7
    %v2951 = vadd.f32 %v1765, %v2947
    %v2952 = vadd.f32 %v1788, %v2948
    %v2953 = vxor.u32 %v2951, 2147483648
    %v2954 = vmul.f32 %v2953, 1.442695
    %v2955 = vpow.pop %v2954
    %v2956 = vadd.f32 %v2955, 1.0
    %v2957 = vrcp.pop %v2956
    %v2958 = vmul.f32 %v2956, %v2957
    %v2959 = vsub.f32 1.0, %v2958
    %v2960 = vmul.f32 %v2957, %v2959
    %v2961 = vadd.f32 %v2957, %v2960
    %vm2962 = vweird.f32 %v2956
    %vm2963 = vweird.f32 %v2957
    %vm2964 = vmor %vm2962, %vm2963
    %v2965 = vsel %vm2964, %v2957, %v2961
    %v2966 = vand.u32 2147483647, %v2956
    %vm2967 = vcmp.eq.f32.partialorder %v2966, 8.507059e+37
    %v2968 = vand.u32 %v2956, 2147483648
    %v2969 = vor.u32 1.1754944e-38, %v2968
    %v2970 = vsel %vm2967, %v2969, %v2965
    %v2971 = vmul.f32 1.0, %v2970
    %v2972 = vtanh.pop %v2952
    %v2973 = vxor.u32 %v2952, 2147483648
    %v2974 = vmul.f32 %v2973, 1.442695
    %v2975 = vpow.pop %v2974
    %v2976 = vadd.f32 %v2975, 1.0
    %v2977 = vrcp.pop %v2976
    %v2978 = vmul.f32 %v2976, %v2977
    %v2979 = vsub.f32 1.0, %v2978
    %v2980 = vmul.f32 %v2977, %v2979
    %v2981 = vadd.f32 %v2977, %v2980
    %vm2982 = vweird.f32 %v2976
    %vm2983 = vweird.f32 %v2977
    %vm2984 = vmor %vm2982, %vm2983
    %v2985 = vsel %vm2984, %v2977, %v2981
    %v2986 = vand.u32 2147483647, %v2976
    %vm2987 = vcmp.eq.f32.partialorder %v2986, 8.507059e+37
    %v2988 = vand.u32 %v2976, 2147483648
    %v2989 = vor.u32 1.1754944e-38, %v2988
    %v2990 = vsel %vm2987, %v2989, %v2985
    %v2991 = vmul.f32 1.0, %v2990
    %v2993 = vrot.slane %v2845, 7
    %v2995 = vmul.f32 %v2971, %v2993
    %v2996 = vmul.f32 %v2971, %v2972
    %2998 = vrot.lane.b32.xlu0 %v2996, 64
    %v2999 = vpop.permute.xlu0 %2998
    %v3001 = vadd.f32 %v2995, %v2999
    %v3002 = vtanh.pop %v3001
    %v3003 = vmul.f32 %v2991, %v3002
    %v3005 = vrot.slane %v3003, 1
    %v3007 = vadd.f32 %v2848, %v3005
    %3009 = vrot.lane.b32.xlu0 %v2898, 64
    %v3010 = vpop.permute.xlu0 %3009
    %v3011 = vsel %vm2754, %v3010, 0
    %3013 = vmatpush.msra.mxu0 0.0
    %3014 = vmatpush.msra.mxu0 0.0
    %3015 = vmatpush.msra.mxu0 0.0
    %3016 = vmatpush.msra.mxu0 0.0
    %3017 = vmatpush.msra.mxu0 0.0
    %3018 = vmatpush.msra.mxu0 0.0
    %3019 = vmatpush.msra.mxu0 0.0
    %3020 = vmatpush.msra.mxu0 0.0
    %3021 = vmatpush.msra.mxu0 %v400
    %3022 = vmatpush.msra.mxu0 %v398
    %3023 = vmatpush.msra.mxu0 %v396
    %3024 = vmatpush.msra.mxu0 %v394
    %3025 = vmatpush.msra.mxu0 %v392
    %3026 = vmatpush.msra.mxu0 %v390
    %3027 = vmatpush.msra.mxu0 %v388
    %3028 = vmatpush.msra.mxu0 %v386
    %3029 = vmatmul.f32.gmra.mxu0 %v3011
    %v3030 = vpop.f32.mrf.mxu0
    %v3031 = vadd.f32 0.0, %v3030
    %3032 = vdwg.mxu0
    %3033 = vmatpush.msra.mxu0 0.0
    %3034 = vmatpush.msra.mxu0 0.0
    %3035 = vmatpush.msra.mxu0 0.0
    %3036 = vmatpush.msra.mxu0 0.0
    %3037 = vmatpush.msra.mxu0 0.0
    %3038 = vmatpush.msra.mxu0 0.0
    %3039 = vmatpush.msra.mxu0 0.0
    %3040 = vmatpush.msra.mxu0 0.0
    %3041 = vmatpush.msra.mxu0 %v401
    %3042 = vmatpush.msra.mxu0 %v399
    %3043 = vmatpush.msra.mxu0 %v397
    %3044 = vmatpush.msra.mxu0 %v395
    %3045 = vmatpush.msra.mxu0 %v393
    %3046 = vmatpush.msra.mxu0 %v391
    %3047 = vmatpush.msra.mxu0 %v389
    %3048 = vmatpush.msra.mxu0 %v387
    %3049 = vmatmul.f32.gmra.mxu0 %v3011
    %v3050 = vpop.f32.mrf.mxu0
    %v3051 = vadd.f32 0.0, %v3050
    %3052 = vdwg.mxu0
    %v3055 = vrot.slane %v3031, 7
    %v3056 = vrot.slane %v3051, 7
    %v3059 = vadd.f32 %v2726, %v3055
    %v3060 = vadd.f32 %v2749, %v3056
    %v3061 = vxor.u32 %v3059, 2147483648
    %v3062 = vmul.f32 %v3061, 1.442695
    %v3063 = vpow.pop %v3062
    %v3064 = vadd.f32 %v3063, 1.0
    %v3065 = vrcp.pop %v3064
    %v3066 = vmul.f32 %v3064, %v3065
    %v3067 = vsub.f32 1.0, %v3066
    %v3068 = vmul.f32 %v3065, %v3067
    %v3069 = vadd.f32 %v3065, %v3068
    %vm3070 = vweird.f32 %v3064
    %vm3071 = vweird.f32 %v3065
    %vm3072 = vmor %vm3070, %vm3071
    %v3073 = vsel %vm3072, %v3065, %v3069
    %v3074 = vand.u32 2147483647, %v3064
    %vm3075 = vcmp.eq.f32.partialorder %v3074, 8.507059e+37
    %v3076 = vand.u32 %v3064, 2147483648
    %v3077 = vor.u32 1.1754944e-38, %v3076
    %v3078 = vsel %vm3075, %v3077, %v3073
    %v3079 = vmul.f32 1.0, %v3078
    %v3080 = vtanh.pop %v3060
    %v3081 = vxor.u32 %v3060, 2147483648
    %v3082 = vmul.f32 %v3081, 1.442695
    %v3083 = vpow.pop %v3082
    %v3084 = vadd.f32 %v3083, 1.0
    %v3085 = vrcp.pop %v3084
    %v3086 = vmul.f32 %v3084, %v3085
    %v3087 = vsub.f32 1.0, %v3086
    %v3088 = vmul.f32 %v3085, %v3087
    %v3089 = vadd.f32 %v3085, %v3088
    %vm3090 = vweird.f32 %v3084
    %vm3091 = vweird.f32 %v3085
    %vm3092 = vmor %vm3090, %vm3091
    %v3093 = vsel %vm3092, %v3085, %v3089
    %v3094 = vand.u32 2147483647, %v3084
    %vm3095 = vcmp.eq.f32.partialorder %v3094, 8.507059e+37
    %v3096 = vand.u32 %v3084, 2147483648
    %v3097 = vor.u32 1.1754944e-38, %v3096
    %v3098 = vsel %vm3095, %v3097, %v3093
    %v3099 = vmul.f32 1.0, %v3098
    %v3101 = vrot.slane %v2896, 7
    %v3103 = vmul.f32 %v3079, %v3101
    %v3104 = vmul.f32 %v3079, %v3080
    %3106 = vrot.lane.b32.xlu0 %v3104, 64
    %v3107 = vpop.permute.xlu0 %3106
    %v3109 = vadd.f32 %v3103, %v3107
    %v3110 = vtanh.pop %v3109
    %v3111 = vmul.f32 %v3099, %v3110
    %v3113 = vrot.slane %v3111, 1
    %v3115 = vadd.f32 %v2899, %v3113
    %3116 = vrot.lane.b32.xlu0 %v3005, 64
    %v3117 = vpop.permute.xlu0 %3116
    %v3118 = vsel %vm2754, %v3117, 0
    %3120 = vmatpush.msra.mxu0 0.0
    %3121 = vmatpush.msra.mxu0 0.0
    %3122 = vmatpush.msra.mxu0 0.0
    %3123 = vmatpush.msra.mxu0 0.0
    %3124 = vmatpush.msra.mxu0 0.0
    %3125 = vmatpush.msra.mxu0 0.0
    %3126 = vmatpush.msra.mxu0 0.0
    %3127 = vmatpush.msra.mxu0 0.0
    %3128 = vmatpush.msra.mxu0 %v400
    %3129 = vmatpush.msra.mxu0 %v398
    %3130 = vmatpush.msra.mxu0 %v396
    %3131 = vmatpush.msra.mxu0 %v394
    %3132 = vmatpush.msra.mxu0 %v392
    %3133 = vmatpush.msra.mxu0 %v390
    %3134 = vmatpush.msra.mxu0 %v388
    %3135 = vmatpush.msra.mxu0 %v386
    %3136 = vmatmul.f32.gmra.mxu0 %v3118
    %v3137 = vpop.f32.mrf.mxu0
    %v3138 = vadd.f32 0.0, %v3137
    %3139 = vdwg.mxu0
    %3140 = vmatpush.msra.mxu0 0.0
    %3141 = vmatpush.msra.mxu0 0.0
    %3142 = vmatpush.msra.mxu0 0.0
    %3143 = vmatpush.msra.mxu0 0.0
    %3144 = vmatpush.msra.mxu0 0.0
    %3145 = vmatpush.msra.mxu0 0.0
    %3146 = vmatpush.msra.mxu0 0.0
    %3147 = vmatpush.msra.mxu0 0.0
    %3148 = vmatpush.msra.mxu0 %v401
    %3149 = vmatpush.msra.mxu0 %v399
    %3150 = vmatpush.msra.mxu0 %v397
    %3151 = vmatpush.msra.mxu0 %v395
    %3152 = vmatpush.msra.mxu0 %v393
    %3153 = vmatpush.msra.mxu0 %v391
    %3154 = vmatpush.msra.mxu0 %v389
    %3155 = vmatpush.msra.mxu0 %v387
    %3156 = vmatmul.f32.gmra.mxu0 %v3118
    %v3157 = vpop.f32.mrf.mxu0
    %v3158 = vadd.f32 0.0, %v3157
    %3159 = vdwg.mxu0
    %v3162 = vrot.slane %v3138, 6
    %v3163 = vrot.slane %v3158, 6
    %v3166 = vadd.f32 %v1765, %v3162
    %v3167 = vadd.f32 %v1788, %v3163
    %v3168 = vxor.u32 %v3166, 2147483648
    %v3169 = vmul.f32 %v3168, 1.442695
    %v3170 = vpow.pop %v3169
    %v3171 = vadd.f32 %v3170, 1.0
    %v3172 = vrcp.pop %v3171
    %v3173 = vmul.f32 %v3171, %v3172
    %v3174 = vsub.f32 1.0, %v3173
    %v3175 = vmul.f32 %v3172, %v3174
    %v3176 = vadd.f32 %v3172, %v3175
    %vm3177 = vweird.f32 %v3171
    %vm3178 = vweird.f32 %v3172
    %vm3179 = vmor %vm3177, %vm3178
    %v3180 = vsel %vm3179, %v3172, %v3176
    %v3181 = vand.u32 2147483647, %v3171
    %vm3182 = vcmp.eq.f32.partialorder %v3181, 8.507059e+37
    %v3183 = vand.u32 %v3171, 2147483648
    %v3184 = vor.u32 1.1754944e-38, %v3183
    %v3185 = vsel %vm3182, %v3184, %v3180
    %v3186 = vmul.f32 1.0, %v3185
    %v3187 = vtanh.pop %v3167
    %v3188 = vxor.u32 %v3167, 2147483648
    %v3189 = vmul.f32 %v3188, 1.442695
    %v3190 = vpow.pop %v3189
    %v3191 = vadd.f32 %v3190, 1.0
    %v3192 = vrcp.pop %v3191
    %v3193 = vmul.f32 %v3191, %v3192
    %v3194 = vsub.f32 1.0, %v3193
    %v3195 = vmul.f32 %v3192, %v3194
    %v3196 = vadd.f32 %v3192, %v3195
    %vm3197 = vweird.f32 %v3191
    %vm3198 = vweird.f32 %v3192
    %vm3199 = vmor %vm3197, %vm3198
    %v3200 = vsel %vm3199, %v3192, %v3196
    %v3201 = vand.u32 2147483647, %v3191
    %vm3202 = vcmp.eq.f32.partialorder %v3201, 8.507059e+37
    %v3203 = vand.u32 %v3191, 2147483648
    %v3204 = vor.u32 1.1754944e-38, %v3203
    %v3205 = vsel %vm3202, %v3204, %v3200
    %v3206 = vmul.f32 1.0, %v3205
    %v3208 = vrot.slane %v3001, 7
    %v3210 = vmul.f32 %v3186, %v3208
    %v3211 = vmul.f32 %v3186, %v3187
    %3213 = vrot.lane.b32.xlu0 %v3211, 64
    %v3214 = vpop.permute.xlu0 %3213
    %v3216 = vadd.f32 %v3210, %v3214
    %v3217 = vtanh.pop %v3216
    %v3218 = vmul.f32 %v3206, %v3217
    %v3220 = vrot.slane %v3218, 2
    %v3222 = vadd.f32 %v3007, %v3220
    %3223 = vrot.lane.b32.xlu0 %v3113, 64
    %v3224 = vpop.permute.xlu0 %3223
    %v3225 = vsel %vm2754, %v3224, 0
    %3227 = vmatpush.msra.mxu0 0.0
    %3228 = vmatpush.msra.mxu0 0.0
    %3229 = vmatpush.msra.mxu0 0.0
    %3230 = vmatpush.msra.mxu0 0.0
    %3231 = vmatpush.msra.mxu0 0.0
    %3232 = vmatpush.msra.mxu0 0.0
    %3233 = vmatpush.msra.mxu0 0.0
    %3234 = vmatpush.msra.mxu0 0.0
    %3235 = vmatpush.msra.mxu0 %v400
    %3236 = vmatpush.msra.mxu0 %v398
    %3237 = vmatpush.msra.mxu0 %v396
    %3238 = vmatpush.msra.mxu0 %v394
    %3239 = vmatpush.msra.mxu0 %v392
    %3240 = vmatpush.msra.mxu0 %v390
    %3241 = vmatpush.msra.mxu0 %v388
    %3242 = vmatpush.msra.mxu0 %v386
    %3243 = vmatmul.f32.gmra.mxu0 %v3225
    %v3244 = vpop.f32.mrf.mxu0
    %v3245 = vadd.f32 0.0, %v3244
    %3246 = vdwg.mxu0
    %3247 = vmatpush.msra.mxu0 0.0
    %3248 = vmatpush.msra.mxu0 0.0
    %3249 = vmatpush.msra.mxu0 0.0
    %3250 = vmatpush.msra.mxu0 0.0
    %3251 = vmatpush.msra.mxu0 0.0
    %3252 = vmatpush.msra.mxu0 0.0
    %3253 = vmatpush.msra.mxu0 0.0
    %3254 = vmatpush.msra.mxu0 0.0
    %3255 = vmatpush.msra.mxu0 %v401
    %3256 = vmatpush.msra.mxu0 %v399
    %3257 = vmatpush.msra.mxu0 %v397
    %3258 = vmatpush.msra.mxu0 %v395
    %3259 = vmatpush.msra.mxu0 %v393
    %3260 = vmatpush.msra.mxu0 %v391
    %3261 = vmatpush.msra.mxu0 %v389
    %3262 = vmatpush.msra.mxu0 %v387
    %3263 = vmatmul.f32.gmra.mxu0 %v3225
    %v3264 = vpop.f32.mrf.mxu0
    %v3265 = vadd.f32 0.0, %v3264
    %3266 = vdwg.mxu0
    %v3269 = vrot.slane %v3245, 6
    %v3270 = vrot.slane %v3265, 6
    %v3273 = vadd.f32 %v2726, %v3269
    %v3274 = vadd.f32 %v2749, %v3270
    %v3275 = vxor.u32 %v3273, 2147483648
    %v3276 = vmul.f32 %v3275, 1.442695
    %v3277 = vpow.pop %v3276
    %v3278 = vadd.f32 %v3277, 1.0
    %v3279 = vrcp.pop %v3278
    %v3280 = vmul.f32 %v3278, %v3279
    %v3281 = vsub.f32 1.0, %v3280
    %v3282 = vmul.f32 %v3279, %v3281
    %v3283 = vadd.f32 %v3279, %v3282
    %vm3284 = vweird.f32 %v3278
    %vm3285 = vweird.f32 %v3279
    %vm3286 = vmor %vm3284, %vm3285
    %v3287 = vsel %vm3286, %v3279, %v3283
    %v3288 = vand.u32 2147483647, %v3278
    %vm3289 = vcmp.eq.f32.partialorder %v3288, 8.507059e+37
    %v3290 = vand.u32 %v3278, 2147483648
    %v3291 = vor.u32 1.1754944e-38, %v3290
    %v3292 = vsel %vm3289, %v3291, %v3287
    %v3293 = vmul.f32 1.0, %v3292
    %v3294 = vtanh.pop %v3274
    %v3295 = vxor.u32 %v3274, 2147483648
    %v3296 = vmul.f32 %v3295, 1.442695
    %v3297 = vpow.pop %v3296
    %v3298 = vadd.f32 %v3297, 1.0
    %v3299 = vrcp.pop %v3298
    %v3300 = vmul.f32 %v3298, %v3299
    %v3301 = vsub.f32 1.0, %v3300
    %v3302 = vmul.f32 %v3299, %v3301
    %v3303 = vadd.f32 %v3299, %v3302
    %vm3304 = vweird.f32 %v3298
    %vm3305 = vweird.f32 %v3299
    %vm3306 = vmor %vm3304, %vm3305
    %v3307 = vsel %vm3306, %v3299, %v3303
    %v3308 = vand.u32 2147483647, %v3298
    %vm3309 = vcmp.eq.f32.partialorder %v3308, 8.507059e+37
    %v3310 = vand.u32 %v3298, 2147483648
    %v3311 = vor.u32 1.1754944e-38, %v3310
    %v3312 = vsel %vm3309, %v3311, %v3307
    %v3313 = vmul.f32 1.0, %v3312
    %v3315 = vrot.slane %v3109, 7
    %v3317 = vmul.f32 %v3293, %v3315
    %v3318 = vmul.f32 %v3293, %v3294
    %3320 = vrot.lane.b32.xlu0 %v3318, 64
    %v3321 = vpop.permute.xlu0 %3320
    %v3323 = vadd.f32 %v3317, %v3321
    %v3324 = vtanh.pop %v3323
    %v3325 = vmul.f32 %v3313, %v3324
    %v3327 = vrot.slane %v3325, 2
    %v3329 = vadd.f32 %v3115, %v3327
    %3330 = vrot.lane.b32.xlu0 %v3220, 64
    %v3331 = vpop.permute.xlu0 %3330
    %v3332 = vsel %vm2754, %v3331, 0
    %3334 = vmatpush.msra.mxu0 0.0
    %3335 = vmatpush.msra.mxu0 0.0
    %3336 = vmatpush.msra.mxu0 0.0
    %3337 = vmatpush.msra.mxu0 0.0
    %3338 = vmatpush.msra.mxu0 0.0
    %3339 = vmatpush.msra.mxu0 0.0
    %3340 = vmatpush.msra.mxu0 0.0
    %3341 = vmatpush.msra.mxu0 0.0
    %3342 = vmatpush.msra.mxu0 %v400
    %3343 = vmatpush.msra.mxu0 %v398
    %3344 = vmatpush.msra.mxu0 %v396
    %3345 = vmatpush.msra.mxu0 %v394
    %3346 = vmatpush.msra.mxu0 %v392
    %3347 = vmatpush.msra.mxu0 %v390
    %3348 = vmatpush.msra.mxu0 %v388
    %3349 = vmatpush.msra.mxu0 %v386
    %3350 = vmatmul.f32.gmra.mxu0 %v3332
    %v3351 = vpop.f32.mrf.mxu0
    %v3352 = vadd.f32 0.0, %v3351
    %3353 = vdwg.mxu0
    %3354 = vmatpush.msra.mxu0 0.0
    %3355 = vmatpush.msra.mxu0 0.0
    %3356 = vmatpush.msra.mxu0 0.0
    %3357 = vmatpush.msra.mxu0 0.0
    %3358 = vmatpush.msra.mxu0 0.0
    %3359 = vmatpush.msra.mxu0 0.0
    %3360 = vmatpush.msra.mxu0 0.0
    %3361 = vmatpush.msra.mxu0 0.0
    %3362 = vmatpush.msra.mxu0 %v401
    %3363 = vmatpush.msra.mxu0 %v399
    %3364 = vmatpush.msra.mxu0 %v397
    %3365 = vmatpush.msra.mxu0 %v395
    %3366 = vmatpush.msra.mxu0 %v393
    %3367 = vmatpush.msra.mxu0 %v391
    %3368 = vmatpush.msra.mxu0 %v389
    %3369 = vmatpush.msra.mxu0 %v387
    %3370 = vmatmul.f32.gmra.mxu0 %v3332
    %v3371 = vpop.f32.mrf.mxu0
    %v3372 = vadd.f32 0.0, %v3371
    %3373 = vdwg.mxu0
    %v3376 = vrot.slane %v3352, 5
    %v3377 = vrot.slane %v3372, 5
    %v3380 = vadd.f32 %v1765, %v3376
    %v3381 = vadd.f32 %v1788, %v3377
    %v3382 = vxor.u32 %v3380, 2147483648
    %v3383 = vmul.f32 %v3382, 1.442695
    %v3384 = vpow.pop %v3383
    %v3385 = vadd.f32 %v3384, 1.0
    %v3386 = vrcp.pop %v3385
    %v3387 = vmul.f32 %v3385, %v3386
    %v3388 = vsub.f32 1.0, %v3387
    %v3389 = vmul.f32 %v3386, %v3388
    %v3390 = vadd.f32 %v3386, %v3389
    %vm3391 = vweird.f32 %v3385
    %vm3392 = vweird.f32 %v3386
    %vm3393 = vmor %vm3391, %vm3392
    %v3394 = vsel %vm3393, %v3386, %v3390
    %v3395 = vand.u32 2147483647, %v3385
    %vm3396 = vcmp.eq.f32.partialorder %v3395, 8.507059e+37
    %v3397 = vand.u32 %v3385, 2147483648
    %v3398 = vor.u32 1.1754944e-38, %v3397
    %v3399 = vsel %vm3396, %v3398, %v3394
    %v3400 = vmul.f32 1.0, %v3399
    %v3401 = vtanh.pop %v3381
    %v3402 = vxor.u32 %v3381, 2147483648
    %v3403 = vmul.f32 %v3402, 1.442695
    %v3404 = vpow.pop %v3403
    %v3405 = vadd.f32 %v3404, 1.0
    %v3406 = vrcp.pop %v3405
    %v3407 = vmul.f32 %v3405, %v3406
    %v3408 = vsub.f32 1.0, %v3407
    %v3409 = vmul.f32 %v3406, %v3408
    %v3410 = vadd.f32 %v3406, %v3409
    %vm3411 = vweird.f32 %v3405
    %vm3412 = vweird.f32 %v3406
    %vm3413 = vmor %vm3411, %vm3412
    %v3414 = vsel %vm3413, %v3406, %v3410
    %v3415 = vand.u32 2147483647, %v3405
    %vm3416 = vcmp.eq.f32.partialorder %v3415, 8.507059e+37
    %v3417 = vand.u32 %v3405, 2147483648
    %v3418 = vor.u32 1.1754944e-38, %v3417
    %v3419 = vsel %vm3416, %v3418, %v3414
    %v3420 = vmul.f32 1.0, %v3419
    %v3422 = vrot.slane %v3216, 7
    %v3424 = vmul.f32 %v3400, %v3422
    %v3425 = vmul.f32 %v3400, %v3401
    %3427 = vrot.lane.b32.xlu0 %v3425, 64
    %v3428 = vpop.permute.xlu0 %3427
    %v3430 = vadd.f32 %v3424, %v3428
    %v3431 = vtanh.pop %v3430
    %v3432 = vmul.f32 %v3420, %v3431
    %v3434 = vrot.slane %v3432, 3
    %v3436 = vadd.f32 %v3222, %v3434
    %3437 = vrot.lane.b32.xlu0 %v3327, 64
    %v3438 = vpop.permute.xlu0 %3437
    %v3439 = vsel %vm2754, %v3438, 0
    %3441 = vmatpush.msra.mxu0 0.0
    %3442 = vmatpush.msra.mxu0 0.0
    %3443 = vmatpush.msra.mxu0 0.0
    %3444 = vmatpush.msra.mxu0 0.0
    %3445 = vmatpush.msra.mxu0 0.0
    %3446 = vmatpush.msra.mxu0 0.0
    %3447 = vmatpush.msra.mxu0 0.0
    %3448 = vmatpush.msra.mxu0 0.0
    %3449 = vmatpush.msra.mxu0 %v400
    %3450 = vmatpush.msra.mxu0 %v398
    %3451 = vmatpush.msra.mxu0 %v396
    %3452 = vmatpush.msra.mxu0 %v394
    %3453 = vmatpush.msra.mxu0 %v392
    %3454 = vmatpush.msra.mxu0 %v390
    %3455 = vmatpush.msra.mxu0 %v388
    %3456 = vmatpush.msra.mxu0 %v386
    %3457 = vmatmul.f32.gmra.mxu0 %v3439
    %v3458 = vpop.f32.mrf.mxu0
    %v3459 = vadd.f32 0.0, %v3458
    %3460 = vdwg.mxu0
    %3461 = vmatpush.msra.mxu0 0.0
    %3462 = vmatpush.msra.mxu0 0.0
    %3463 = vmatpush.msra.mxu0 0.0
    %3464 = vmatpush.msra.mxu0 0.0
    %3465 = vmatpush.msra.mxu0 0.0
    %3466 = vmatpush.msra.mxu0 0.0
    %3467 = vmatpush.msra.mxu0 0.0
    %3468 = vmatpush.msra.mxu0 0.0
    %3469 = vmatpush.msra.mxu0 %v401
    %3470 = vmatpush.msra.mxu0 %v399
    %3471 = vmatpush.msra.mxu0 %v397
    %3472 = vmatpush.msra.mxu0 %v395
    %3473 = vmatpush.msra.mxu0 %v393
    %3474 = vmatpush.msra.mxu0 %v391
    %3475 = vmatpush.msra.mxu0 %v389
    %3476 = vmatpush.msra.mxu0 %v387
    %3477 = vmatmul.f32.gmra.mxu0 %v3439
    %v3478 = vpop.f32.mrf.mxu0
    %v3479 = vadd.f32 0.0, %v3478
    %3480 = vdwg.mxu0
    %v3483 = vrot.slane %v3459, 5
    %v3484 = vrot.slane %v3479, 5
    %v3487 = vadd.f32 %v2726, %v3483
    %v3488 = vadd.f32 %v2749, %v3484
    %v3489 = vxor.u32 %v3487, 2147483648
    %v3490 = vmul.f32 %v3489, 1.442695
    %v3491 = vpow.pop %v3490
    %v3492 = vadd.f32 %v3491, 1.0
    %v3493 = vrcp.pop %v3492
    %v3494 = vmul.f32 %v3492, %v3493
    %v3495 = vsub.f32 1.0, %v3494
    %v3496 = vmul.f32 %v3493, %v3495
    %v3497 = vadd.f32 %v3493, %v3496
    %vm3498 = vweird.f32 %v3492
    %vm3499 = vweird.f32 %v3493
    %vm3500 = vmor %vm3498, %vm3499
    %v3501 = vsel %vm3500, %v3493, %v3497
    %v3502 = vand.u32 2147483647, %v3492
    %vm3503 = vcmp.eq.f32.partialorder %v3502, 8.507059e+37
    %v3504 = vand.u32 %v3492, 2147483648
    %v3505 = vor.u32 1.1754944e-38, %v3504
    %v3506 = vsel %vm3503, %v3505, %v3501
    %v3507 = vmul.f32 1.0, %v3506
    %v3508 = vtanh.pop %v3488
    %v3509 = vxor.u32 %v3488, 2147483648
    %v3510 = vmul.f32 %v3509, 1.442695
    %v3511 = vpow.pop %v3510
    %v3512 = vadd.f32 %v3511, 1.0
    %v3513 = vrcp.pop %v3512
    %v3514 = vmul.f32 %v3512, %v3513
    %v3515 = vsub.f32 1.0, %v3514
    %v3516 = vmul.f32 %v3513, %v3515
    %v3517 = vadd.f32 %v3513, %v3516
    %vm3518 = vweird.f32 %v3512
    %vm3519 = vweird.f32 %v3513
    %vm3520 = vmor %vm3518, %vm3519
    %v3521 = vsel %vm3520, %v3513, %v3517
    %v3522 = vand.u32 2147483647, %v3512
    %vm3523 = vcmp.eq.f32.partialorder %v3522, 8.507059e+37
    %v3524 = vand.u32 %v3512, 2147483648
    %v3525 = vor.u32 1.1754944e-38, %v3524
    %v3526 = vsel %vm3523, %v3525, %v3521
    %v3527 = vmul.f32 1.0, %v3526
    %v3529 = vrot.slane %v3323, 7
    %v3531 = vmul.f32 %v3507, %v3529
    %v3532 = vmul.f32 %v3507, %v3508
    %3534 = vrot.lane.b32.xlu0 %v3532, 64
    %v3535 = vpop.permute.xlu0 %3534
    %v3537 = vadd.f32 %v3531, %v3535
    %v3538 = vtanh.pop %v3537
    %v3539 = vmul.f32 %v3527, %v3538
    %v3541 = vrot.slane %v3539, 3
    %v3543 = vadd.f32 %v3329, %v3541
    %3544 = vrot.lane.b32.xlu0 %v3434, 64
    %v3545 = vpop.permute.xlu0 %3544
    %v3546 = vsel %vm2754, %v3545, 0
    %3548 = vmatpush.msra.mxu0 0.0
    %3549 = vmatpush.msra.mxu0 0.0
    %3550 = vmatpush.msra.mxu0 0.0
    %3551 = vmatpush.msra.mxu0 0.0
    %3552 = vmatpush.msra.mxu0 0.0
    %3553 = vmatpush.msra.mxu0 0.0
    %3554 = vmatpush.msra.mxu0 0.0
    %3555 = vmatpush.msra.mxu0 0.0
    %3556 = vmatpush.msra.mxu0 %v400
    %3557 = vmatpush.msra.mxu0 %v398
    %3558 = vmatpush.msra.mxu0 %v396
    %3559 = vmatpush.msra.mxu0 %v394
    %3560 = vmatpush.msra.mxu0 %v392
    %3561 = vmatpush.msra.mxu0 %v390
    %3562 = vmatpush.msra.mxu0 %v388
    %3563 = vmatpush.msra.mxu0 %v386
    %3564 = vmatmul.f32.gmra.mxu0 %v3546
    %v3565 = vpop.f32.mrf.mxu0
    %v3566 = vadd.f32 0.0, %v3565
    %3567 = vdwg.mxu0
    %3568 = vmatpush.msra.mxu0 0.0
    %3569 = vmatpush.msra.mxu0 0.0
    %3570 = vmatpush.msra.mxu0 0.0
    %3571 = vmatpush.msra.mxu0 0.0
    %3572 = vmatpush.msra.mxu0 0.0
    %3573 = vmatpush.msra.mxu0 0.0
    %3574 = vmatpush.msra.mxu0 0.0
    %3575 = vmatpush.msra.mxu0 0.0
    %3576 = vmatpush.msra.mxu0 %v401
    %3577 = vmatpush.msra.mxu0 %v399
    %3578 = vmatpush.msra.mxu0 %v397
    %3579 = vmatpush.msra.mxu0 %v395
    %3580 = vmatpush.msra.mxu0 %v393
    %3581 = vmatpush.msra.mxu0 %v391
    %3582 = vmatpush.msra.mxu0 %v389
    %3583 = vmatpush.msra.mxu0 %v387
    %3584 = vmatmul.f32.gmra.mxu0 %v3546
    %v3585 = vpop.f32.mrf.mxu0
    %v3586 = vadd.f32 0.0, %v3585
    %3587 = vdwg.mxu0
    %v3590 = vrot.slane %v3566, 4
    %v3591 = vrot.slane %v3586, 4
    %v3594 = vadd.f32 %v1765, %v3590
    %v3595 = vadd.f32 %v1788, %v3591
    %v3596 = vxor.u32 %v3594, 2147483648
    %v3597 = vmul.f32 %v3596, 1.442695
    %v3598 = vpow.pop %v3597
    %v3599 = vadd.f32 %v3598, 1.0
    %v3600 = vrcp.pop %v3599
    %v3601 = vmul.f32 %v3599, %v3600
    %v3602 = vsub.f32 1.0, %v3601
    %v3603 = vmul.f32 %v3600, %v3602
    %v3604 = vadd.f32 %v3600, %v3603
    %vm3605 = vweird.f32 %v3599
    %vm3606 = vweird.f32 %v3600
    %vm3607 = vmor %vm3605, %vm3606
    %v3608 = vsel %vm3607, %v3600, %v3604
    %v3609 = vand.u32 2147483647, %v3599
    %vm3610 = vcmp.eq.f32.partialorder %v3609, 8.507059e+37
    %v3611 = vand.u32 %v3599, 2147483648
    %v3612 = vor.u32 1.1754944e-38, %v3611
    %v3613 = vsel %vm3610, %v3612, %v3608
    %v3614 = vmul.f32 1.0, %v3613
    %v3615 = vtanh.pop %v3595
    %v3616 = vxor.u32 %v3595, 2147483648
    %v3617 = vmul.f32 %v3616, 1.442695
    %v3618 = vpow.pop %v3617
    %v3619 = vadd.f32 %v3618, 1.0
    %v3620 = vrcp.pop %v3619
    %v3621 = vmul.f32 %v3619, %v3620
    %v3622 = vsub.f32 1.0, %v3621
    %v3623 = vmul.f32 %v3620, %v3622
    %v3624 = vadd.f32 %v3620, %v3623
    %vm3625 = vweird.f32 %v3619
    %vm3626 = vweird.f32 %v3620
    %vm3627 = vmor %vm3625, %vm3626
    %v3628 = vsel %vm3627, %v3620, %v3624
    %v3629 = vand.u32 2147483647, %v3619
    %vm3630 = vcmp.eq.f32.partialorder %v3629, 8.507059e+37
    %v3631 = vand.u32 %v3619, 2147483648
    %v3632 = vor.u32 1.1754944e-38, %v3631
    %v3633 = vsel %vm3630, %v3632, %v3628
    %v3634 = vmul.f32 1.0, %v3633
    %v3636 = vrot.slane %v3430, 7
    %v3638 = vmul.f32 %v3614, %v3636
    %v3639 = vmul.f32 %v3614, %v3615
    %3641 = vrot.lane.b32.xlu0 %v3639, 64
    %v3642 = vpop.permute.xlu0 %3641
    %v3644 = vadd.f32 %v3638, %v3642
    %v3645 = vtanh.pop %v3644
    %v3646 = vmul.f32 %v3634, %v3645
    %v3648 = vrot.slane %v3646, 4
    %v3650 = vadd.f32 %v3436, %v3648
    %3651 = vrot.lane.b32.xlu0 %v3541, 64
    %v3652 = vpop.permute.xlu0 %3651
    %v3653 = vsel %vm2754, %v3652, 0
    %3655 = vmatpush.msra.mxu0 0.0
    %3656 = vmatpush.msra.mxu0 0.0
    %3657 = vmatpush.msra.mxu0 0.0
    %3658 = vmatpush.msra.mxu0 0.0
    %3659 = vmatpush.msra.mxu0 0.0
    %3660 = vmatpush.msra.mxu0 0.0
    %3661 = vmatpush.msra.mxu0 0.0
    %3662 = vmatpush.msra.mxu0 0.0
    %3663 = vmatpush.msra.mxu0 %v400
    %3664 = vmatpush.msra.mxu0 %v398
    %3665 = vmatpush.msra.mxu0 %v396
    %3666 = vmatpush.msra.mxu0 %v394
    %3667 = vmatpush.msra.mxu0 %v392
    %3668 = vmatpush.msra.mxu0 %v390
    %3669 = vmatpush.msra.mxu0 %v388
    %3670 = vmatpush.msra.mxu0 %v386
    %3671 = vmatmul.f32.gmra.mxu0 %v3653
    %v3672 = vpop.f32.mrf.mxu0
    %v3673 = vadd.f32 0.0, %v3672
    %3674 = vdwg.mxu0
    %3675 = vmatpush.msra.mxu0 0.0
    %3676 = vmatpush.msra.mxu0 0.0
    %3677 = vmatpush.msra.mxu0 0.0
    %3678 = vmatpush.msra.mxu0 0.0
    %3679 = vmatpush.msra.mxu0 0.0
    %3680 = vmatpush.msra.mxu0 0.0
    %3681 = vmatpush.msra.mxu0 0.0
    %3682 = vmatpush.msra.mxu0 0.0
    %3683 = vmatpush.msra.mxu0 %v401
    %3684 = vmatpush.msra.mxu0 %v399
    %3685 = vmatpush.msra.mxu0 %v397
    %3686 = vmatpush.msra.mxu0 %v395
    %3687 = vmatpush.msra.mxu0 %v393
    %3688 = vmatpush.msra.mxu0 %v391
    %3689 = vmatpush.msra.mxu0 %v389
    %3690 = vmatpush.msra.mxu0 %v387
    %3691 = vmatmul.f32.gmra.mxu0 %v3653
    %v3692 = vpop.f32.mrf.mxu0
    %v3693 = vadd.f32 0.0, %v3692
    %3694 = vdwg.mxu0
    %v3697 = vrot.slane %v3673, 4
    %v3698 = vrot.slane %v3693, 4
    %v3701 = vadd.f32 %v2726, %v3697
    %v3702 = vadd.f32 %v2749, %v3698
    %v3703 = vxor.u32 %v3701, 2147483648
    %v3704 = vmul.f32 %v3703, 1.442695
    %v3705 = vpow.pop %v3704
    %v3706 = vadd.f32 %v3705, 1.0
    %v3707 = vrcp.pop %v3706
    %v3708 = vmul.f32 %v3706, %v3707
    %v3709 = vsub.f32 1.0, %v3708
    %v3710 = vmul.f32 %v3707, %v3709
    %v3711 = vadd.f32 %v3707, %v3710
    %vm3712 = vweird.f32 %v3706
    %vm3713 = vweird.f32 %v3707
    %vm3714 = vmor %vm3712, %vm3713
    %v3715 = vsel %vm3714, %v3707, %v3711
    %v3716 = vand.u32 2147483647, %v3706
    %vm3717 = vcmp.eq.f32.partialorder %v3716, 8.507059e+37
    %v3718 = vand.u32 %v3706, 2147483648
    %v3719 = vor.u32 1.1754944e-38, %v3718
    %v3720 = vsel %vm3717, %v3719, %v3715
    %v3721 = vmul.f32 1.0, %v3720
    %v3722 = vtanh.pop %v3702
    %v3723 = vxor.u32 %v3702, 2147483648
    %v3724 = vmul.f32 %v3723, 1.442695
    %v3725 = vpow.pop %v3724
    %v3726 = vadd.f32 %v3725, 1.0
    %v3727 = vrcp.pop %v3726
    %v3728 = vmul.f32 %v3726, %v3727
    %v3729 = vsub.f32 1.0, %v3728
    %v3730 = vmul.f32 %v3727, %v3729
    %v3731 = vadd.f32 %v3727, %v3730
    %vm3732 = vweird.f32 %v3726
    %vm3733 = vweird.f32 %v3727
    %vm3734 = vmor %vm3732, %vm3733
    %v3735 = vsel %vm3734, %v3727, %v3731
    %v3736 = vand.u32 2147483647, %v3726
    %vm3737 = vcmp.eq.f32.partialorder %v3736, 8.507059e+37
    %v3738 = vand.u32 %v3726, 2147483648
    %v3739 = vor.u32 1.1754944e-38, %v3738
    %v3740 = vsel %vm3737, %v3739, %v3735
    %v3741 = vmul.f32 1.0, %v3740
    %v3743 = vrot.slane %v3537, 7
    %v3745 = vmul.f32 %v3721, %v3743
    %v3746 = vmul.f32 %v3721, %v3722
    %3748 = vrot.lane.b32.xlu0 %v3746, 64
    %v3749 = vpop.permute.xlu0 %3748
    %v3751 = vadd.f32 %v3745, %v3749
    %v3752 = vtanh.pop %v3751
    %v3753 = vmul.f32 %v3741, %v3752
    %v3755 = vrot.slane %v3753, 4
    %v3757 = vadd.f32 %v3543, %v3755
    %3758 = vrot.lane.b32.xlu0 %v3648, 64
    %v3759 = vpop.permute.xlu0 %3758
    %v3760 = vsel %vm2754, %v3759, 0
    %3762 = vmatpush.msra.mxu0 0.0
    %3763 = vmatpush.msra.mxu0 0.0
    %3764 = vmatpush.msra.mxu0 0.0
    %3765 = vmatpush.msra.mxu0 0.0
    %3766 = vmatpush.msra.mxu0 0.0
    %3767 = vmatpush.msra.mxu0 0.0
    %3768 = vmatpush.msra.mxu0 0.0
    %3769 = vmatpush.msra.mxu0 0.0
    %3770 = vmatpush.msra.mxu0 %v400
    %3771 = vmatpush.msra.mxu0 %v398
    %3772 = vmatpush.msra.mxu0 %v396
    %3773 = vmatpush.msra.mxu0 %v394
    %3774 = vmatpush.msra.mxu0 %v392
    %3775 = vmatpush.msra.mxu0 %v390
    %3776 = vmatpush.msra.mxu0 %v388
    %3777 = vmatpush.msra.mxu0 %v386
    %3778 = vmatmul.f32.gmra.mxu0 %v3760
    %v3779 = vpop.f32.mrf.mxu0
    %v3780 = vadd.f32 0.0, %v3779
    %3781 = vdwg.mxu0
    %3782 = vmatpush.msra.mxu0 0.0
    %3783 = vmatpush.msra.mxu0 0.0
    %3784 = vmatpush.msra.mxu0 0.0
    %3785 = vmatpush.msra.mxu0 0.0
    %3786 = vmatpush.msra.mxu0 0.0
    %3787 = vmatpush.msra.mxu0 0.0
    %3788 = vmatpush.msra.mxu0 0.0
    %3789 = vmatpush.msra.mxu0 0.0
    %3790 = vmatpush.msra.mxu0 %v401
    %3791 = vmatpush.msra.mxu0 %v399
    %3792 = vmatpush.msra.mxu0 %v397
    %3793 = vmatpush.msra.mxu0 %v395
    %3794 = vmatpush.msra.mxu0 %v393
    %3795 = vmatpush.msra.mxu0 %v391
    %3796 = vmatpush.msra.mxu0 %v389
    %3797 = vmatpush.msra.mxu0 %v387
    %3798 = vmatmul.f32.gmra.mxu0 %v3760
    %v3799 = vpop.f32.mrf.mxu0
    %v3800 = vadd.f32 0.0, %v3799
    %3801 = vdwg.mxu0
    %v3804 = vrot.slane %v3780, 3
    %v3805 = vrot.slane %v3800, 3
    %v3808 = vadd.f32 %v1765, %v3804
    %v3809 = vadd.f32 %v1788, %v3805
    %v3810 = vxor.u32 %v3808, 2147483648
    %v3811 = vmul.f32 %v3810, 1.442695
    %v3812 = vpow.pop %v3811
    %v3813 = vadd.f32 %v3812, 1.0
    %v3814 = vrcp.pop %v3813
    %v3815 = vmul.f32 %v3813, %v3814
    %v3816 = vsub.f32 1.0, %v3815
    %v3817 = vmul.f32 %v3814, %v3816
    %v3818 = vadd.f32 %v3814, %v3817
    %vm3819 = vweird.f32 %v3813
    %vm3820 = vweird.f32 %v3814
    %vm3821 = vmor %vm3819, %vm3820
    %v3822 = vsel %vm3821, %v3814, %v3818
    %v3823 = vand.u32 2147483647, %v3813
    %vm3824 = vcmp.eq.f32.partialorder %v3823, 8.507059e+37
    %v3825 = vand.u32 %v3813, 2147483648
    %v3826 = vor.u32 1.1754944e-38, %v3825
    %v3827 = vsel %vm3824, %v3826, %v3822
    %v3828 = vmul.f32 1.0, %v3827
    %v3829 = vtanh.pop %v3809
    %v3830 = vxor.u32 %v3809, 2147483648
    %v3831 = vmul.f32 %v3830, 1.442695
    %v3832 = vpow.pop %v3831
    %v3833 = vadd.f32 %v3832, 1.0
    %v3834 = vrcp.pop %v3833
    %v3835 = vmul.f32 %v3833, %v3834
    %v3836 = vsub.f32 1.0, %v3835
    %v3837 = vmul.f32 %v3834, %v3836
    %v3838 = vadd.f32 %v3834, %v3837
    %vm3839 = vweird.f32 %v3833
    %vm3840 = vweird.f32 %v3834
    %vm3841 = vmor %vm3839, %vm3840
    %v3842 = vsel %vm3841, %v3834, %v3838
    %v3843 = vand.u32 2147483647, %v3833
    %vm3844 = vcmp.eq.f32.partialorder %v3843, 8.507059e+37
    %v3845 = vand.u32 %v3833, 2147483648
    %v3846 = vor.u32 1.1754944e-38, %v3845
    %v3847 = vsel %vm3844, %v3846, %v3842
    %v3848 = vmul.f32 1.0, %v3847
    %v3850 = vrot.slane %v3644, 7
    %v3852 = vmul.f32 %v3828, %v3850
    %v3853 = vmul.f32 %v3828, %v3829
    %3855 = vrot.lane.b32.xlu0 %v3853, 64
    %v3856 = vpop.permute.xlu0 %3855
    %v3858 = vadd.f32 %v3852, %v3856
    %v3859 = vtanh.pop %v3858
    %v3860 = vmul.f32 %v3848, %v3859
    %v3862 = vrot.slane %v3860, 5
    %v3864 = vadd.f32 %v3650, %v3862
    %3865 = vrot.lane.b32.xlu0 %v3755, 64
    %v3866 = vpop.permute.xlu0 %3865
    %v3867 = vsel %vm2754, %v3866, 0
    %3869 = vmatpush.msra.mxu0 0.0
    %3870 = vmatpush.msra.mxu0 0.0
    %3871 = vmatpush.msra.mxu0 0.0
    %3872 = vmatpush.msra.mxu0 0.0
    %3873 = vmatpush.msra.mxu0 0.0
    %3874 = vmatpush.msra.mxu0 0.0
    %3875 = vmatpush.msra.mxu0 0.0
    %3876 = vmatpush.msra.mxu0 0.0
    %3877 = vmatpush.msra.mxu0 %v400
    %3878 = vmatpush.msra.mxu0 %v398
    %3879 = vmatpush.msra.mxu0 %v396
    %3880 = vmatpush.msra.mxu0 %v394
    %3881 = vmatpush.msra.mxu0 %v392
    %3882 = vmatpush.msra.mxu0 %v390
    %3883 = vmatpush.msra.mxu0 %v388
    %3884 = vmatpush.msra.mxu0 %v386
    %3885 = vmatmul.f32.gmra.mxu0 %v3867
    %v3886 = vpop.f32.mrf.mxu0
    %v3887 = vadd.f32 0.0, %v3886
    %3888 = vdwg.mxu0
    %3889 = vmatpush.msra.mxu0 0.0
    %3890 = vmatpush.msra.mxu0 0.0
    %3891 = vmatpush.msra.mxu0 0.0
    %3892 = vmatpush.msra.mxu0 0.0
    %3893 = vmatpush.msra.mxu0 0.0
    %3894 = vmatpush.msra.mxu0 0.0
    %3895 = vmatpush.msra.mxu0 0.0
    %3896 = vmatpush.msra.mxu0 0.0
    %3897 = vmatpush.msra.mxu0 %v401
    %3898 = vmatpush.msra.mxu0 %v399
    %3899 = vmatpush.msra.mxu0 %v397
    %3900 = vmatpush.msra.mxu0 %v395
    %3901 = vmatpush.msra.mxu0 %v393
    %3902 = vmatpush.msra.mxu0 %v391
    %3903 = vmatpush.msra.mxu0 %v389
    %3904 = vmatpush.msra.mxu0 %v387
    %3905 = vmatmul.f32.gmra.mxu0 %v3867
    %v3906 = vpop.f32.mrf.mxu0
    %v3907 = vadd.f32 0.0, %v3906
    %3908 = vdwg.mxu0
    %v3911 = vrot.slane %v3887, 3
    %v3912 = vrot.slane %v3907, 3
    %v3915 = vadd.f32 %v2726, %v3911
    %v3916 = vadd.f32 %v2749, %v3912
    %v3917 = vxor.u32 %v3915, 2147483648
    %v3918 = vmul.f32 %v3917, 1.442695
    %v3919 = vpow.pop %v3918
    %v3920 = vadd.f32 %v3919, 1.0
    %v3921 = vrcp.pop %v3920
    %v3922 = vmul.f32 %v3920, %v3921
    %v3923 = vsub.f32 1.0, %v3922
    %v3924 = vmul.f32 %v3921, %v3923
    %v3925 = vadd.f32 %v3921, %v3924
    %vm3926 = vweird.f32 %v3920
    %vm3927 = vweird.f32 %v3921
    %vm3928 = vmor %vm3926, %vm3927
    %v3929 = vsel %vm3928, %v3921, %v3925
    %v3930 = vand.u32 2147483647, %v3920
    %vm3931 = vcmp.eq.f32.partialorder %v3930, 8.507059e+37
    %v3932 = vand.u32 %v3920, 2147483648
    %v3933 = vor.u32 1.1754944e-38, %v3932
    %v3934 = vsel %vm3931, %v3933, %v3929
    %v3935 = vmul.f32 1.0, %v3934
    %v3936 = vtanh.pop %v3916
    %v3937 = vxor.u32 %v3916, 2147483648
    %v3938 = vmul.f32 %v3937, 1.442695
    %v3939 = vpow.pop %v3938
    %v3940 = vadd.f32 %v3939, 1.0
    %v3941 = vrcp.pop %v3940
    %v3942 = vmul.f32 %v3940, %v3941
    %v3943 = vsub.f32 1.0, %v3942
    %v3944 = vmul.f32 %v3941, %v3943
    %v3945 = vadd.f32 %v3941, %v3944
    %vm3946 = vweird.f32 %v3940
    %vm3947 = vweird.f32 %v3941
    %vm3948 = vmor %vm3946, %vm3947
    %v3949 = vsel %vm3948, %v3941, %v3945
    %v3950 = vand.u32 2147483647, %v3940
    %vm3951 = vcmp.eq.f32.partialorder %v3950, 8.507059e+37
    %v3952 = vand.u32 %v3940, 2147483648
    %v3953 = vor.u32 1.1754944e-38, %v3952
    %v3954 = vsel %vm3951, %v3953, %v3949
    %v3955 = vmul.f32 1.0, %v3954
    %v3957 = vrot.slane %v3751, 7
    %v3959 = vmul.f32 %v3935, %v3957
    %v3960 = vmul.f32 %v3935, %v3936
    %3962 = vrot.lane.b32.xlu0 %v3960, 64
    %v3963 = vpop.permute.xlu0 %3962
    %v3965 = vadd.f32 %v3959, %v3963
    %v3966 = vtanh.pop %v3965
    %v3967 = vmul.f32 %v3955, %v3966
    %v3969 = vrot.slane %v3967, 5
    %v3971 = vadd.f32 %v3757, %v3969
    %3972 = vrot.lane.b32.xlu0 %v3862, 64
    %v3973 = vpop.permute.xlu0 %3972
    %v3974 = vsel %vm2754, %v3973, 0
    %3976 = vmatpush.msra.mxu0 0.0
    %3977 = vmatpush.msra.mxu0 0.0
    %3978 = vmatpush.msra.mxu0 0.0
    %3979 = vmatpush.msra.mxu0 0.0
    %3980 = vmatpush.msra.mxu0 0.0
    %3981 = vmatpush.msra.mxu0 0.0
    %3982 = vmatpush.msra.mxu0 0.0
    %3983 = vmatpush.msra.mxu0 0.0
    %3984 = vmatpush.msra.mxu0 %v400
    %3985 = vmatpush.msra.mxu0 %v398
    %3986 = vmatpush.msra.mxu0 %v396
    %3987 = vmatpush.msra.mxu0 %v394
    %3988 = vmatpush.msra.mxu0 %v392
    %3989 = vmatpush.msra.mxu0 %v390
    %3990 = vmatpush.msra.mxu0 %v388
    %3991 = vmatpush.msra.mxu0 %v386
    %3992 = vmatmul.f32.gmra.mxu0 %v3974
    %v3993 = vpop.f32.mrf.mxu0
    %v3994 = vadd.f32 0.0, %v3993
    %3995 = vdwg.mxu0
    %3996 = vmatpush.msra.mxu0 0.0
    %3997 = vmatpush.msra.mxu0 0.0
    %3998 = vmatpush.msra.mxu0 0.0
    %3999 = vmatpush.msra.mxu0 0.0
    %4000 = vmatpush.msra.mxu0 0.0
    %4001 = vmatpush.msra.mxu0 0.0
    %4002 = vmatpush.msra.mxu0 0.0
    %4003 = vmatpush.msra.mxu0 0.0
    %4004 = vmatpush.msra.mxu0 %v401
    %4005 = vmatpush.msra.mxu0 %v399
    %4006 = vmatpush.msra.mxu0 %v397
    %4007 = vmatpush.msra.mxu0 %v395
    %4008 = vmatpush.msra.mxu0 %v393
    %4009 = vmatpush.msra.mxu0 %v391
    %4010 = vmatpush.msra.mxu0 %v389
    %4011 = vmatpush.msra.mxu0 %v387
    %4012 = vmatmul.f32.gmra.mxu0 %v3974
    %v4013 = vpop.f32.mrf.mxu0
    %v4014 = vadd.f32 0.0, %v4013
    %4015 = vdwg.mxu0
    %v4018 = vrot.slane %v3994, 2
    %v4019 = vrot.slane %v4014, 2
    %v4022 = vadd.f32 %v1765, %v4018
    %v4023 = vadd.f32 %v1788, %v4019
    %v4024 = vxor.u32 %v4022, 2147483648
    %v4025 = vmul.f32 %v4024, 1.442695
    %v4026 = vpow.pop %v4025
    %v4027 = vadd.f32 %v4026, 1.0
    %v4028 = vrcp.pop %v4027
    %v4029 = vmul.f32 %v4027, %v4028
    %v4030 = vsub.f32 1.0, %v4029
    %v4031 = vmul.f32 %v4028, %v4030
    %v4032 = vadd.f32 %v4028, %v4031
    %vm4033 = vweird.f32 %v4027
    %vm4034 = vweird.f32 %v4028
    %vm4035 = vmor %vm4033, %vm4034
    %v4036 = vsel %vm4035, %v4028, %v4032
    %v4037 = vand.u32 2147483647, %v4027
    %vm4038 = vcmp.eq.f32.partialorder %v4037, 8.507059e+37
    %v4039 = vand.u32 %v4027, 2147483648
    %v4040 = vor.u32 1.1754944e-38, %v4039
    %v4041 = vsel %vm4038, %v4040, %v4036
    %v4042 = vmul.f32 1.0, %v4041
    %v4043 = vtanh.pop %v4023
    %v4044 = vxor.u32 %v4023, 2147483648
    %v4045 = vmul.f32 %v4044, 1.442695
    %v4046 = vpow.pop %v4045
    %v4047 = vadd.f32 %v4046, 1.0
    %v4048 = vrcp.pop %v4047
    %v4049 = vmul.f32 %v4047, %v4048
    %v4050 = vsub.f32 1.0, %v4049
    %v4051 = vmul.f32 %v4048, %v4050
    %v4052 = vadd.f32 %v4048, %v4051
    %vm4053 = vweird.f32 %v4047
    %vm4054 = vweird.f32 %v4048
    %vm4055 = vmor %vm4053, %vm4054
    %v4056 = vsel %vm4055, %v4048, %v4052
    %v4057 = vand.u32 2147483647, %v4047
    %vm4058 = vcmp.eq.f32.partialorder %v4057, 8.507059e+37
    %v4059 = vand.u32 %v4047, 2147483648
    %v4060 = vor.u32 1.1754944e-38, %v4059
    %v4061 = vsel %vm4058, %v4060, %v4056
    %v4062 = vmul.f32 1.0, %v4061
    %v4064 = vrot.slane %v3858, 7
    %v4066 = vmul.f32 %v4042, %v4064
    %v4067 = vmul.f32 %v4042, %v4043
    %4069 = vrot.lane.b32.xlu0 %v4067, 64
    %v4070 = vpop.permute.xlu0 %4069
    %v4072 = vadd.f32 %v4066, %v4070
    %v4073 = vtanh.pop %v4072
    %v4074 = vmul.f32 %v4062, %v4073
    %v4076 = vrot.slane %v4074, 6
    %v4078 = vadd.f32 %v3864, %v4076
    %4079 = vrot.lane.b32.xlu0 %v3969, 64
    %v4080 = vpop.permute.xlu0 %4079
    %v4081 = vsel %vm2754, %v4080, 0
    %4083 = vmatpush.msra.mxu0 0.0
    %4084 = vmatpush.msra.mxu0 0.0
    %4085 = vmatpush.msra.mxu0 0.0
    %4086 = vmatpush.msra.mxu0 0.0
    %4087 = vmatpush.msra.mxu0 0.0
    %4088 = vmatpush.msra.mxu0 0.0
    %4089 = vmatpush.msra.mxu0 0.0
    %4090 = vmatpush.msra.mxu0 0.0
    %4091 = vmatpush.msra.mxu0 %v400
    %4092 = vmatpush.msra.mxu0 %v398
    %4093 = vmatpush.msra.mxu0 %v396
    %4094 = vmatpush.msra.mxu0 %v394
    %4095 = vmatpush.msra.mxu0 %v392
    %4096 = vmatpush.msra.mxu0 %v390
    %4097 = vmatpush.msra.mxu0 %v388
    %4098 = vmatpush.msra.mxu0 %v386
    %4099 = vmatmul.f32.gmra.mxu0 %v4081
    %v4100 = vpop.f32.mrf.mxu0
    %v4101 = vadd.f32 0.0, %v4100
    %4102 = vdwg.mxu0
    %4103 = vmatpush.msra.mxu0 0.0
    %4104 = vmatpush.msra.mxu0 0.0
    %4105 = vmatpush.msra.mxu0 0.0
    %4106 = vmatpush.msra.mxu0 0.0
    %4107 = vmatpush.msra.mxu0 0.0
    %4108 = vmatpush.msra.mxu0 0.0
    %4109 = vmatpush.msra.mxu0 0.0
    %4110 = vmatpush.msra.mxu0 0.0
    %4111 = vmatpush.msra.mxu0 %v401
    %4112 = vmatpush.msra.mxu0 %v399
    %4113 = vmatpush.msra.mxu0 %v397
    %4114 = vmatpush.msra.mxu0 %v395
    %4115 = vmatpush.msra.mxu0 %v393
    %4116 = vmatpush.msra.mxu0 %v391
    %4117 = vmatpush.msra.mxu0 %v389
    %4118 = vmatpush.msra.mxu0 %v387
    %4119 = vmatmul.f32.gmra.mxu0 %v4081
    %v4120 = vpop.f32.mrf.mxu0
    %v4121 = vadd.f32 0.0, %v4120
    %4122 = vdwg.mxu0
    %v4125 = vrot.slane %v4101, 2
    %v4126 = vrot.slane %v4121, 2
    %v4129 = vadd.f32 %v2726, %v4125
    %v4130 = vadd.f32 %v2749, %v4126
    %v4131 = vxor.u32 %v4129, 2147483648
    %v4132 = vmul.f32 %v4131, 1.442695
    %v4133 = vpow.pop %v4132
    %v4134 = vadd.f32 %v4133, 1.0
    %v4135 = vrcp.pop %v4134
    %v4136 = vmul.f32 %v4134, %v4135
    %v4137 = vsub.f32 1.0, %v4136
    %v4138 = vmul.f32 %v4135, %v4137
    %v4139 = vadd.f32 %v4135, %v4138
    %vm4140 = vweird.f32 %v4134
    %vm4141 = vweird.f32 %v4135
    %vm4142 = vmor %vm4140, %vm4141
    %v4143 = vsel %vm4142, %v4135, %v4139
    %v4144 = vand.u32 2147483647, %v4134
    %vm4145 = vcmp.eq.f32.partialorder %v4144, 8.507059e+37
    %v4146 = vand.u32 %v4134, 2147483648
    %v4147 = vor.u32 1.1754944e-38, %v4146
    %v4148 = vsel %vm4145, %v4147, %v4143
    %v4149 = vmul.f32 1.0, %v4148
    %v4150 = vtanh.pop %v4130
    %v4151 = vxor.u32 %v4130, 2147483648
    %v4152 = vmul.f32 %v4151, 1.442695
    %v4153 = vpow.pop %v4152
    %v4154 = vadd.f32 %v4153, 1.0
    %v4155 = vrcp.pop %v4154
    %v4156 = vmul.f32 %v4154, %v4155
    %v4157 = vsub.f32 1.0, %v4156
    %v4158 = vmul.f32 %v4155, %v4157
    %v4159 = vadd.f32 %v4155, %v4158
    %vm4160 = vweird.f32 %v4154
    %vm4161 = vweird.f32 %v4155
    %vm4162 = vmor %vm4160, %vm4161
    %v4163 = vsel %vm4162, %v4155, %v4159
    %v4164 = vand.u32 2147483647, %v4154
    %vm4165 = vcmp.eq.f32.partialorder %v4164, 8.507059e+37
    %v4166 = vand.u32 %v4154, 2147483648
    %v4167 = vor.u32 1.1754944e-38, %v4166
    %v4168 = vsel %vm4165, %v4167, %v4163
    %v4169 = vmul.f32 1.0, %v4168
    %v4171 = vrot.slane %v3965, 7
    %v4173 = vmul.f32 %v4149, %v4171
    %v4174 = vmul.f32 %v4149, %v4150
    %4176 = vrot.lane.b32.xlu0 %v4174, 64
    %v4177 = vpop.permute.xlu0 %4176
    %v4179 = vadd.f32 %v4173, %v4177
    %v4180 = vtanh.pop %v4179
    %v4181 = vmul.f32 %v4169, %v4180
    %v4183 = vrot.slane %v4181, 6
    %v4185 = vadd.f32 %v3971, %v4183
    %4186 = vrot.lane.b32.xlu0 %v4076, 64
    %v4187 = vpop.permute.xlu0 %4186
    %v4188 = vsel %vm2754, %v4187, 0
    %4190 = vmatpush.msra.mxu0 0.0
    %4191 = vmatpush.msra.mxu0 0.0
    %4192 = vmatpush.msra.mxu0 0.0
    %4193 = vmatpush.msra.mxu0 0.0
    %4194 = vmatpush.msra.mxu0 0.0
    %4195 = vmatpush.msra.mxu0 0.0
    %4196 = vmatpush.msra.mxu0 0.0
    %4197 = vmatpush.msra.mxu0 0.0
    %4198 = vmatpush.msra.mxu0 %v400
    %4199 = vmatpush.msra.mxu0 %v398
    %4200 = vmatpush.msra.mxu0 %v396
    %4201 = vmatpush.msra.mxu0 %v394
    %4202 = vmatpush.msra.mxu0 %v392
    %4203 = vmatpush.msra.mxu0 %v390
    %4204 = vmatpush.msra.mxu0 %v388
    %4205 = vmatpush.msra.mxu0 %v386
    %4206 = vmatmul.f32.gmra.mxu0 %v4188
    %v4207 = vpop.f32.mrf.mxu0
    %v4208 = vadd.f32 0.0, %v4207
    %4209 = vdwg.mxu0
    %4210 = vmatpush.msra.mxu0 0.0
    %4211 = vmatpush.msra.mxu0 0.0
    %4212 = vmatpush.msra.mxu0 0.0
    %4213 = vmatpush.msra.mxu0 0.0
    %4214 = vmatpush.msra.mxu0 0.0
    %4215 = vmatpush.msra.mxu0 0.0
    %4216 = vmatpush.msra.mxu0 0.0
    %4217 = vmatpush.msra.mxu0 0.0
    %4218 = vmatpush.msra.mxu0 %v401
    %4219 = vmatpush.msra.mxu0 %v399
    %4220 = vmatpush.msra.mxu0 %v397
    %4221 = vmatpush.msra.mxu0 %v395
    %4222 = vmatpush.msra.mxu0 %v393
    %4223 = vmatpush.msra.mxu0 %v391
    %4224 = vmatpush.msra.mxu0 %v389
    %4225 = vmatpush.msra.mxu0 %v387
    %4226 = vmatmul.f32.gmra.mxu0 %v4188
    %v4227 = vpop.f32.mrf.mxu0
    %v4228 = vadd.f32 0.0, %v4227
    %4229 = vdwg.mxu0
    %v4232 = vrot.slane %v4208, 1
    %v4233 = vrot.slane %v4228, 1
    %v4236 = vadd.f32 %v1765, %v4232
    %v4237 = vadd.f32 %v1788, %v4233
    %v4238 = vxor.u32 %v4236, 2147483648
    %v4239 = vmul.f32 %v4238, 1.442695
    %v4240 = vpow.pop %v4239
    %v4241 = vadd.f32 %v4240, 1.0
    %v4242 = vrcp.pop %v4241
    %v4243 = vmul.f32 %v4241, %v4242
    %v4244 = vsub.f32 1.0, %v4243
    %v4245 = vmul.f32 %v4242, %v4244
    %v4246 = vadd.f32 %v4242, %v4245
    %vm4247 = vweird.f32 %v4241
    %vm4248 = vweird.f32 %v4242
    %vm4249 = vmor %vm4247, %vm4248
    %v4250 = vsel %vm4249, %v4242, %v4246
    %v4251 = vand.u32 2147483647, %v4241
    %vm4252 = vcmp.eq.f32.partialorder %v4251, 8.507059e+37
    %v4253 = vand.u32 %v4241, 2147483648
    %v4254 = vor.u32 1.1754944e-38, %v4253
    %v4255 = vsel %vm4252, %v4254, %v4250
    %v4256 = vmul.f32 1.0, %v4255
    %v4257 = vtanh.pop %v4237
    %v4258 = vxor.u32 %v4237, 2147483648
    %v4259 = vmul.f32 %v4258, 1.442695
    %v4260 = vpow.pop %v4259
    %v4261 = vadd.f32 %v4260, 1.0
    %v4262 = vrcp.pop %v4261
    %v4263 = vmul.f32 %v4261, %v4262
    %v4264 = vsub.f32 1.0, %v4263
    %v4265 = vmul.f32 %v4262, %v4264
    %v4266 = vadd.f32 %v4262, %v4265
    %vm4267 = vweird.f32 %v4261
    %vm4268 = vweird.f32 %v4262
    %vm4269 = vmor %vm4267, %vm4268
    %v4270 = vsel %vm4269, %v4262, %v4266
    %v4271 = vand.u32 2147483647, %v4261
    %vm4272 = vcmp.eq.f32.partialorder %v4271, 8.507059e+37
    %v4273 = vand.u32 %v4261, 2147483648
    %v4274 = vor.u32 1.1754944e-38, %v4273
    %v4275 = vsel %vm4272, %v4274, %v4270
    %v4276 = vmul.f32 1.0, %v4275
    %v4278 = vrot.slane %v4072, 7
    %v4280 = vmul.f32 %v4256, %v4278
    %v4281 = vmul.f32 %v4256, %v4257
    %4283 = vrot.lane.b32.xlu0 %v4281, 64
    %v4284 = vpop.permute.xlu0 %4283
    %v4286 = vadd.f32 %v4280, %v4284
    %v4287 = vtanh.pop %v4286
    %v4288 = vmul.f32 %v4276, %v4287
    %v4290 = vrot.slane %v4288, 7
    %v4292 = vadd.f32 %v4078, %v4290
    %4293 = vrot.lane.b32.xlu0 %v4183, 64
    %v4294 = vpop.permute.xlu0 %4293
    %v4295 = vsel %vm2754, %v4294, 0
    %4297 = vmatpush.msra.mxu0 0.0
    %4298 = vmatpush.msra.mxu0 0.0
    %4299 = vmatpush.msra.mxu0 0.0
    %4300 = vmatpush.msra.mxu0 0.0
    %4301 = vmatpush.msra.mxu0 0.0
    %4302 = vmatpush.msra.mxu0 0.0
    %4303 = vmatpush.msra.mxu0 0.0
    %4304 = vmatpush.msra.mxu0 0.0
    %4305 = vmatpush.msra.mxu0 %v400
    %4306 = vmatpush.msra.mxu0 %v398
    %4307 = vmatpush.msra.mxu0 %v396
    %4308 = vmatpush.msra.mxu0 %v394
    %4309 = vmatpush.msra.mxu0 %v392
    %4310 = vmatpush.msra.mxu0 %v390
    %4311 = vmatpush.msra.mxu0 %v388
    %4312 = vmatpush.msra.mxu0 %v386
    %4313 = vmatmul.f32.gmra.mxu0 %v4295
    %v4314 = vpop.f32.mrf.mxu0
    %v4315 = vadd.f32 0.0, %v4314
    %4316 = vdwg.mxu0
    %4317 = vmatpush.msra.mxu0 0.0
    %4318 = vmatpush.msra.mxu0 0.0
    %4319 = vmatpush.msra.mxu0 0.0
    %4320 = vmatpush.msra.mxu0 0.0
    %4321 = vmatpush.msra.mxu0 0.0
    %4322 = vmatpush.msra.mxu0 0.0
    %4323 = vmatpush.msra.mxu0 0.0
    %4324 = vmatpush.msra.mxu0 0.0
    %4325 = vmatpush.msra.mxu0 %v401
    %4326 = vmatpush.msra.mxu0 %v399
    %4327 = vmatpush.msra.mxu0 %v397
    %4328 = vmatpush.msra.mxu0 %v395
    %4329 = vmatpush.msra.mxu0 %v393
    %4330 = vmatpush.msra.mxu0 %v391
    %4331 = vmatpush.msra.mxu0 %v389
    %4332 = vmatpush.msra.mxu0 %v387
    %4333 = vmatmul.f32.gmra.mxu0 %v4295
    %v4334 = vpop.f32.mrf.mxu0
    %v4335 = vadd.f32 0.0, %v4334
    %4336 = vdwg.mxu0
    %v4339 = vrot.slane %v4315, 1
    %v4340 = vrot.slane %v4335, 1
    %v4343 = vadd.f32 %v2726, %v4339
    %v4344 = vadd.f32 %v2749, %v4340
    %v4345 = vxor.u32 %v4343, 2147483648
    %v4346 = vmul.f32 %v4345, 1.442695
    %v4347 = vpow.pop %v4346
    %v4348 = vadd.f32 %v4347, 1.0
    %v4349 = vrcp.pop %v4348
    %v4350 = vmul.f32 %v4348, %v4349
    %v4351 = vsub.f32 1.0, %v4350
    %v4352 = vmul.f32 %v4349, %v4351
    %v4353 = vadd.f32 %v4349, %v4352
    %vm4354 = vweird.f32 %v4348
    %vm4355 = vweird.f32 %v4349
    %vm4356 = vmor %vm4354, %vm4355
    %v4357 = vsel %vm4356, %v4349, %v4353
    %v4358 = vand.u32 2147483647, %v4348
    %vm4359 = vcmp.eq.f32.partialorder %v4358, 8.507059e+37
    %v4360 = vand.u32 %v4348, 2147483648
    %v4361 = vor.u32 1.1754944e-38, %v4360
    %v4362 = vsel %vm4359, %v4361, %v4357
    %v4363 = vmul.f32 1.0, %v4362
    %v4364 = vtanh.pop %v4344
    %v4365 = vxor.u32 %v4344, 2147483648
    %v4366 = vmul.f32 %v4365, 1.442695
    %v4367 = vpow.pop %v4366
    %v4368 = vadd.f32 %v4367, 1.0
    %v4369 = vrcp.pop %v4368
    %v4370 = vmul.f32 %v4368, %v4369
    %v4371 = vsub.f32 1.0, %v4370
    %v4372 = vmul.f32 %v4369, %v4371
    %v4373 = vadd.f32 %v4369, %v4372
    %vm4374 = vweird.f32 %v4368
    %vm4375 = vweird.f32 %v4369
    %vm4376 = vmor %vm4374, %vm4375
    %v4377 = vsel %vm4376, %v4369, %v4373
    %v4378 = vand.u32 2147483647, %v4368
    %vm4379 = vcmp.eq.f32.partialorder %v4378, 8.507059e+37
    %v4380 = vand.u32 %v4368, 2147483648
    %v4381 = vor.u32 1.1754944e-38, %v4380
    %v4382 = vsel %vm4379, %v4381, %v4377
    %v4383 = vmul.f32 1.0, %v4382
    %v4385 = vrot.slane %v4179, 7
    %v4387 = vmul.f32 %v4363, %v4385
    %v4388 = vmul.f32 %v4363, %v4364
    %4390 = vrot.lane.b32.xlu0 %v4388, 64
    %v4391 = vpop.permute.xlu0 %4390
    %v4393 = vadd.f32 %v4387, %v4391
    %v4394 = vtanh.pop %v4393
    %v4395 = vmul.f32 %v4383, %v4394
    %v4397 = vrot.slane %v4395, 7
    %v4399 = vadd.f32 %v4185, %v4397
    %4400 = vrot.lane.b32.xlu0 %v4290, 64
    %v4401 = vpop.permute.xlu0 %4400
    %v4402 = vsel %vm2754, %v4401, 0
    %4404 = vmatpush.msra.mxu0 0.0
    %4405 = vmatpush.msra.mxu0 0.0
    %4406 = vmatpush.msra.mxu0 0.0
    %4407 = vmatpush.msra.mxu0 0.0
    %4408 = vmatpush.msra.mxu0 0.0
    %4409 = vmatpush.msra.mxu0 0.0
    %4410 = vmatpush.msra.mxu0 0.0
    %4411 = vmatpush.msra.mxu0 0.0
    %4412 = vmatpush.msra.mxu0 %v400
    %4413 = vmatpush.msra.mxu0 %v398
    %4414 = vmatpush.msra.mxu0 %v396
    %4415 = vmatpush.msra.mxu0 %v394
    %4416 = vmatpush.msra.mxu0 %v392
    %4417 = vmatpush.msra.mxu0 %v390
    %4418 = vmatpush.msra.mxu0 %v388
    %4419 = vmatpush.msra.mxu0 %v386
    %4420 = vmatmul.f32.gmra.mxu0 %v4402
    %v4421 = vpop.f32.mrf.mxu0
    %v4422 = vadd.f32 0.0, %v4421
    %4423 = vdwg.mxu0
    %4424 = vmatpush.msra.mxu0 0.0
    %4425 = vmatpush.msra.mxu0 0.0
    %4426 = vmatpush.msra.mxu0 0.0
    %4427 = vmatpush.msra.mxu0 0.0
    %4428 = vmatpush.msra.mxu0 0.0
    %4429 = vmatpush.msra.mxu0 0.0
    %4430 = vmatpush.msra.mxu0 0.0
    %4431 = vmatpush.msra.mxu0 0.0
    %4432 = vmatpush.msra.mxu0 %v401
    %4433 = vmatpush.msra.mxu0 %v399
    %4434 = vmatpush.msra.mxu0 %v397
    %4435 = vmatpush.msra.mxu0 %v395
    %4436 = vmatpush.msra.mxu0 %v393
    %4437 = vmatpush.msra.mxu0 %v391
    %4438 = vmatpush.msra.mxu0 %v389
    %4439 = vmatpush.msra.mxu0 %v387
    %4440 = vmatmul.f32.gmra.mxu0 %v4402
    %v4441 = vpop.f32.mrf.mxu0
    %v4442 = vadd.f32 0.0, %v4441
    %4443 = vdwg.mxu0
    %v4444 = vadd.f32 %v1768, %v4422
    %v4445 = vadd.f32 %v1791, %v4442
    %v4446 = vxor.u32 %v4444, 2147483648
    %v4447 = vmul.f32 %v4446, 1.442695
    %v4448 = vpow.pop %v4447
    %v4449 = vadd.f32 %v4448, 1.0
    %v4450 = vrcp.pop %v4449
    %v4451 = vmul.f32 %v4449, %v4450
    %v4452 = vsub.f32 1.0, %v4451
    %v4453 = vmul.f32 %v4450, %v4452
    %v4454 = vadd.f32 %v4450, %v4453
    %vm4455 = vweird.f32 %v4449
    %vm4456 = vweird.f32 %v4450
    %vm4457 = vmor %vm4455, %vm4456
    %v4458 = vsel %vm4457, %v4450, %v4454
    %v4459 = vand.u32 2147483647, %v4449
    %vm4460 = vcmp.eq.f32.partialorder %v4459, 8.507059e+37
    %v4461 = vand.u32 %v4449, 2147483648
    %v4462 = vor.u32 1.1754944e-38, %v4461
    %v4463 = vsel %vm4460, %v4462, %v4458
    %v4464 = vmul.f32 1.0, %v4463
    %v4465 = vtanh.pop %v4445
    %v4466 = vxor.u32 %v4445, 2147483648
    %v4467 = vmul.f32 %v4466, 1.442695
    %v4468 = vpow.pop %v4467
    %v4469 = vadd.f32 %v4468, 1.0
    %v4470 = vrcp.pop %v4469
    %v4471 = vmul.f32 %v4469, %v4470
    %v4472 = vsub.f32 1.0, %v4471
    %v4473 = vmul.f32 %v4470, %v4472
    %v4474 = vadd.f32 %v4470, %v4473
    %vm4475 = vweird.f32 %v4469
    %vm4476 = vweird.f32 %v4470
    %vm4477 = vmor %vm4475, %vm4476
    %v4478 = vsel %vm4477, %v4470, %v4474
    %v4479 = vand.u32 2147483647, %v4469
    %vm4480 = vcmp.eq.f32.partialorder %v4479, 8.507059e+37
    %v4481 = vand.u32 %v4469, 2147483648
    %v4482 = vor.u32 1.1754944e-38, %v4481
    %v4483 = vsel %vm4480, %v4482, %v4478
    %v4484 = vmul.f32 1.0, %v4483
    %v4486 = vrot.slane %v4286, 7
    %v4488 = vmul.f32 %v4464, %v4486
    %v4489 = vmul.f32 %v4464, %v4465
    %4491 = vrot.lane.b32.xlu0 %v4489, 64
    %v4492 = vpop.permute.xlu0 %4491
    %v4494 = vadd.f32 %v4488, %v4492
    %v4495 = vtanh.pop %v4494
    %v4496 = vmul.f32 %v4484, %v4495
    %v4497 = vadd.f32 %v4292, %v4496
    %4498 = vrot.lane.b32.xlu0 %v4397, 64
    %v4499 = vpop.permute.xlu0 %4498
    %v4500 = vsel %vm2754, %v4499, 0
    %4502 = vmatpush.msra.mxu0 0.0
    %4503 = vmatpush.msra.mxu0 0.0
    %4504 = vmatpush.msra.mxu0 0.0
    %4505 = vmatpush.msra.mxu0 0.0
    %4506 = vmatpush.msra.mxu0 0.0
    %4507 = vmatpush.msra.mxu0 0.0
    %4508 = vmatpush.msra.mxu0 0.0
    %4509 = vmatpush.msra.mxu0 0.0
    %4510 = vmatpush.msra.mxu0 %v400
    %4511 = vmatpush.msra.mxu0 %v398
    %4512 = vmatpush.msra.mxu0 %v396
    %4513 = vmatpush.msra.mxu0 %v394
    %4514 = vmatpush.msra.mxu0 %v392
    %4515 = vmatpush.msra.mxu0 %v390
    %4516 = vmatpush.msra.mxu0 %v388
    %4517 = vmatpush.msra.mxu0 %v386
    %4518 = vmatmul.f32.gmra.mxu0 %v4500
    %v4519 = vpop.f32.mrf.mxu0
    %v4520 = vadd.f32 0.0, %v4519
    %4521 = vdwg.mxu0
    %4522 = vmatpush.msra.mxu0 0.0
    %4523 = vmatpush.msra.mxu0 0.0
    %4524 = vmatpush.msra.mxu0 0.0
    %4525 = vmatpush.msra.mxu0 0.0
    %4526 = vmatpush.msra.mxu0 0.0
    %4527 = vmatpush.msra.mxu0 0.0
    %4528 = vmatpush.msra.mxu0 0.0
    %4529 = vmatpush.msra.mxu0 0.0
    %4530 = vmatpush.msra.mxu0 %v401
    %4531 = vmatpush.msra.mxu0 %v399
    %4532 = vmatpush.msra.mxu0 %v397
    %4533 = vmatpush.msra.mxu0 %v395
    %4534 = vmatpush.msra.mxu0 %v393
    %4535 = vmatpush.msra.mxu0 %v391
    %4536 = vmatpush.msra.mxu0 %v389
    %4537 = vmatpush.msra.mxu0 %v387
    %4538 = vmatmul.f32.gmra.mxu0 %v4500
    %v4539 = vpop.f32.mrf.mxu0
    %v4540 = vadd.f32 0.0, %v4539
    %4541 = vdwg.mxu0
    %v4542 = vadd.f32 %v2729, %v4520
    %v4543 = vadd.f32 %v2752, %v4540
    %v4544 = vxor.u32 %v4542, 2147483648
    %v4545 = vmul.f32 %v4544, 1.442695
    %v4546 = vpow.pop %v4545
    %v4547 = vadd.f32 %v4546, 1.0
    %v4548 = vrcp.pop %v4547
    %v4549 = vmul.f32 %v4547, %v4548
    %v4550 = vsub.f32 1.0, %v4549
    %v4551 = vmul.f32 %v4548, %v4550
    %v4552 = vadd.f32 %v4548, %v4551
    %vm4553 = vweird.f32 %v4547
    %vm4554 = vweird.f32 %v4548
    %vm4555 = vmor %vm4553, %vm4554
    %v4556 = vsel %vm4555, %v4548, %v4552
    %v4557 = vand.u32 2147483647, %v4547
    %vm4558 = vcmp.eq.f32.partialorder %v4557, 8.507059e+37
    %v4559 = vand.u32 %v4547, 2147483648
    %v4560 = vor.u32 1.1754944e-38, %v4559
    %v4561 = vsel %vm4558, %v4560, %v4556
    %v4562 = vmul.f32 1.0, %v4561
    %v4563 = vtanh.pop %v4543
    %v4564 = vxor.u32 %v4543, 2147483648
    %v4565 = vmul.f32 %v4564, 1.442695
    %v4566 = vpow.pop %v4565
    %v4567 = vadd.f32 %v4566, 1.0
    %v4568 = vrcp.pop %v4567
    %v4569 = vmul.f32 %v4567, %v4568
    %v4570 = vsub.f32 1.0, %v4569
    %v4571 = vmul.f32 %v4568, %v4570
    %v4572 = vadd.f32 %v4568, %v4571
    %vm4573 = vweird.f32 %v4567
    %vm4574 = vweird.f32 %v4568
    %vm4575 = vmor %vm4573, %vm4574
    %v4576 = vsel %vm4575, %v4568, %v4572
    %v4577 = vand.u32 2147483647, %v4567
    %vm4578 = vcmp.eq.f32.partialorder %v4577, 8.507059e+37
    %v4579 = vand.u32 %v4567, 2147483648
    %v4580 = vor.u32 1.1754944e-38, %v4579
    %v4581 = vsel %vm4578, %v4580, %v4576
    %v4582 = vmul.f32 1.0, %v4581
    %v4584 = vrot.slane %v4393, 7
    %v4586 = vmul.f32 %v4562, %v4584
    %v4587 = vmul.f32 %v4562, %v4563
    %4589 = vrot.lane.b32.xlu0 %v4587, 64
    %v4590 = vpop.permute.xlu0 %4589
    %v4592 = vadd.f32 %v4586, %v4590
    %v4593 = vtanh.pop %v4592
    %v4594 = vmul.f32 %v4582, %v4593
    %v4595 = vadd.f32 %v4399, %v4594
    %4597 = vrot.lane.b32.xlu0 %v4496, 64
    %v4598 = vpop.permute.xlu0 %4597
    %v4599 = vsel %vm2754, %v4598, 0
    %4601 = vmatpush.msra.mxu0 0.0
    %4602 = vmatpush.msra.mxu0 0.0
    %4603 = vmatpush.msra.mxu0 0.0
    %4604 = vmatpush.msra.mxu0 0.0
    %4605 = vmatpush.msra.mxu0 0.0
    %4606 = vmatpush.msra.mxu0 0.0
    %4607 = vmatpush.msra.mxu0 0.0
    %4608 = vmatpush.msra.mxu0 0.0
    %4609 = vmatpush.msra.mxu0 %v400
    %4610 = vmatpush.msra.mxu0 %v398
    %4611 = vmatpush.msra.mxu0 %v396
    %4612 = vmatpush.msra.mxu0 %v394
    %4613 = vmatpush.msra.mxu0 %v392
    %4614 = vmatpush.msra.mxu0 %v390
    %4615 = vmatpush.msra.mxu0 %v388
    %4616 = vmatpush.msra.mxu0 %v386
    %4617 = vmatmul.f32.gmra.mxu0 %v4599
    %v4618 = vpop.f32.mrf.mxu0
    %v4619 = vadd.f32 0.0, %v4618
    %4620 = vdwg.mxu0
    %4621 = vmatpush.msra.mxu0 0.0
    %4622 = vmatpush.msra.mxu0 0.0
    %4623 = vmatpush.msra.mxu0 0.0
    %4624 = vmatpush.msra.mxu0 0.0
    %4625 = vmatpush.msra.mxu0 0.0
    %4626 = vmatpush.msra.mxu0 0.0
    %4627 = vmatpush.msra.mxu0 0.0
    %4628 = vmatpush.msra.mxu0 0.0
    %4629 = vmatpush.msra.mxu0 %v401
    %4630 = vmatpush.msra.mxu0 %v399
    %4631 = vmatpush.msra.mxu0 %v397
    %4632 = vmatpush.msra.mxu0 %v395
    %4633 = vmatpush.msra.mxu0 %v393
    %4634 = vmatpush.msra.mxu0 %v391
    %4635 = vmatpush.msra.mxu0 %v389
    %4636 = vmatpush.msra.mxu0 %v387
    %4637 = vmatmul.f32.gmra.mxu0 %v4599
    %v4638 = vpop.f32.mrf.mxu0
    %v4639 = vadd.f32 0.0, %v4638
    %4640 = vdwg.mxu0
    %v4643 = vrot.slane %v4619, 7
    %v4644 = vrot.slane %v4639, 7
    %v4647 = vadd.f32 %v1768, %v4643
    %v4648 = vadd.f32 %v1791, %v4644
    %v4649 = vxor.u32 %v4647, 2147483648
    %v4650 = vmul.f32 %v4649, 1.442695
    %v4651 = vpow.pop %v4650
    %v4652 = vadd.f32 %v4651, 1.0
    %v4653 = vrcp.pop %v4652
    %v4654 = vmul.f32 %v4652, %v4653
    %v4655 = vsub.f32 1.0, %v4654
    %v4656 = vmul.f32 %v4653, %v4655
    %v4657 = vadd.f32 %v4653, %v4656
    %vm4658 = vweird.f32 %v4652
    %vm4659 = vweird.f32 %v4653
    %vm4660 = vmor %vm4658, %vm4659
    %v4661 = vsel %vm4660, %v4653, %v4657
    %v4662 = vand.u32 2147483647, %v4652
    %vm4663 = vcmp.eq.f32.partialorder %v4662, 8.507059e+37
    %v4664 = vand.u32 %v4652, 2147483648
    %v4665 = vor.u32 1.1754944e-38, %v4664
    %v4666 = vsel %vm4663, %v4665, %v4661
    %v4667 = vmul.f32 1.0, %v4666
    %v4668 = vtanh.pop %v4648
    %v4669 = vxor.u32 %v4648, 2147483648
    %v4670 = vmul.f32 %v4669, 1.442695
    %v4671 = vpow.pop %v4670
    %v4672 = vadd.f32 %v4671, 1.0
    %v4673 = vrcp.pop %v4672
    %v4674 = vmul.f32 %v4672, %v4673
    %v4675 = vsub.f32 1.0, %v4674
    %v4676 = vmul.f32 %v4673, %v4675
    %v4677 = vadd.f32 %v4673, %v4676
    %vm4678 = vweird.f32 %v4672
    %vm4679 = vweird.f32 %v4673
    %vm4680 = vmor %vm4678, %vm4679
    %v4681 = vsel %vm4680, %v4673, %v4677
    %v4682 = vand.u32 2147483647, %v4672
    %vm4683 = vcmp.eq.f32.partialorder %v4682, 8.507059e+37
    %v4684 = vand.u32 %v4672, 2147483648
    %v4685 = vor.u32 1.1754944e-38, %v4684
    %v4686 = vsel %vm4683, %v4685, %v4681
    %v4687 = vmul.f32 1.0, %v4686
    %v4689 = vrot.slane %v4494, 7
    %v4691 = vmul.f32 %v4667, %v4689
    %v4692 = vmul.f32 %v4667, %v4668
    %4694 = vrot.lane.b32.xlu0 %v4692, 64
    %v4695 = vpop.permute.xlu0 %4694
    %v4697 = vadd.f32 %v4691, %v4695
    %v4698 = vtanh.pop %v4697
    %v4699 = vmul.f32 %v4687, %v4698
    %v4701 = vrot.slane %v4699, 1
    %v4703 = vadd.f32 %v4497, %v4701
    %4705 = vrot.lane.b32.xlu0 %v4594, 64
    %v4706 = vpop.permute.xlu0 %4705
    %v4707 = vsel %vm2754, %v4706, 0
    %4709 = vmatpush.msra.mxu0 0.0
    %4710 = vmatpush.msra.mxu0 0.0
    %4711 = vmatpush.msra.mxu0 0.0
    %4712 = vmatpush.msra.mxu0 0.0
    %4713 = vmatpush.msra.mxu0 0.0
    %4714 = vmatpush.msra.mxu0 0.0
    %4715 = vmatpush.msra.mxu0 0.0
    %4716 = vmatpush.msra.mxu0 0.0
    %4717 = vmatpush.msra.mxu0 %v400
    %4718 = vmatpush.msra.mxu0 %v398
    %4719 = vmatpush.msra.mxu0 %v396
    %4720 = vmatpush.msra.mxu0 %v394
    %4721 = vmatpush.msra.mxu0 %v392
    %4722 = vmatpush.msra.mxu0 %v390
    %4723 = vmatpush.msra.mxu0 %v388
    %4724 = vmatpush.msra.mxu0 %v386
    %4725 = vmatmul.f32.gmra.mxu0 %v4707
    %v4726 = vpop.f32.mrf.mxu0
    %v4727 = vadd.f32 0.0, %v4726
    %4728 = vdwg.mxu0
    %4729 = vmatpush.msra.mxu0 0.0
    %4730 = vmatpush.msra.mxu0 0.0
    %4731 = vmatpush.msra.mxu0 0.0
    %4732 = vmatpush.msra.mxu0 0.0
    %4733 = vmatpush.msra.mxu0 0.0
    %4734 = vmatpush.msra.mxu0 0.0
    %4735 = vmatpush.msra.mxu0 0.0
    %4736 = vmatpush.msra.mxu0 0.0
    %4737 = vmatpush.msra.mxu0 %v401
    %4738 = vmatpush.msra.mxu0 %v399
    %4739 = vmatpush.msra.mxu0 %v397
    %4740 = vmatpush.msra.mxu0 %v395
    %4741 = vmatpush.msra.mxu0 %v393
    %4742 = vmatpush.msra.mxu0 %v391
    %4743 = vmatpush.msra.mxu0 %v389
    %4744 = vmatpush.msra.mxu0 %v387
    %4745 = vmatmul.f32.gmra.mxu0 %v4707
    %v4746 = vpop.f32.mrf.mxu0
    %v4747 = vadd.f32 0.0, %v4746
    %4748 = vdwg.mxu0
    %v4751 = vrot.slane %v4727, 7
    %v4752 = vrot.slane %v4747, 7
    %v4755 = vadd.f32 %v2729, %v4751
    %v4756 = vadd.f32 %v2752, %v4752
    %v4757 = vxor.u32 %v4755, 2147483648
    %v4758 = vmul.f32 %v4757, 1.442695
    %v4759 = vpow.pop %v4758
    %v4760 = vadd.f32 %v4759, 1.0
    %v4761 = vrcp.pop %v4760
    %v4762 = vmul.f32 %v4760, %v4761
    %v4763 = vsub.f32 1.0, %v4762
    %v4764 = vmul.f32 %v4761, %v4763
    %v4765 = vadd.f32 %v4761, %v4764
    %vm4766 = vweird.f32 %v4760
    %vm4767 = vweird.f32 %v4761
    %vm4768 = vmor %vm4766, %vm4767
    %v4769 = vsel %vm4768, %v4761, %v4765
    %v4770 = vand.u32 2147483647, %v4760
    %vm4771 = vcmp.eq.f32.partialorder %v4770, 8.507059e+37
    %v4772 = vand.u32 %v4760, 2147483648
    %v4773 = vor.u32 1.1754944e-38, %v4772
    %v4774 = vsel %vm4771, %v4773, %v4769
    %v4775 = vmul.f32 1.0, %v4774
    %v4776 = vtanh.pop %v4756
    %v4777 = vxor.u32 %v4756, 2147483648
    %v4778 = vmul.f32 %v4777, 1.442695
    %v4779 = vpow.pop %v4778
    %v4780 = vadd.f32 %v4779, 1.0
    %v4781 = vrcp.pop %v4780
    %v4782 = vmul.f32 %v4780, %v4781
    %v4783 = vsub.f32 1.0, %v4782
    %v4784 = vmul.f32 %v4781, %v4783
    %v4785 = vadd.f32 %v4781, %v4784
    %vm4786 = vweird.f32 %v4780
    %vm4787 = vweird.f32 %v4781
    %vm4788 = vmor %vm4786, %vm4787
    %v4789 = vsel %vm4788, %v4781, %v4785
    %v4790 = vand.u32 2147483647, %v4780
    %vm4791 = vcmp.eq.f32.partialorder %v4790, 8.507059e+37
    %v4792 = vand.u32 %v4780, 2147483648
    %v4793 = vor.u32 1.1754944e-38, %v4792
    %v4794 = vsel %vm4791, %v4793, %v4789
    %v4795 = vmul.f32 1.0, %v4794
    %v4797 = vrot.slane %v4592, 7
    %v4799 = vmul.f32 %v4775, %v4797
    %v4800 = vmul.f32 %v4775, %v4776
    %4802 = vrot.lane.b32.xlu0 %v4800, 64
    %v4803 = vpop.permute.xlu0 %4802
    %v4805 = vadd.f32 %v4799, %v4803
    %v4806 = vtanh.pop %v4805
    %v4807 = vmul.f32 %v4795, %v4806
    %v4809 = vrot.slane %v4807, 1
    %v4811 = vadd.f32 %v4595, %v4809
    %v4812 = vld [vmem:[#allocation29] sm:$0xff]
    %v4813 = vld [vmem:[#allocation29 + $0x8] sm:$0xff]
    %v4814 = vld [vmem:[#allocation29 + $0x10] sm:$0xff]
    %v4815 = vld [vmem:[#allocation29 + $0x18] sm:$0xff]
    %v4816 = vld [vmem:[#allocation29 + $0x20] sm:$0xff]
    %v4817 = vld [vmem:[#allocation29 + $0x28] sm:$0xff]
    %v4818 = vld [vmem:[#allocation29 + $0x30] sm:$0xff]
    %v4819 = vld [vmem:[#allocation29 + $0x38] sm:$0xff]
    %v4820 = vld [vmem:[%s20] sm:$0x1]
    %v4821 = vmul.f32 %v4820, 10.0
    %4823 = vrot.lane.b32.xlu0 %v4703, 64
    %v4824 = vpop.permute.xlu0 %4823
    %v4825 = vsel %vm2754, %v4824, 0
    %4827 = vmatpush.msra.mxu0 0.0
    %4828 = vmatpush.msra.mxu0 0.0
    %4829 = vmatpush.msra.mxu0 0.0
    %4830 = vmatpush.msra.mxu0 0.0
    %4831 = vmatpush.msra.mxu0 0.0
    %4832 = vmatpush.msra.mxu0 0.0
    %4833 = vmatpush.msra.mxu0 0.0
    %4834 = vmatpush.msra.mxu0 0.0
    %4835 = vmatpush.msra.mxu0 %v4819
    %4836 = vmatpush.msra.mxu0 %v4818
    %4837 = vmatpush.msra.mxu0 %v4817
    %4838 = vmatpush.msra.mxu0 %v4816
    %4839 = vmatpush.msra.mxu0 %v4815
    %4840 = vmatpush.msra.mxu0 %v4814
    %4841 = vmatpush.msra.mxu0 %v4813
    %4842 = vmatpush.msra.mxu0 %v4812
    %4843 = vmatmul.f32.gmra.mxu0 %v4825
    %v4844 = vpop.f32.mrf.mxu0
    %v4845 = vadd.f32 %v4821, %v4844
    %4846 = vdwg.mxu0
    %4848 = vrot.lane.b32.xlu0 %v4811, 64
    %v4849 = vpop.permute.xlu0 %4848
    %v4850 = vsel %vm2754, %v4849, 0
    %4852 = vmatpush.msra.mxu0 0.0
    %4853 = vmatpush.msra.mxu0 0.0
    %4854 = vmatpush.msra.mxu0 0.0
    %4855 = vmatpush.msra.mxu0 0.0
    %4856 = vmatpush.msra.mxu0 0.0
    %4857 = vmatpush.msra.mxu0 0.0
    %4858 = vmatpush.msra.mxu0 0.0
    %4859 = vmatpush.msra.mxu0 0.0
    %4860 = vmatpush.msra.mxu0 %v4819
    %4861 = vmatpush.msra.mxu0 %v4818
    %4862 = vmatpush.msra.mxu0 %v4817
    %4863 = vmatpush.msra.mxu0 %v4816
    %4864 = vmatpush.msra.mxu0 %v4815
    %4865 = vmatpush.msra.mxu0 %v4814
    %4866 = vmatpush.msra.mxu0 %v4813
    %4867 = vmatpush.msra.mxu0 %v4812
    %4868 = vmatmul.f32.gmra.mxu0 %v4850
    %v4869 = vpop.f32.mrf.mxu0
    %v4870 = vadd.f32 %v4821, %v4869
    %4871 = vdwg.mxu0
    %v4872 = vadd.f32 %v4845, %v4870
    %v4873 = vmul.f32 %v4872, 0.5
    %v4874 = vsub.f32 %v4845, %v4873
    %v4875 = vmul.f32 %v4874, %v4874
    %v4876 = vsub.f32 %v4870, %v4873
    %v4877 = vmul.f32 %v4876, %v4876
    %v4878 = vadd.f32 %v4875, %v4877
    %v4879 = vmul.f32 %v4878, 0.5
    %v4880 = vadd.f32 %v4879, 1e-05
    %v4881 = vrsqrt.pop %v4880
    %v4882 = vmul.f32 %v4881, %v4880
    %v4883 = vmul.f32 %v4882, %v4881
    %v4884 = vmul.f32 0.5, %v4883
    %v4885 = vsub.f32 1.5, %v4884
    %v4886 = vmul.f32 %v4881, %v4885
    %vm4887 = vweird.f32 %v4880
    %vm4888 = vweird.f32 %v4881
    %vm4889 = vmor %vm4887, %vm4888
    %v4890 = vsel %vm4889, %v4881, %v4886
    %v4891 = vmul.f32 %v4874, %v4890
    %v4892 = vld [vmem:[%s21] sm:$0x1]
    %v4893 = vmul.f32 %v4891, %v4892
    %v4894 = vld [vmem:[%s22] sm:$0x1]
    %v4895 = vadd.f32 %v4893, %v4894
    %v4896 = vld [vmem:[#allocation31] sm:$0xff]
    %v4897 = vld [vmem:[#allocation31 + $0x8] sm:$0xff]
    %v4898 = vld [vmem:[#allocation31 + $0x10] sm:$0xff]
    %v4899 = vld [vmem:[#allocation31 + $0x18] sm:$0xff]
    %v4900 = vld [vmem:[%s24] sm:$0x1]
    %vm4901 = vcmask 261120
    %v4903 = vsel %vm4901, %v4895, 0
    %4905 = vmatpush.msra.mxu0 0.0
    %4906 = vmatpush.msra.mxu0 0.0
    %4907 = vmatpush.msra.mxu0 0.0
    %4908 = vmatpush.msra.mxu0 0.0
    %4909 = vmatpush.msra.mxu0 0.0
    %4910 = vmatpush.msra.mxu0 0.0
    %4911 = vmatpush.msra.mxu0 0.0
    %4912 = vmatpush.msra.mxu0 0.0
    %4913 = vmatpush.msra.mxu0 0.0
    %4914 = vmatpush.msra.mxu0 0.0
    %4915 = vmatpush.msra.mxu0 0.0
    %4916 = vmatpush.msra.mxu0 0.0
    %4917 = vmatpush.msra.mxu0 %v4899
    %4918 = vmatpush.msra.mxu0 %v4898
    %4919 = vmatpush.msra.mxu0 %v4897
    %4920 = vmatpush.msra.mxu0 %v4896
    %4921 = vmatmul.f32.gmra.mxu0 %v4903
    %v4922 = vpop.f32.mrf.mxu0
    %v4923 = vadd.f32 %v4900, %v4922
    %4924 = vdwg.mxu0
    %vm4925 = vcmask 24576
    %4926 = vst.msk [vmem:[#allocation32] sm:$0x1] %vm4925, %v4923
    %v4927 = vmul.f32 %v4876, %v4890
    %v4928 = vld [vmem:[%s21] sm:$0x1]
    %v4929 = vmul.f32 %v4927, %v4928
    %v4930 = vld [vmem:[%s22] sm:$0x1]
    %v4931 = vadd.f32 %v4929, %v4930
    %v4932 = vld [vmem:[#allocation31] sm:$0xff]
    %v4933 = vld [vmem:[#allocation31 + $0x8] sm:$0xff]
    %v4934 = vld [vmem:[#allocation31 + $0x10] sm:$0xff]
    %v4935 = vld [vmem:[#allocation31 + $0x18] sm:$0xff]
    %v4936 = vld [vmem:[%s24] sm:$0x1]
    %v4938 = vsel %vm4901, %v4931, 0
    %4940 = vmatpush.msra.mxu0 0.0
    %4941 = vmatpush.msra.mxu0 0.0
    %4942 = vmatpush.msra.mxu0 0.0
    %4943 = vmatpush.msra.mxu0 0.0
    %4944 = vmatpush.msra.mxu0 0.0
    %4945 = vmatpush.msra.mxu0 0.0
    %4946 = vmatpush.msra.mxu0 0.0
    %4947 = vmatpush.msra.mxu0 0.0
    %4948 = vmatpush.msra.mxu0 0.0
    %4949 = vmatpush.msra.mxu0 0.0
    %4950 = vmatpush.msra.mxu0 0.0
    %4951 = vmatpush.msra.mxu0 0.0
    %4952 = vmatpush.msra.mxu0 %v4935
    %4953 = vmatpush.msra.mxu0 %v4934
    %4954 = vmatpush.msra.mxu0 %v4933
    %4955 = vmatpush.msra.mxu0 %v4932
    %4956 = vmatmul.f32.gmra.mxu0 %v4938
    %v4957 = vpop.f32.mrf.mxu0
    %v4958 = vadd.f32 %v4936, %v4957
    %4959 = vdwg.mxu0
    %4960 = vst.msk [vmem:[#allocation32 + $0x1] sm:$0x1] %vm4925, %v4958
    // Predicated region
    $region178: #{_lambda_.1} parent=1 // pred_check
      _
    $region179: #{_lambda_.1} parent=1 // pred_check_branch
      %4962 = sbr.rel (0) target = $region181
    $region180: #{_lambda_.1} parent=1 // pred_region
      %4964 = vsyncadd [#allocation4], 0
      %s4966 = sshll.u32 [#allocation32], 4
      %s4967 = int_to_ptr.vmem [resolvable:$true] %s4966
      %s4968 = sshll.u32 %s25, 4
      %s4969 = int_to_ptr.hbm [resolvable:$true] %s4968
      %4971 = dma.vmem_to_hbm [thread:$0]  %s4967, 32, %s4969, [#allocation4]
    $region181: #{_lambda_.1} parent=1 // pred_fallthru
      _
    // Predicated region
    $region182: #{_lambda_.1} parent=1 // pred_check
      _
    $region183: #{_lambda_.1} parent=1 // pred_check_branch
      %4973 = sbr.rel (0) target = $region185
    $region184: #{_lambda_.1} parent=1 // pred_region
      %4975 = dma.done [#allocation4], 32
    $region185: #{_lambda_.1} parent=1 // pred_fallthru
      _
    %4976 = vsyncpa [#allocation3], 1
    %4977 = vsyncpa [#allocation6], 1
    %4978 = vsyncpa [#allocation9], 1
    %4979 = vsyncpa [#allocation12], 1
    %4980 = vsyncpa [#allocation15], 1
    %4981 = vsyncpa [#allocation18], 1
    %4982 = vsyncpa [#allocation21], 1
    %4983 = vsyncpa [#allocation24], 1
    %4984 = vsyncpa [#allocation27], 1
    %4985 = vsyncpa [#allocation30], 1
    %4986 = vsyncpa [#allocation4], 1

</llo_original>
